<compile_context>
chip_gen: v7x
topology: tpu7x:2x2x1
jax: 0.10.0
libtpu: 0.0.40
codegen_flags: <defaults>
</compile_context>

<pallas_src>
import jax
import jax.numpy as jnp
from jax.experimental import pallas as pl
from jax.experimental.pallas import tpu as pltpu

B, T, D, H, OUT = 32, 8, 16, 64, 4   # batch fixed at 32 by self.h0 = randn(2, 32, 64)


def grunet_kernel(x_ref, h0_ref, w_ref, bias_ref, head_ref, out_ref):
    # x_ref:    (B, T*D)      batch-major; x_ref[:, t*D:(t+1)*D] == x[:, t, :]
    # h0_ref:   (2*B, H)      rows [0:B] forward h0, [B:2B] backward h0
    # w_ref:    (2*(D+H), 3H) [Wih_f ; Whh_f ; Wih_b ; Whh_b], gate cols [r|z|n]
    # bias_ref: (4, 3H)       row0 = folded fwd bias (b_ih+b_hh for r/z, b_ih for n)
    #                         row1[:H] = b_hn fwd, row2 = folded bwd bias,
    #                         row3[:H] = b_hn bwd
    # head_ref: (2H+1, OUT)   rows [0:H] Wout_fwd, [H:2H] Wout_bwd, [2H] b_out
    # out_ref:  (B, OUT)
    H2 = 2 * H

    def gru_step(x_t, h, w_off, bias_bc, bhn_bc):
        # x-side projection: independent of h -> scheduler can overlap it with
        # the serial h-chain; only h @ Whh is on the critical path.
        gx = jnp.dot(x_t, w_ref[w_off:w_off + D, :],
                     preferred_element_type=jnp.float32) + bias_bc
        gh = jnp.dot(h, w_ref[w_off + D:w_off + D + H, :],
                     preferred_element_type=jnp.float32)
        # one sigmoid over the full lane-aligned (B, 2H) = (32, 128) slab
        rz = jax.nn.sigmoid(gx[:, :H2] + gh[:, :H2])
        r = rz[:, :H]
        z = rz[:, H:]
        n = jnp.tanh(gx[:, H2:] + r * (gh[:, H2:] + bhn_bc))
        return (1.0 - z) * n + z * h

    # Hoisted bias broadcasts (kept out of the unrolled recurrence).
    bias_f = jnp.broadcast_to(bias_ref[0:1, :], (B, 3 * H))
    bhn_f = jnp.broadcast_to(bias_ref[1:2, :H], (B, H))

    # ---------------- forward direction: T fully-unrolled steps ----------------
    h = h0_ref[0:B, :]
    for t in range(T):
        h = gru_step(x_ref[:, t * D:(t + 1) * D], h, 0, bias_f, bhn_f)

    # ---------------- backward direction ----------------
    # r_out[:, -1] of the reverse GRU is exactly one step on x[:, T-1] from h0[1].
    bias_b = jnp.broadcast_to(bias_ref[2:3, :], (B, 3 * H))
    bhn_b = jnp.broadcast_to(bias_ref[3:4, :H], (B, H))
    h_bwd = gru_step(x_ref[:, (T - 1) * D:], h0_ref[B:, :], D + H, bias_b, bhn_b)

    # ---------------- output head ----------------
    # Split weights: avoids a lane-axis concatenate of (B,64)+(B,64).
    out_ref[...] = (
        jnp.dot(h, head_ref[0:H, :], preferred_element_type=jnp.float32)
        + jnp.dot(h_bwd, head_ref[H:2 * H, :], preferred_element_type=jnp.float32)
        + head_ref[2 * H:, :])


def pack_params(p):
    """One-time parameter packing (outside the per-call path)."""
    def fold(bih, bhh):
        # b_ih + b_hh folded for the r/z gates; the n gate keeps b_ih only
        # (its b_hn must stay inside r * (W_hn h + b_hn)).
        return jnp.concatenate([bih[:, :2 * H] + bhh[:, :2 * H], bih[:, 2 * H:]],
                               axis=1)

    zeros = jnp.zeros((1, 2 * H), jnp.float32)
    bias = jnp.concatenate([
        fold(p["bih_f"], p["bhh_f"]),
        jnp.concatenate([p["bhh_f"][:, 2 * H:], zeros], axis=1),
        fold(p["bih_b"], p["bhh_b"]),
        jnp.concatenate([p["bhh_b"][:, 2 * H:], zeros], axis=1),
    ], axis=0)                                                          # (4, 3H)
    w = jnp.concatenate([p["wih_f"], p["whh_f"], p["wih_b"], p["whh_b"]],
                        axis=0)                                         # (160, 3H)
    head = jnp.concatenate([p["wout"], p["bout"]], axis=0)              # (129, OUT)
    h0 = p["h0"].reshape(2 * B, H)                                      # (64, H)
    return dict(w=w, bias=bias, head=head, h0=h0)


@jax.jit
def grunet_forward(x, packed):
    # (B, T, D) -> (B, T*D): contiguous trailing-dim collapse (no transpose,
    # no extra HBM round trip).
    x2d = x.reshape(B, T * D)
    vmem = pl.BlockSpec(memory_space=pltpu.MemorySpace.VMEM)
    return pl.pallas_call(
        grunet_kernel,
        out_shape=jax.ShapeDtypeStruct((B, OUT), jnp.float32),
        in_specs=[vmem] * 5,          # whole (tiny) problem resident in VMEM
        out_specs=vmem,
    )(x2d, packed["h0"], packed["w"], packed["bias"], packed["head"])


def grunet_ref(x, p):
    """Pure-JAX reference of the same forward pass (unfused biases)."""
    def cell(x_t, h, wih, whh, bih, bhh):
        gx = x_t @ wih + bih              # (B, 3H), gate order [r | z | n]
        gh = h @ whh + bhh
        r = jax.nn.sigmoid(gx[:, :H] + gh[:, :H])
        z = jax.nn.sigmoid(gx[:, H:2 * H] + gh[:, H:2 * H])
        n = jnp.tanh(gx[:, 2 * H:] + r * gh[:, 2 * H:])
        return (1.0 - z) * n + z * h

    h = p["h0"][0]
    for t in range(T):
        h = cell(x[:, t], h, p["wih_f"], p["whh_f"], p["bih_f"], p["bhh_f"])
    hb = cell(x[:, T - 1], p["h0"][1], p["wih_b"], p["whh_b"], p["bih_b"], p["bhh_b"])
    feat = jnp.concatenate([h, hb], axis=-1)
    return feat @ p["wout"] + p["bout"]


def init_params(key):
    ks = jax.random.split(key, 11)
    k_gru = 1.0 / jnp.sqrt(jnp.float32(H))       # PyTorch GRU init range
    k_lin = 1.0 / jnp.sqrt(jnp.float32(2 * H))   # PyTorch Linear init range
    u = lambda k, shape, lim: jax.random.uniform(k, shape, jnp.float32, -lim, lim)
    return dict(
        h0=jax.random.normal(ks[0], (2, B, H), jnp.float32),   # torch.randn(2, 32, 64)
        wih_f=u(ks[1], (D, 3 * H), k_gru), whh_f=u(ks[2], (H, 3 * H), k_gru),
        bih_f=u(ks[3], (1, 3 * H), k_gru), bhh_f=u(ks[4], (1, 3 * H), k_gru),
        wih_b=u(ks[5], (D, 3 * H), k_gru), whh_b=u(ks[6], (H, 3 * H), k_gru),
        bih_b=u(ks[7], (1, 3 * H), k_gru), bhh_b=u(ks[8], (1, 3 * H), k_gru),
        wout=u(ks[9], (2 * H, OUT), k_lin), bout=u(ks[10], (1, OUT), k_lin),
    )


if __name__ == "__main__":
    key = jax.random.PRNGKey(0)
    k_x, k_p = jax.random.split(key)
    params = init_params(k_p)
    packed = pack_params(params)                          # one-time prep
    x = jax.random.normal(k_x, (B, T, D), jnp.float32)    # (batch=32, seq=8, input=16)

    out = jax.block_until_ready(grunet_forward(x, packed))
    ref = grunet_ref(x, params)

    assert out.shape == (B, OUT)
    assert jnp.allclose(out, ref, rtol=1e-4, atol=1e-5), float(jnp.max(jnp.abs(out - ref)))
    print("KERNEL_OK")
</pallas_src>

<mosaic_0001>
module attributes {stable_mosaic.version = 11 : i64} {
  func.func @grunet_kernel(%arg0: memref<32x128xf32, #tpu.memory_space<vmem>>, %arg1: memref<64x64xf32, #tpu.memory_space<vmem>>, %arg2: memref<160x192xf32, #tpu.memory_space<vmem>>, %arg3: memref<4x192xf32, #tpu.memory_space<vmem>>, %arg4: memref<129x4xf32, #tpu.memory_space<vmem>>, %arg5: memref<32x4xf32, #tpu.memory_space<vmem>>) attributes {dimension_semantics = [], scalar_prefetch = 0 : i64, scratch_operands = 0 : i64, tpu.core_type = #tpu.core_type<tc>} {
    %c0 = arith.constant 0 : index
    %c0_0 = arith.constant 0 : index
    %0 = vector.load %arg3[%c0, %c0_0] : memref<4x192xf32, #tpu.memory_space<vmem>>, vector<1x192xf32>
    %1 = vector.shape_cast %0 : vector<1x192xf32> to vector<1x192xf32>
    %2 = vector.broadcast %1 : vector<1x192xf32> to vector<32x192xf32>
    %c1 = arith.constant 1 : index
    %c0_1 = arith.constant 0 : index
    %3 = vector.load %arg3[%c1, %c0_1] : memref<4x192xf32, #tpu.memory_space<vmem>>, vector<1x64xf32>
    %4 = vector.shape_cast %3 : vector<1x64xf32> to vector<1x64xf32>
    %5 = vector.broadcast %4 : vector<1x64xf32> to vector<32x64xf32>
    %c0_2 = arith.constant 0 : index
    %c0_3 = arith.constant 0 : index
    %6 = vector.load %arg1[%c0_2, %c0_3] : memref<64x64xf32, #tpu.memory_space<vmem>>, vector<32x64xf32>
    %c0_4 = arith.constant 0 : index
    %c0_5 = arith.constant 0 : index
    %7 = vector.load %arg0[%c0_4, %c0_5] : memref<32x128xf32, #tpu.memory_space<vmem>>, vector<32x16xf32>
    %c0_6 = arith.constant 0 : index
    %c0_7 = arith.constant 0 : index
    %8 = vector.load %arg2[%c0_6, %c0_7] : memref<160x192xf32, #tpu.memory_space<vmem>>, vector<16x192xf32>
    %cst = arith.constant dense<0.000000e+00> : vector<32x192xf32>
    %9 = tpu.matmul %7, %8, %cst {dimension_numbers = #tpu.dot_dimension_numbers<[1], [0], [0], [1], [0, 0, 1, 1], [], []>} : vector<32x16xf32>, vector<16x192xf32>, vector<32x192xf32> -> vector<32x192xf32>
    %10 = arith.addf %9, %2 : vector<32x192xf32>
    %c16 = arith.constant 16 : index
    %c0_8 = arith.constant 0 : index
    %11 = vector.load %arg2[%c16, %c0_8] : memref<160x192xf32, #tpu.memory_space<vmem>>, vector<64x192xf32>
    %cst_9 = arith.constant dense<0.000000e+00> : vector<32x192xf32>
    %12 = tpu.matmul %6, %11, %cst_9 {dimension_numbers = #tpu.dot_dimension_numbers<[1], [0], [0], [1], [0, 0, 1, 1], [], []>} : vector<32x64xf32>, vector<64x192xf32>, vector<32x192xf32> -> vector<32x192xf32>
    %13 = vector.extract_strided_slice %10 {offsets = [0, 0], sizes = [32, 128], strides = [1, 1]} : vector<32x192xf32> to vector<32x128xf32>
    %14 = vector.extract_strided_slice %12 {offsets = [0, 0], sizes = [32, 128], strides = [1, 1]} : vector<32x192xf32> to vector<32x128xf32>
    %15 = arith.addf %13, %14 : vector<32x128xf32>
    %16 = arith.negf %15 : vector<32x128xf32>
    %17 = math.exp %16 : vector<32x128xf32>
    %cst_10 = arith.constant 1.000000e+00 : f32
    %18 = vector.broadcast %cst_10 : f32 to vector<32x128xf32>
    %19 = arith.addf %18, %17 : vector<32x128xf32>
    %20 = arith.divf %18, %19 : vector<32x128xf32>
    %21 = vector.extract_strided_slice %20 {offsets = [0, 0], sizes = [32, 64], strides = [1, 1]} : vector<32x128xf32> to vector<32x64xf32>
    %22 = vector.extract_strided_slice %20 {offsets = [0, 64], sizes = [32, 64], strides = [1, 1]} : vector<32x128xf32> to vector<32x64xf32>
    %23 = vector.extract_strided_slice %10 {offsets = [0, 128], sizes = [32, 64], strides = [1, 1]} : vector<32x192xf32> to vector<32x64xf32>
    %24 = vector.extract_strided_slice %12 {offsets = [0, 128], sizes = [32, 64], strides = [1, 1]} : vector<32x192xf32> to vector<32x64xf32>
    %25 = arith.addf %24, %5 : vector<32x64xf32>
    %26 = arith.mulf %21, %25 : vector<32x64xf32>
    %27 = arith.addf %23, %26 : vector<32x64xf32>
    %28 = math.tanh %27 : vector<32x64xf32>
    %cst_11 = arith.constant 1.000000e+00 : f32
    %29 = vector.broadcast %cst_11 : f32 to vector<32x64xf32>
    %30 = arith.subf %29, %22 : vector<32x64xf32>
    %31 = arith.mulf %30, %28 : vector<32x64xf32>
    %32 = arith.mulf %22, %6 : vector<32x64xf32>
    %33 = arith.addf %31, %32 : vector<32x64xf32>
    %c0_12 = arith.constant 0 : index
    %c16_13 = arith.constant 16 : index
    %34 = vector.load %arg0[%c0_12, %c16_13] : memref<32x128xf32, #tpu.memory_space<vmem>>, vector<32x16xf32>
    %c0_14 = arith.constant 0 : index
    %c0_15 = arith.constant 0 : index
    %35 = vector.load %arg2[%c0_14, %c0_15] : memref<160x192xf32, #tpu.memory_space<vmem>>, vector<16x192xf32>
    %cst_16 = arith.constant dense<0.000000e+00> : vector<32x192xf32>
    %36 = tpu.matmul %34, %35, %cst_16 {dimension_numbers = #tpu.dot_dimension_numbers<[1], [0], [0], [1], [0, 0, 1, 1], [], []>} : vector<32x16xf32>, vector<16x192xf32>, vector<32x192xf32> -> vector<32x192xf32>
    %37 = arith.addf %36, %2 : vector<32x192xf32>
    %c16_17 = arith.constant 16 : index
    %c0_18 = arith.constant 0 : index
    %38 = vector.load %arg2[%c16_17, %c0_18] : memref<160x192xf32, #tpu.memory_space<vmem>>, vector<64x192xf32>
    %cst_19 = arith.constant dense<0.000000e+00> : vector<32x192xf32>
    %39 = tpu.matmul %33, %38, %cst_19 {dimension_numbers = #tpu.dot_dimension_numbers<[1], [0], [0], [1], [0, 0, 1, 1], [], []>} : vector<32x64xf32>, vector<64x192xf32>, vector<32x192xf32> -> vector<32x192xf32>
    %40 = vector.extract_strided_slice %37 {offsets = [0, 0], sizes = [32, 128], strides = [1, 1]} : vector<32x192xf32> to vector<32x128xf32>
    %41 = vector.extract_strided_slice %39 {offsets = [0, 0], sizes = [32, 128], strides = [1, 1]} : vector<32x192xf32> to vector<32x128xf32>
    %42 = arith.addf %40, %41 : vector<32x128xf32>
    %43 = arith.negf %42 : vector<32x128xf32>
    %44 = math.exp %43 : vector<32x128xf32>
    %cst_20 = arith.constant 1.000000e+00 : f32
    %45 = vector.broadcast %cst_20 : f32 to vector<32x128xf32>
    %46 = arith.addf %45, %44 : vector<32x128xf32>
    %47 = arith.divf %45, %46 : vector<32x128xf32>
    %48 = vector.extract_strided_slice %47 {offsets = [0, 0], sizes = [32, 64], strides = [1, 1]} : vector<32x128xf32> to vector<32x64xf32>
    %49 = vector.extract_strided_slice %47 {offsets = [0, 64], sizes = [32, 64], strides = [1, 1]} : vector<32x128xf32> to vector<32x64xf32>
    %50 = vector.extract_strided_slice %37 {offsets = [0, 128], sizes = [32, 64], strides = [1, 1]} : vector<32x192xf32> to vector<32x64xf32>
    %51 = vector.extract_strided_slice %39 {offsets = [0, 128], sizes = [32, 64], strides = [1, 1]} : vector<32x192xf32> to vector<32x64xf32>
    %52 = arith.addf %51, %5 : vector<32x64xf32>
    %53 = arith.mulf %48, %52 : vector<32x64xf32>
    %54 = arith.addf %50, %53 : vector<32x64xf32>
    %55 = math.tanh %54 : vector<32x64xf32>
    %cst_21 = arith.constant 1.000000e+00 : f32
    %56 = vector.broadcast %cst_21 : f32 to vector<32x64xf32>
    %57 = arith.subf %56, %49 : vector<32x64xf32>
    %58 = arith.mulf %57, %55 : vector<32x64xf32>
    %59 = arith.mulf %49, %33 : vector<32x64xf32>
    %60 = arith.addf %58, %59 : vector<32x64xf32>
    %c0_22 = arith.constant 0 : index
    %c32 = arith.constant 32 : index
    %61 = vector.load %arg0[%c0_22, %c32] : memref<32x128xf32, #tpu.memory_space<vmem>>, vector<32x16xf32>
    %c0_23 = arith.constant 0 : index
    %c0_24 = arith.constant 0 : index
    %62 = vector.load %arg2[%c0_23, %c0_24] : memref<160x192xf32, #tpu.memory_space<vmem>>, vector<16x192xf32>
    %cst_25 = arith.constant dense<0.000000e+00> : vector<32x192xf32>
    %63 = tpu.matmul %61, %62, %cst_25 {dimension_numbers = #tpu.dot_dimension_numbers<[1], [0], [0], [1], [0, 0, 1, 1], [], []>} : vector<32x16xf32>, vector<16x192xf32>, vector<32x192xf32> -> vector<32x192xf32>
    %64 = arith.addf %63, %2 : vector<32x192xf32>
    %c16_26 = arith.constant 16 : index
    %c0_27 = arith.constant 0 : index
    %65 = vector.load %arg2[%c16_26, %c0_27] : memref<160x192xf32, #tpu.memory_space<vmem>>, vector<64x192xf32>
    %cst_28 = arith.constant dense<0.000000e+00> : vector<32x192xf32>
    %66 = tpu.matmul %60, %65, %cst_28 {dimension_numbers = #tpu.dot_dimension_numbers<[1], [0], [0], [1], [0, 0, 1, 1], [], []>} : vector<32x64xf32>, vector<64x192xf32>, vector<32x192xf32> -> vector<32x192xf32>
    %67 = vector.extract_strided_slice %64 {offsets = [0, 0], sizes = [32, 128], strides = [1, 1]} : vector<32x192xf32> to vector<32x128xf32>
    %68 = vector.extract_strided_slice %66 {offsets = [0, 0], sizes = [32, 128], strides = [1, 1]} : vector<32x192xf32> to vector<32x128xf32>
    %69 = arith.addf %67, %68 : vector<32x128xf32>
    %70 = arith.negf %69 : vector<32x128xf32>
    %71 = math.exp %70 : vector<32x128xf32>
    %cst_29 = arith.constant 1.000000e+00 : f32
    %72 = vector.broadcast %cst_29 : f32 to vector<32x128xf32>
    %73 = arith.addf %72, %71 : vector<32x128xf32>
    %74 = arith.divf %72, %73 : vector<32x128xf32>
    %75 = vector.extract_strided_slice %74 {offsets = [0, 0], sizes = [32, 64], strides = [1, 1]} : vector<32x128xf32> to vector<32x64xf32>
    %76 = vector.extract_strided_slice %74 {offsets = [0, 64], sizes = [32, 64], strides = [1, 1]} : vector<32x128xf32> to vector<32x64xf32>
    %77 = vector.extract_strided_slice %64 {offsets = [0, 128], sizes = [32, 64], strides = [1, 1]} : vector<32x192xf32> to vector<32x64xf32>
    %78 = vector.extract_strided_slice %66 {offsets = [0, 128], sizes = [32, 64], strides = [1, 1]} : vector<32x192xf32> to vector<32x64xf32>
    %79 = arith.addf %78, %5 : vector<32x64xf32>
    %80 = arith.mulf %75, %79 : vector<32x64xf32>
    %81 = arith.addf %77, %80 : vector<32x64xf32>
    %82 = math.tanh %81 : vector<32x64xf32>
    %cst_30 = arith.constant 1.000000e+00 : f32
    %83 = vector.broadcast %cst_30 : f32 to vector<32x64xf32>
    %84 = arith.subf %83, %76 : vector<32x64xf32>
    %85 = arith.mulf %84, %82 : vector<32x64xf32>
    %86 = arith.mulf %76, %60 : vector<32x64xf32>
    %87 = arith.addf %85, %86 : vector<32x64xf32>
    %c0_31 = arith.constant 0 : index
    %c48 = arith.constant 48 : index
    %88 = vector.load %arg0[%c0_31, %c48] : memref<32x128xf32, #tpu.memory_space<vmem>>, vector<32x16xf32>
    %c0_32 = arith.constant 0 : index
    %c0_33 = arith.constant 0 : index
    %89 = vector.load %arg2[%c0_32, %c0_33] : memref<160x192xf32, #tpu.memory_space<vmem>>, vector<16x192xf32>
    %cst_34 = arith.constant dense<0.000000e+00> : vector<32x192xf32>
    %90 = tpu.matmul %88, %89, %cst_34 {dimension_numbers = #tpu.dot_dimension_numbers<[1], [0], [0], [1], [0, 0, 1, 1], [], []>} : vector<32x16xf32>, vector<16x192xf32>, vector<32x192xf32> -> vector<32x192xf32>
    %91 = arith.addf %90, %2 : vector<32x192xf32>
    %c16_35 = arith.constant 16 : index
    %c0_36 = arith.constant 0 : index
    %92 = vector.load %arg2[%c16_35, %c0_36] : memref<160x192xf32, #tpu.memory_space<vmem>>, vector<64x192xf32>
    %cst_37 = arith.constant dense<0.000000e+00> : vector<32x192xf32>
    %93 = tpu.matmul %87, %92, %cst_37 {dimension_numbers = #tpu.dot_dimension_numbers<[1], [0], [0], [1], [0, 0, 1, 1], [], []>} : vector<32x64xf32>, vector<64x192xf32>, vector<32x192xf32> -> vector<32x192xf32>
    %94 = vector.extract_strided_slice %91 {offsets = [0, 0], sizes = [32, 128], strides = [1, 1]} : vector<32x192xf32> to vector<32x128xf32>
    %95 = vector.extract_strided_slice %93 {offsets = [0, 0], sizes = [32, 128], strides = [1, 1]} : vector<32x192xf32> to vector<32x128xf32>
    %96 = arith.addf %94, %95 : vector<32x128xf32>
    %97 = arith.negf %96 : vector<32x128xf32>
    %98 = math.exp %97 : vector<32x128xf32>
    %cst_38 = arith.constant 1.000000e+00 : f32
    %99 = vector.broadcast %cst_38 : f32 to vector<32x128xf32>
    %100 = arith.addf %99, %98 : vector<32x128xf32>
    %101 = arith.divf %99, %100 : vector<32x128xf32>
    %102 = vector.extract_strided_slice %101 {offsets = [0, 0], sizes = [32, 64], strides = [1, 1]} : vector<32x128xf32> to vector<32x64xf32>
    %103 = vector.extract_strided_slice %101 {offsets = [0, 64], sizes = [32, 64], strides = [1, 1]} : vector<32x128xf32> to vector<32x64xf32>
    %104 = vector.extract_strided_slice %91 {offsets = [0, 128], sizes = [32, 64], strides = [1, 1]} : vector<32x192xf32> to vector<32x64xf32>
    %105 = vector.extract_strided_slice %93 {offsets = [0, 128], sizes = [32, 64], strides = [1, 1]} : vector<32x192xf32> to vector<32x64xf32>
    %106 = arith.addf %105, %5 : vector<32x64xf32>
    %107 = arith.mulf %102, %106 : vector<32x64xf32>
    %108 = arith.addf %104, %107 : vector<32x64xf32>
    %109 = math.tanh %108 : vector<32x64xf32>
    %cst_39 = arith.constant 1.000000e+00 : f32
    %110 = vector.broadcast %cst_39 : f32 to vector<32x64xf32>
    %111 = arith.subf %110, %103 : vector<32x64xf32>
    %112 = arith.mulf %111, %109 : vector<32x64xf32>
    %113 = arith.mulf %103, %87 : vector<32x64xf32>
    %114 = arith.addf %112, %113 : vector<32x64xf32>
    %c0_40 = arith.constant 0 : index
    %c64 = arith.constant 64 : index
    %115 = vector.load %arg0[%c0_40, %c64] : memref<32x128xf32, #tpu.memory_space<vmem>>, vector<32x16xf32>
    %c0_41 = arith.constant 0 : index
    %c0_42 = arith.constant 0 : index
    %116 = vector.load %arg2[%c0_41, %c0_42] : memref<160x192xf32, #tpu.memory_space<vmem>>, vector<16x192xf32>
    %cst_43 = arith.constant dense<0.000000e+00> : vector<32x192xf32>
    %117 = tpu.matmul %115, %116, %cst_43 {dimension_numbers = #tpu.dot_dimension_numbers<[1], [0], [0], [1], [0, 0, 1, 1], [], []>} : vector<32x16xf32>, vector<16x192xf32>, vector<32x192xf32> -> vector<32x192xf32>
    %118 = arith.addf %117, %2 : vector<32x192xf32>
    %c16_44 = arith.constant 16 : index
    %c0_45 = arith.constant 0 : index
    %119 = vector.load %arg2[%c16_44, %c0_45] : memref<160x192xf32, #tpu.memory_space<vmem>>, vector<64x192xf32>
    %cst_46 = arith.constant dense<0.000000e+00> : vector<32x192xf32>
    %120 = tpu.matmul %114, %119, %cst_46 {dimension_numbers = #tpu.dot_dimension_numbers<[1], [0], [0], [1], [0, 0, 1, 1], [], []>} : vector<32x64xf32>, vector<64x192xf32>, vector<32x192xf32> -> vector<32x192xf32>
    %121 = vector.extract_strided_slice %118 {offsets = [0, 0], sizes = [32, 128], strides = [1, 1]} : vector<32x192xf32> to vector<32x128xf32>
    %122 = vector.extract_strided_slice %120 {offsets = [0, 0], sizes = [32, 128], strides = [1, 1]} : vector<32x192xf32> to vector<32x128xf32>
    %123 = arith.addf %121, %122 : vector<32x128xf32>
    %124 = arith.negf %123 : vector<32x128xf32>
    %125 = math.exp %124 : vector<32x128xf32>
    %cst_47 = arith.constant 1.000000e+00 : f32
    %126 = vector.broadcast %cst_47 : f32 to vector<32x128xf32>
    %127 = arith.addf %126, %125 : vector<32x128xf32>
    %128 = arith.divf %126, %127 : vector<32x128xf32>
    %129 = vector.extract_strided_slice %128 {offsets = [0, 0], sizes = [32, 64], strides = [1, 1]} : vector<32x128xf32> to vector<32x64xf32>
    %130 = vector.extract_strided_slice %128 {offsets = [0, 64], sizes = [32, 64], strides = [1, 1]} : vector<32x128xf32> to vector<32x64xf32>
    %131 = vector.extract_strided_slice %118 {offsets = [0, 128], sizes = [32, 64], strides = [1, 1]} : vector<32x192xf32> to vector<32x64xf32>
    %132 = vector.extract_strided_slice %120 {offsets = [0, 128], sizes = [32, 64], strides = [1, 1]} : vector<32x192xf32> to vector<32x64xf32>
    %133 = arith.addf %132, %5 : vector<32x64xf32>
    %134 = arith.mulf %129, %133 : vector<32x64xf32>
    %135 = arith.addf %131, %134 : vector<32x64xf32>
    %136 = math.tanh %135 : vector<32x64xf32>
    %cst_48 = arith.constant 1.000000e+00 : f32
    %137 = vector.broadcast %cst_48 : f32 to vector<32x64xf32>
    %138 = arith.subf %137, %130 : vector<32x64xf32>
    %139 = arith.mulf %138, %136 : vector<32x64xf32>
    %140 = arith.mulf %130, %114 : vector<32x64xf32>
    %141 = arith.addf %139, %140 : vector<32x64xf32>
    %c0_49 = arith.constant 0 : index
    %c80 = arith.constant 80 : index
    %142 = vector.load %arg0[%c0_49, %c80] : memref<32x128xf32, #tpu.memory_space<vmem>>, vector<32x16xf32>
    %c0_50 = arith.constant 0 : index
    %c0_51 = arith.constant 0 : index
    %143 = vector.load %arg2[%c0_50, %c0_51] : memref<160x192xf32, #tpu.memory_space<vmem>>, vector<16x192xf32>
    %cst_52 = arith.constant dense<0.000000e+00> : vector<32x192xf32>
    %144 = tpu.matmul %142, %143, %cst_52 {dimension_numbers = #tpu.dot_dimension_numbers<[1], [0], [0], [1], [0, 0, 1, 1], [], []>} : vector<32x16xf32>, vector<16x192xf32>, vector<32x192xf32> -> vector<32x192xf32>
    %145 = arith.addf %144, %2 : vector<32x192xf32>
    %c16_53 = arith.constant 16 : index
    %c0_54 = arith.constant 0 : index
    %146 = vector.load %arg2[%c16_53, %c0_54] : memref<160x192xf32, #tpu.memory_space<vmem>>, vector<64x192xf32>
    %cst_55 = arith.constant dense<0.000000e+00> : vector<32x192xf32>
    %147 = tpu.matmul %141, %146, %cst_55 {dimension_numbers = #tpu.dot_dimension_numbers<[1], [0], [0], [1], [0, 0, 1, 1], [], []>} : vector<32x64xf32>, vector<64x192xf32>, vector<32x192xf32> -> vector<32x192xf32>
    %148 = vector.extract_strided_slice %145 {offsets = [0, 0], sizes = [32, 128], strides = [1, 1]} : vector<32x192xf32> to vector<32x128xf32>
    %149 = vector.extract_strided_slice %147 {offsets = [0, 0], sizes = [32, 128], strides = [1, 1]} : vector<32x192xf32> to vector<32x128xf32>
    %150 = arith.addf %148, %149 : vector<32x128xf32>
    %151 = arith.negf %150 : vector<32x128xf32>
    %152 = math.exp %151 : vector<32x128xf32>
    %cst_56 = arith.constant 1.000000e+00 : f32
    %153 = vector.broadcast %cst_56 : f32 to vector<32x128xf32>
    %154 = arith.addf %153, %152 : vector<32x128xf32>
    %155 = arith.divf %153, %154 : vector<32x128xf32>
    %156 = vector.extract_strided_slice %155 {offsets = [0, 0], sizes = [32, 64], strides = [1, 1]} : vector<32x128xf32> to vector<32x64xf32>
    %157 = vector.extract_strided_slice %155 {offsets = [0, 64], sizes = [32, 64], strides = [1, 1]} : vector<32x128xf32> to vector<32x64xf32>
    %158 = vector.extract_strided_slice %145 {offsets = [0, 128], sizes = [32, 64], strides = [1, 1]} : vector<32x192xf32> to vector<32x64xf32>
    %159 = vector.extract_strided_slice %147 {offsets = [0, 128], sizes = [32, 64], strides = [1, 1]} : vector<32x192xf32> to vector<32x64xf32>
    %160 = arith.addf %159, %5 : vector<32x64xf32>
    %161 = arith.mulf %156, %160 : vector<32x64xf32>
    %162 = arith.addf %158, %161 : vector<32x64xf32>
    %163 = math.tanh %162 : vector<32x64xf32>
    %cst_57 = arith.constant 1.000000e+00 : f32
    %164 = vector.broadcast %cst_57 : f32 to vector<32x64xf32>
    %165 = arith.subf %164, %157 : vector<32x64xf32>
    %166 = arith.mulf %165, %163 : vector<32x64xf32>
    %167 = arith.mulf %157, %141 : vector<32x64xf32>
    %168 = arith.addf %166, %167 : vector<32x64xf32>
    %c0_58 = arith.constant 0 : index
    %c96 = arith.constant 96 : index
    %169 = vector.load %arg0[%c0_58, %c96] : memref<32x128xf32, #tpu.memory_space<vmem>>, vector<32x16xf32>
    %c0_59 = arith.constant 0 : index
    %c0_60 = arith.constant 0 : index
    %170 = vector.load %arg2[%c0_59, %c0_60] : memref<160x192xf32, #tpu.memory_space<vmem>>, vector<16x192xf32>
    %cst_61 = arith.constant dense<0.000000e+00> : vector<32x192xf32>
    %171 = tpu.matmul %169, %170, %cst_61 {dimension_numbers = #tpu.dot_dimension_numbers<[1], [0], [0], [1], [0, 0, 1, 1], [], []>} : vector<32x16xf32>, vector<16x192xf32>, vector<32x192xf32> -> vector<32x192xf32>
    %172 = arith.addf %171, %2 : vector<32x192xf32>
    %c16_62 = arith.constant 16 : index
    %c0_63 = arith.constant 0 : index
    %173 = vector.load %arg2[%c16_62, %c0_63] : memref<160x192xf32, #tpu.memory_space<vmem>>, vector<64x192xf32>
    %cst_64 = arith.constant dense<0.000000e+00> : vector<32x192xf32>
    %174 = tpu.matmul %168, %173, %cst_64 {dimension_numbers = #tpu.dot_dimension_numbers<[1], [0], [0], [1], [0, 0, 1, 1], [], []>} : vector<32x64xf32>, vector<64x192xf32>, vector<32x192xf32> -> vector<32x192xf32>
    %175 = vector.extract_strided_slice %172 {offsets = [0, 0], sizes = [32, 128], strides = [1, 1]} : vector<32x192xf32> to vector<32x128xf32>
    %176 = vector.extract_strided_slice %174 {offsets = [0, 0], sizes = [32, 128], strides = [1, 1]} : vector<32x192xf32> to vector<32x128xf32>
    %177 = arith.addf %175, %176 : vector<32x128xf32>
    %178 = arith.negf %177 : vector<32x128xf32>
    %179 = math.exp %178 : vector<32x128xf32>
    %cst_65 = arith.constant 1.000000e+00 : f32
    %180 = vector.broadcast %cst_65 : f32 to vector<32x128xf32>
    %181 = arith.addf %180, %179 : vector<32x128xf32>
    %182 = arith.divf %180, %181 : vector<32x128xf32>
    %183 = vector.extract_strided_slice %182 {offsets = [0, 0], sizes = [32, 64], strides = [1, 1]} : vector<32x128xf32> to vector<32x64xf32>
    %184 = vector.extract_strided_slice %182 {offsets = [0, 64], sizes = [32, 64], strides = [1, 1]} : vector<32x128xf32> to vector<32x64xf32>
    %185 = vector.extract_strided_slice %172 {offsets = [0, 128], sizes = [32, 64], strides = [1, 1]} : vector<32x192xf32> to vector<32x64xf32>
    %186 = vector.extract_strided_slice %174 {offsets = [0, 128], sizes = [32, 64], strides = [1, 1]} : vector<32x192xf32> to vector<32x64xf32>
    %187 = arith.addf %186, %5 : vector<32x64xf32>
    %188 = arith.mulf %183, %187 : vector<32x64xf32>
    %189 = arith.addf %185, %188 : vector<32x64xf32>
    %190 = math.tanh %189 : vector<32x64xf32>
    %cst_66 = arith.constant 1.000000e+00 : f32
    %191 = vector.broadcast %cst_66 : f32 to vector<32x64xf32>
    %192 = arith.subf %191, %184 : vector<32x64xf32>
    %193 = arith.mulf %192, %190 : vector<32x64xf32>
    %194 = arith.mulf %184, %168 : vector<32x64xf32>
    %195 = arith.addf %193, %194 : vector<32x64xf32>
    %c0_67 = arith.constant 0 : index
    %c112 = arith.constant 112 : index
    %196 = vector.load %arg0[%c0_67, %c112] : memref<32x128xf32, #tpu.memory_space<vmem>>, vector<32x16xf32>
    %c0_68 = arith.constant 0 : index
    %c0_69 = arith.constant 0 : index
    %197 = vector.load %arg2[%c0_68, %c0_69] : memref<160x192xf32, #tpu.memory_space<vmem>>, vector<16x192xf32>
    %cst_70 = arith.constant dense<0.000000e+00> : vector<32x192xf32>
    %198 = tpu.matmul %196, %197, %cst_70 {dimension_numbers = #tpu.dot_dimension_numbers<[1], [0], [0], [1], [0, 0, 1, 1], [], []>} : vector<32x16xf32>, vector<16x192xf32>, vector<32x192xf32> -> vector<32x192xf32>
    %199 = arith.addf %198, %2 : vector<32x192xf32>
    %c16_71 = arith.constant 16 : index
    %c0_72 = arith.constant 0 : index
    %200 = vector.load %arg2[%c16_71, %c0_72] : memref<160x192xf32, #tpu.memory_space<vmem>>, vector<64x192xf32>
    %cst_73 = arith.constant dense<0.000000e+00> : vector<32x192xf32>
    %201 = tpu.matmul %195, %200, %cst_73 {dimension_numbers = #tpu.dot_dimension_numbers<[1], [0], [0], [1], [0, 0, 1, 1], [], []>} : vector<32x64xf32>, vector<64x192xf32>, vector<32x192xf32> -> vector<32x192xf32>
    %202 = vector.extract_strided_slice %199 {offsets = [0, 0], sizes = [32, 128], strides = [1, 1]} : vector<32x192xf32> to vector<32x128xf32>
    %203 = vector.extract_strided_slice %201 {offsets = [0, 0], sizes = [32, 128], strides = [1, 1]} : vector<32x192xf32> to vector<32x128xf32>
    %204 = arith.addf %202, %203 : vector<32x128xf32>
    %205 = arith.negf %204 : vector<32x128xf32>
    %206 = math.exp %205 : vector<32x128xf32>
    %cst_74 = arith.constant 1.000000e+00 : f32
    %207 = vector.broadcast %cst_74 : f32 to vector<32x128xf32>
    %208 = arith.addf %207, %206 : vector<32x128xf32>
    %209 = arith.divf %207, %208 : vector<32x128xf32>
    %210 = vector.extract_strided_slice %209 {offsets = [0, 0], sizes = [32, 64], strides = [1, 1]} : vector<32x128xf32> to vector<32x64xf32>
    %211 = vector.extract_strided_slice %209 {offsets = [0, 64], sizes = [32, 64], strides = [1, 1]} : vector<32x128xf32> to vector<32x64xf32>
    %212 = vector.extract_strided_slice %199 {offsets = [0, 128], sizes = [32, 64], strides = [1, 1]} : vector<32x192xf32> to vector<32x64xf32>
    %213 = vector.extract_strided_slice %201 {offsets = [0, 128], sizes = [32, 64], strides = [1, 1]} : vector<32x192xf32> to vector<32x64xf32>
    %214 = arith.addf %213, %5 : vector<32x64xf32>
    %215 = arith.mulf %210, %214 : vector<32x64xf32>
    %216 = arith.addf %212, %215 : vector<32x64xf32>
    %217 = math.tanh %216 : vector<32x64xf32>
    %cst_75 = arith.constant 1.000000e+00 : f32
    %218 = vector.broadcast %cst_75 : f32 to vector<32x64xf32>
    %219 = arith.subf %218, %211 : vector<32x64xf32>
    %220 = arith.mulf %219, %217 : vector<32x64xf32>
    %221 = arith.mulf %211, %195 : vector<32x64xf32>
    %222 = arith.addf %220, %221 : vector<32x64xf32>
    %c2 = arith.constant 2 : index
    %c0_76 = arith.constant 0 : index
    %223 = vector.load %arg3[%c2, %c0_76] : memref<4x192xf32, #tpu.memory_space<vmem>>, vector<1x192xf32>
    %224 = vector.shape_cast %223 : vector<1x192xf32> to vector<1x192xf32>
    %225 = vector.broadcast %224 : vector<1x192xf32> to vector<32x192xf32>
    %c3 = arith.constant 3 : index
    %c0_77 = arith.constant 0 : index
    %226 = vector.load %arg3[%c3, %c0_77] : memref<4x192xf32, #tpu.memory_space<vmem>>, vector<1x64xf32>
    %227 = vector.shape_cast %226 : vector<1x64xf32> to vector<1x64xf32>
    %228 = vector.broadcast %227 : vector<1x64xf32> to vector<32x64xf32>
    %c0_78 = arith.constant 0 : index
    %c112_79 = arith.constant 112 : index
    %229 = vector.load %arg0[%c0_78, %c112_79] : memref<32x128xf32, #tpu.memory_space<vmem>>, vector<32x16xf32>
    %c32_80 = arith.constant 32 : index
    %c0_81 = arith.constant 0 : index
    %230 = vector.load %arg1[%c32_80, %c0_81] : memref<64x64xf32, #tpu.memory_space<vmem>>, vector<32x64xf32>
    %c80_82 = arith.constant 80 : index
    %c0_83 = arith.constant 0 : index
    %231 = vector.load %arg2[%c80_82, %c0_83] : memref<160x192xf32, #tpu.memory_space<vmem>>, vector<16x192xf32>
    %cst_84 = arith.constant dense<0.000000e+00> : vector<32x192xf32>
    %232 = tpu.matmul %229, %231, %cst_84 {dimension_numbers = #tpu.dot_dimension_numbers<[1], [0], [0], [1], [0, 0, 1, 1], [], []>} : vector<32x16xf32>, vector<16x192xf32>, vector<32x192xf32> -> vector<32x192xf32>
    %233 = arith.addf %232, %225 : vector<32x192xf32>
    %c96_85 = arith.constant 96 : index
    %c0_86 = arith.constant 0 : index
    %234 = vector.load %arg2[%c96_85, %c0_86] : memref<160x192xf32, #tpu.memory_space<vmem>>, vector<64x192xf32>
    %cst_87 = arith.constant dense<0.000000e+00> : vector<32x192xf32>
    %235 = tpu.matmul %230, %234, %cst_87 {dimension_numbers = #tpu.dot_dimension_numbers<[1], [0], [0], [1], [0, 0, 1, 1], [], []>} : vector<32x64xf32>, vector<64x192xf32>, vector<32x192xf32> -> vector<32x192xf32>
    %236 = vector.extract_strided_slice %233 {offsets = [0, 0], sizes = [32, 128], strides = [1, 1]} : vector<32x192xf32> to vector<32x128xf32>
    %237 = vector.extract_strided_slice %235 {offsets = [0, 0], sizes = [32, 128], strides = [1, 1]} : vector<32x192xf32> to vector<32x128xf32>
    %238 = arith.addf %236, %237 : vector<32x128xf32>
    %239 = arith.negf %238 : vector<32x128xf32>
    %240 = math.exp %239 : vector<32x128xf32>
    %cst_88 = arith.constant 1.000000e+00 : f32
    %241 = vector.broadcast %cst_88 : f32 to vector<32x128xf32>
    %242 = arith.addf %241, %240 : vector<32x128xf32>
    %243 = arith.divf %241, %242 : vector<32x128xf32>
    %244 = vector.extract_strided_slice %243 {offsets = [0, 0], sizes = [32, 64], strides = [1, 1]} : vector<32x128xf32> to vector<32x64xf32>
    %245 = vector.extract_strided_slice %243 {offsets = [0, 64], sizes = [32, 64], strides = [1, 1]} : vector<32x128xf32> to vector<32x64xf32>
    %246 = vector.extract_strided_slice %233 {offsets = [0, 128], sizes = [32, 64], strides = [1, 1]} : vector<32x192xf32> to vector<32x64xf32>
    %247 = vector.extract_strided_slice %235 {offsets = [0, 128], sizes = [32, 64], strides = [1, 1]} : vector<32x192xf32> to vector<32x64xf32>
    %248 = arith.addf %247, %228 : vector<32x64xf32>
    %249 = arith.mulf %244, %248 : vector<32x64xf32>
    %250 = arith.addf %246, %249 : vector<32x64xf32>
    %251 = math.tanh %250 : vector<32x64xf32>
    %cst_89 = arith.constant 1.000000e+00 : f32
    %252 = vector.broadcast %cst_89 : f32 to vector<32x64xf32>
    %253 = arith.subf %252, %245 : vector<32x64xf32>
    %254 = arith.mulf %253, %251 : vector<32x64xf32>
    %255 = arith.mulf %245, %230 : vector<32x64xf32>
    %256 = arith.addf %254, %255 : vector<32x64xf32>
    %c0_90 = arith.constant 0 : index
    %c0_91 = arith.constant 0 : index
    %257 = vector.load %arg4[%c0_90, %c0_91] : memref<129x4xf32, #tpu.memory_space<vmem>>, vector<64x4xf32>
    %cst_92 = arith.constant dense<0.000000e+00> : vector<32x4xf32>
    %258 = tpu.matmul %222, %257, %cst_92 {dimension_numbers = #tpu.dot_dimension_numbers<[1], [0], [0], [1], [0, 0, 1, 1], [], []>} : vector<32x64xf32>, vector<64x4xf32>, vector<32x4xf32> -> vector<32x4xf32>
    %c64_93 = arith.constant 64 : index
    %c0_94 = arith.constant 0 : index
    %259 = vector.load %arg4[%c64_93, %c0_94] : memref<129x4xf32, #tpu.memory_space<vmem>>, vector<64x4xf32>
    %cst_95 = arith.constant dense<0.000000e+00> : vector<32x4xf32>
    %260 = tpu.matmul %256, %259, %cst_95 {dimension_numbers = #tpu.dot_dimension_numbers<[1], [0], [0], [1], [0, 0, 1, 1], [], []>} : vector<32x64xf32>, vector<64x4xf32>, vector<32x4xf32> -> vector<32x4xf32>
    %261 = arith.addf %258, %260 : vector<32x4xf32>
    %c128 = arith.constant 128 : index
    %c0_96 = arith.constant 0 : index
    %262 = vector.load %arg4[%c128, %c0_96] : memref<129x4xf32, #tpu.memory_space<vmem>>, vector<1x4xf32>
    %263 = vector.broadcast %262 : vector<1x4xf32> to vector<32x4xf32>
    %264 = arith.addf %261, %263 : vector<32x4xf32>
    %c0_97 = arith.constant 0 : index
    %c0_98 = arith.constant 0 : index
    %265 = vector.load %arg5[%c0_97, %c0_98] : memref<32x4xf32, #tpu.memory_space<vmem>>, vector<32x4xf32>
    tpu.vector_store %arg5[%c0_97, %c0_98], %264 {strides = array<i32>} : memref<32x4xf32, #tpu.memory_space<vmem>>, vector<32x4xf32>,
    return
  }
}

</mosaic_0001>

<llo_original>
// kernel: grunet_forward.1
$region0: #{grunet_forward.1}
  #allocation0 [shape = 'u32[]', space=smem, size = 0x4, offset = 0x4, fixed_abs, tag = 'smem constant byte address 0x4 - core index']
  #allocation1 [shape = 'u32[144,128]{1,0:T(1,128)}', space=vmem, size = 0x12000, scoped, tag = 'internal scratch']
  %s0 = inlined_call_operand.vmem [shape: f32[32,128], index: 0, kind: input, shape index: {}]
  %s1 = inlined_call_operand.hbm [shape: f32[64,64], index: 1, kind: input, shape index: {}]
  %s2 = inlined_call_operand.vmem [shape: f32[160,192], index: 2, kind: input, shape index: {}]
  %s3 = inlined_call_operand.hbm [shape: f32[4,192], index: 3, kind: input, shape index: {}]
  %s4 = inlined_call_operand.vmem [shape: f32[129,4], index: 4, kind: input, shape index: {}]
  %s5 = inlined_call_operand.vmem [shape: f32[32,4], index: 5, kind: output, shape index: {}]
  %s6 = sld [smem:[#allocation0]]
  $region38: #{grunet_forward.1} parent=0
    _
  %s8 = ssub.s32 1, %s6
  %s9 = scalar_select 0, %s8, %s6
  $region1: #{grunet_forward.1} parent=0
    #allocation2 [shape = 'u8[32768]{0}', space=vmem, size = 0x8000, scoped, tag = 'input window, operand 1, single buffered']
    #allocation3 [shape = 's32[1]{0}', space=sflag, size = 0x4, scoped, tag = 'scoped memory for grunet_forward.1']
    #allocation4 [shape = 'u8[4096]{0}', space=vmem, size = 0x1000, scoped, tag = 'input window, operand 3, single buffered']
    #allocation5 [shape = 's32[1]{0}', space=sflag, size = 0x4, scoped, tag = 'scoped memory for grunet_forward.1']
    %10 = vsyncpa [#allocation3], 0
    %11 = vsyncpa [#allocation5], 0
    // Predicated region
    $region2: #{grunet_forward.1} parent=1 // pred_check
      _
    $region3: #{grunet_forward.1} parent=1 // pred_check_branch
      %13 = sbr.rel (0) target = $region5
    $region4: #{grunet_forward.1} parent=1 // pred_region
      _
    $region5: #{grunet_forward.1} parent=1 // pred_fallthru
      _
    // Predicated region
    $region6: #{grunet_forward.1} parent=1 // pred_check
      _
    $region7: #{grunet_forward.1} parent=1 // pred_check_branch
      %15 = sbr.rel (0) target = $region9
    $region8: #{grunet_forward.1} parent=1 // pred_region
      %s17 = ssub.s32 1024, 1024
      %18 = vsyncadd [#allocation3], %s17
      %s19 = sshll.u32 [#allocation2], 4
      %s20 = int_to_ptr.vmem [resolvable:$true] %s19
      %25 = dma.hbm_to_vmem [thread:$0]  %s1, 1024, %s20, [#allocation3], 128, 128, 8
    $region9: #{grunet_forward.1} parent=1 // pred_fallthru
      _
    // Predicated region
    $region10: #{grunet_forward.1} parent=1 // pred_check
      _
    $region11: #{grunet_forward.1} parent=1 // pred_check_branch
      %27 = sbr.rel (0) target = $region13
    $region12: #{grunet_forward.1} parent=1 // pred_region
      _
    $region13: #{grunet_forward.1} parent=1 // pred_fallthru
      _
    // Predicated region
    $region14: #{grunet_forward.1} parent=1 // pred_check
      _
    $region15: #{grunet_forward.1} parent=1 // pred_check_branch
      %29 = sbr.rel (0) target = $region17
    $region16: #{grunet_forward.1} parent=1 // pred_region
      %s31 = ssub.s32 128, 128
      %32 = vsyncadd [#allocation5], %s31
      %s34 = sshll.u32 [#allocation4], 4
      %s35 = int_to_ptr.vmem [resolvable:$true] %s34
      %37 = dma.hbm_to_vmem [thread:$0]  %s3, 128, %s35, [#allocation5]
    $region17: #{grunet_forward.1} parent=1 // pred_fallthru
      _
    // Predicated region
    $region18: #{grunet_forward.1} parent=1 // pred_check
      _
    $region19: #{grunet_forward.1} parent=1 // pred_check_branch
      %39 = sbr.rel (0) target = $region21
    $region20: #{grunet_forward.1} parent=1 // pred_region
      _
    $region21: #{grunet_forward.1} parent=1 // pred_fallthru
      _
    // Predicated region
    $region22: #{grunet_forward.1} parent=1 // pred_check
      _
    $region23: #{grunet_forward.1} parent=1 // pred_check_branch
      %41 = sbr.rel (0) target = $region25
    $region24: #{grunet_forward.1} parent=1 // pred_region
      %42 = dma.done [#allocation3], 1024
    $region25: #{grunet_forward.1} parent=1 // pred_fallthru
      _
    // Predicated region
    $region26: #{grunet_forward.1} parent=1 // pred_check
      _
    $region27: #{grunet_forward.1} parent=1 // pred_check_branch
      %44 = sbr.rel (0) target = $region29
    $region28: #{grunet_forward.1} parent=1 // pred_region
      %45 = dma.done [#allocation5], 128
    $region29: #{grunet_forward.1} parent=1 // pred_fallthru
      _
    %v46 = vld [vmem:[#allocation4] ss:$4 sm:$0x3]
    %v48 = vlaneseq
    %v49 = vshrl.u32 %v48, 7
    %v50 = vsub.s32 0, %v49
    %v51 = vrot.slane %v46, %v50
    %v52 = vlaneseq
    %v53 = vshrl.u32 %v52, 7
    %v54 = vsub.s32 1, %v53
    %v55 = vrot.slane %v46, %v54
    %v58 = vld [vmem:[#allocation4 + $0x1] sm:$0x1]
    %v59 = vlaneseq
    %v60 = vshrl.u32 %v59, 7
    %v61 = vsub.s32 0, %v60
    %v62 = vrot.slane %v58, %v61
    %v63 = vld [vmem:[#allocation2] sm:$0xff]
    %v64 = vld [vmem:[#allocation2 + $0x8] sm:$0xff]
    %v65 = vld [vmem:[#allocation2 + $0x10] sm:$0xff]
    %v66 = vld [vmem:[#allocation2 + $0x18] sm:$0xff]
    %v67 = vld [vmem:[%s0] sm:$0xff]
    %v68 = vld [vmem:[%s0 + $0x8] sm:$0xff]
    %v69 = vld [vmem:[%s0 + $0x10] sm:$0xff]
    %v70 = vld [vmem:[%s0 + $0x18] sm:$0xff]
    %v71 = vld [vmem:[%s2] sm:$0xff]
    %v72 = vld [vmem:[%s2 + $0x8] sm:$0xff]
    %v73 = vld [vmem:[%s2 + $0x10] sm:$0xff]
    %v74 = vld [vmem:[%s2 + $0x18] sm:$0xff]
    %vm75 = vcmask 130048
    %v77 = vsel %vm75, %v67, 0
    %v80 = vsel %vm75, %v68, 0
    %v83 = vsel %vm75, %v69, 0
    %v86 = vsel %vm75, %v70, 0
    %88 = vmatprep.subr.mxu0 %v72
    %89 = vmatpush1.msra.mxu0 %v71
    %90 = vmatprep.subr.mxu0 %v74
    %91 = vmatpush1.msra.mxu0 %v73
    %92 = vmatprep.subr.mxu0 0.0
    %93 = vmatpush1.msra.mxu0 0.0
    %94 = vmatprep.subr.mxu0 0.0
    %95 = vmatpush1.msra.mxu0 0.0
    %96 = vmatprep.subr.mxu0 0.0
    %97 = vmatpush1.msra.mxu0 0.0
    %98 = vmatprep.subr.mxu0 0.0
    %99 = vmatpush1.msra.mxu0 0.0
    %100 = vmatprep.subr.mxu0 0.0
    %101 = vmatpush1.msra.mxu0 0.0
    %102 = vmatprep.subr.mxu0 0.0
    %103 = vmatpush1.msra.mxu0 0.0
    %104 = vmatprep.subr.mxu0 0.0
    %105 = vmatpush1.msra.mxu0 0.0
    %106 = vmatprep.subr.mxu0 0.0
    %107 = vmatpush1.msra.mxu0 0.0
    %108 = vmatprep.subr.mxu0 0.0
    %109 = vmatpush1.msra.mxu0 0.0
    %110 = vmatprep.subr.mxu0 0.0
    %111 = vmatpush1.msra.mxu0 0.0
    %112 = vmatprep.subr.mxu0 0.0
    %113 = vmatpush1.msra.mxu0 0.0
    %114 = vmatprep.subr.mxu0 0.0
    %115 = vmatpush1.msra.mxu0 0.0
    %116 = vmatprep.subr.mxu0 0.0
    %117 = vmatpush1.msra.mxu0 0.0
    %118 = vmatprep.subr.mxu0 0.0
    %119 = vmatpush1.msra.mxu0 0.0
    %120 = vmatprep.subr.mxu0 0.0
    %121 = vmatpush1.msra.mxu0 0.0
    %122 = vmatprep.subr.mxu0 0.0
    %123 = vmatpush1.msra.mxu0 0.0
    %124 = vmatprep.subr.mxu0 0.0
    %125 = vmatpush1.msra.mxu0 0.0
    %126 = vmatprep.subr.mxu0 0.0
    %127 = vmatpush1.msra.mxu0 0.0
    %128 = vmatprep.subr.mxu0 0.0
    %129 = vmatpush1.msra.mxu0 0.0
    %130 = vmatprep.subr.mxu0 0.0
    %131 = vmatpush1.msra.mxu0 0.0
    %132 = vmatprep.subr.mxu0 0.0
    %133 = vmatpush1.msra.mxu0 0.0
    %134 = vmatprep.subr.mxu0 0.0
    %135 = vmatpush1.msra.mxu0 0.0
    %136 = vmatprep.subr.mxu0 0.0
    %137 = vmatpush1.msra.mxu0 0.0
    %138 = vmatprep.subr.mxu0 0.0
    %139 = vmatpush1.msra.mxu0 0.0
    %140 = vmatprep.subr.mxu0 0.0
    %141 = vmatpush1.msra.mxu0 0.0
    %142 = vmatprep.subr.mxu0 0.0
    %143 = vmatpush1.msra.mxu0 0.0
    %144 = vmatprep.subr.mxu0 0.0
    %145 = vmatpush1.msra.mxu0 0.0
    %146 = vmatprep.subr.mxu0 0.0
    %147 = vmatpush1.msra.mxu0 0.0
    %148 = vmatprep.subr.mxu0 0.0
    %149 = vmatpush1.msra.mxu0 0.0
    %150 = vmatprep.subr.mxu0 0.0
    %151 = vmatpush1.msra.mxu0 0.0
    %152 = vmatprep.mubr.f32.mxu0 0.0
    %153 = vmatmul.mubr.f32.gmra.mrb[0].mxu0 %v77
    %v154 = vpop.f32.mrb[0].mxu0
    %v155 = vadd.f32 %v51, %v154
    %v156 = vpop.f32.mrb[0].mxu0
    %v157 = vadd.f32 %v55, %v156
    %158 = vmatprep.mubr.f32.mxu0 0.0
    %159 = vmatmul.mubr.f32.gmra.mrb[0].mxu0 %v80
    %v160 = vpop.f32.mrb[0].mxu0
    %v161 = vadd.f32 %v51, %v160
    %v162 = vpop.f32.mrb[0].mxu0
    %v163 = vadd.f32 %v55, %v162
    %164 = vmatprep.mubr.f32.mxu0 0.0
    %165 = vmatmul.mubr.f32.gmra.mrb[0].mxu0 %v83
    %v166 = vpop.f32.mrb[0].mxu0
    %v167 = vadd.f32 %v51, %v166
    %v168 = vpop.f32.mrb[0].mxu0
    %v169 = vadd.f32 %v55, %v168
    %170 = vmatprep.mubr.f32.mxu0 0.0
    %171 = vmatmul.mubr.f32.gmra.mrb[0].mxu0 %v86
    %v172 = vpop.f32.mrb[0].mxu0
    %v173 = vadd.f32 %v51, %v172
    %v174 = vpop.f32.mrb[0].mxu0
    %v175 = vadd.f32 %v55, %v174
    %176 = vdwg.mxu0
    %v177 = vld [vmem:[%s2 + $0x20] sm:$0xff]
    %v178 = vld [vmem:[%s2 + $0x28] sm:$0xff]
    %v179 = vld [vmem:[%s2 + $0x30] sm:$0xff]
    %v180 = vld [vmem:[%s2 + $0x38] sm:$0xff]
    %v181 = vld [vmem:[%s2 + $0x40] sm:$0xff]
    %v182 = vld [vmem:[%s2 + $0x48] sm:$0xff]
    %v183 = vld [vmem:[%s2 + $0x50] sm:$0xff]
    %v184 = vld [vmem:[%s2 + $0x58] sm:$0xff]
    %v185 = vld [vmem:[%s2 + $0x60] sm:$0xff]
    %v186 = vld [vmem:[%s2 + $0x68] sm:$0xff]
    %v187 = vld [vmem:[%s2 + $0x70] sm:$0xff]
    %v188 = vld [vmem:[%s2 + $0x78] sm:$0xff]
    %v189 = vld [vmem:[%s2 + $0x80] sm:$0xff]
    %v190 = vld [vmem:[%s2 + $0x88] sm:$0xff]
    %v191 = vld [vmem:[%s2 + $0x90] sm:$0xff]
    %v192 = vld [vmem:[%s2 + $0x98] sm:$0xff]
    %vm193 = vcmask 523264
    %v195 = vsel %vm193, %v63, 0
    %v198 = vsel %vm193, %v64, 0
    %v201 = vsel %vm193, %v65, 0
    %v204 = vsel %vm193, %v66, 0
    %206 = vmatprep.subr.mxu0 %v178
    %207 = vmatpush1.msra.mxu0 %v177
    %208 = vmatprep.subr.mxu0 %v180
    %209 = vmatpush1.msra.mxu0 %v179
    %210 = vmatprep.subr.mxu0 %v182
    %211 = vmatpush1.msra.mxu0 %v181
    %212 = vmatprep.subr.mxu0 %v184
    %213 = vmatpush1.msra.mxu0 %v183
    %214 = vmatprep.subr.mxu0 %v186
    %215 = vmatpush1.msra.mxu0 %v185
    %216 = vmatprep.subr.mxu0 %v188
    %217 = vmatpush1.msra.mxu0 %v187
    %218 = vmatprep.subr.mxu0 %v190
    %219 = vmatpush1.msra.mxu0 %v189
    %220 = vmatprep.subr.mxu0 %v192
    %221 = vmatpush1.msra.mxu0 %v191
    %222 = vmatprep.subr.mxu0 0.0
    %223 = vmatpush1.msra.mxu0 0.0
    %224 = vmatprep.subr.mxu0 0.0
    %225 = vmatpush1.msra.mxu0 0.0
    %226 = vmatprep.subr.mxu0 0.0
    %227 = vmatpush1.msra.mxu0 0.0
    %228 = vmatprep.subr.mxu0 0.0
    %229 = vmatpush1.msra.mxu0 0.0
    %230 = vmatprep.subr.mxu0 0.0
    %231 = vmatpush1.msra.mxu0 0.0
    %232 = vmatprep.subr.mxu0 0.0
    %233 = vmatpush1.msra.mxu0 0.0
    %234 = vmatprep.subr.mxu0 0.0
    %235 = vmatpush1.msra.mxu0 0.0
    %236 = vmatprep.subr.mxu0 0.0
    %237 = vmatpush1.msra.mxu0 0.0
    %238 = vmatprep.subr.mxu0 0.0
    %239 = vmatpush1.msra.mxu0 0.0
    %240 = vmatprep.subr.mxu0 0.0
    %241 = vmatpush1.msra.mxu0 0.0
    %242 = vmatprep.subr.mxu0 0.0
    %243 = vmatpush1.msra.mxu0 0.0
    %244 = vmatprep.subr.mxu0 0.0
    %245 = vmatpush1.msra.mxu0 0.0
    %246 = vmatprep.subr.mxu0 0.0
    %247 = vmatpush1.msra.mxu0 0.0
    %248 = vmatprep.subr.mxu0 0.0
    %249 = vmatpush1.msra.mxu0 0.0
    %250 = vmatprep.subr.mxu0 0.0
    %251 = vmatpush1.msra.mxu0 0.0
    %252 = vmatprep.subr.mxu0 0.0
    %253 = vmatpush1.msra.mxu0 0.0
    %254 = vmatprep.subr.mxu0 0.0
    %255 = vmatpush1.msra.mxu0 0.0
    %256 = vmatprep.subr.mxu0 0.0
    %257 = vmatpush1.msra.mxu0 0.0
    %258 = vmatprep.subr.mxu0 0.0
    %259 = vmatpush1.msra.mxu0 0.0
    %260 = vmatprep.subr.mxu0 0.0
    %261 = vmatpush1.msra.mxu0 0.0
    %262 = vmatprep.subr.mxu0 0.0
    %263 = vmatpush1.msra.mxu0 0.0
    %264 = vmatprep.subr.mxu0 0.0
    %265 = vmatpush1.msra.mxu0 0.0
    %266 = vmatprep.subr.mxu0 0.0
    %267 = vmatpush1.msra.mxu0 0.0
    %268 = vmatprep.subr.mxu0 0.0
    %269 = vmatpush1.msra.mxu0 0.0
    %270 = vmatprep.mubr.f32.mxu0 0.0
    %271 = vmatmul.mubr.f32.gmra.mrb[0].mxu0 %v195
    %v272 = vpop.f32.mrb[0].mxu0
    %v273 = vadd.f32 0.0, %v272
    %v274 = vpop.f32.mrb[0].mxu0
    %v275 = vadd.f32 0.0, %v274
    %276 = vmatprep.mubr.f32.mxu0 0.0
    %277 = vmatmul.mubr.f32.gmra.mrb[0].mxu0 %v198
    %v278 = vpop.f32.mrb[0].mxu0
    %v279 = vadd.f32 0.0, %v278
    %v280 = vpop.f32.mrb[0].mxu0
    %v281 = vadd.f32 0.0, %v280
    %282 = vmatprep.mubr.f32.mxu0 0.0
    %283 = vmatmul.mubr.f32.gmra.mrb[0].mxu0 %v201
    %v284 = vpop.f32.mrb[0].mxu0
    %v285 = vadd.f32 0.0, %v284
    %v286 = vpop.f32.mrb[0].mxu0
    %v287 = vadd.f32 0.0, %v286
    %288 = vmatprep.mubr.f32.mxu0 0.0
    %289 = vmatmul.mubr.f32.gmra.mrb[0].mxu0 %v204
    %v290 = vpop.f32.mrb[0].mxu0
    %v291 = vadd.f32 0.0, %v290
    %v292 = vpop.f32.mrb[0].mxu0
    %v293 = vadd.f32 0.0, %v292
    %294 = vdwg.mxu0
    %v295 = vadd.f32 %v155, %v273
    %v296 = vadd.f32 %v161, %v279
    %v297 = vadd.f32 %v167, %v285
    %v298 = vadd.f32 %v173, %v291
    %v299 = vxor.u32 %v295, 2147483648
    %v300 = vxor.u32 %v296, 2147483648
    %v301 = vxor.u32 %v297, 2147483648
    %v302 = vxor.u32 %v298, 2147483648
    %v303 = vmul.f32 %v299, 1.442695
    %v304 = vpow.pop %v303
    %v305 = vmul.f32 %v300, 1.442695
    %v306 = vpow.pop %v305
    %v307 = vmul.f32 %v301, 1.442695
    %v308 = vpow.pop %v307
    %v309 = vmul.f32 %v302, 1.442695
    %v310 = vpow.pop %v309
    %v311 = vadd.f32 %v304, 1.0
    %v312 = vadd.f32 %v306, 1.0
    %v313 = vadd.f32 %v308, 1.0
    %v314 = vadd.f32 %v310, 1.0
    %v315 = vrcp.pop %v311
    %v316 = vmul.f32 1.0, %v315
    %v317 = vrcp.pop %v312
    %v318 = vmul.f32 1.0, %v317
    %v319 = vrcp.pop %v313
    %v320 = vmul.f32 1.0, %v319
    %v321 = vrcp.pop %v314
    %v322 = vmul.f32 1.0, %v321
    %v323 = vadd.f32 %v275, %v62
    %v324 = vadd.f32 %v281, %v62
    %v325 = vadd.f32 %v287, %v62
    %v326 = vadd.f32 %v293, %v62
    %v327 = vmul.f32 %v316, %v323
    %v328 = vmul.f32 %v318, %v324
    %v329 = vmul.f32 %v320, %v325
    %v330 = vmul.f32 %v322, %v326
    %v331 = vadd.f32 %v157, %v327
    %v332 = vadd.f32 %v163, %v328
    %v333 = vadd.f32 %v169, %v329
    %v334 = vadd.f32 %v175, %v330
    %v335 = vtanh.pop %v331
    %v336 = vtanh.pop %v332
    %v337 = vtanh.pop %v333
    %v338 = vtanh.pop %v334
    %v339 = vsub.f32 1.0, %v316
    %v340 = vsub.f32 1.0, %v318
    %v341 = vsub.f32 1.0, %v320
    %v342 = vsub.f32 1.0, %v322
    %347 = vrot.lane.b32.xlu0 %v335, 64
    %v348 = vpop.permute.xlu0 %347
    %349 = vrot.lane.b32.xlu0 %v336, 64
    %v350 = vpop.permute.xlu0 %349
    %351 = vrot.lane.b32.xlu0 %v337, 64
    %v352 = vpop.permute.xlu0 %351
    %353 = vrot.lane.b32.xlu0 %v338, 64
    %v354 = vpop.permute.xlu0 %353
    %v359 = vmul.f32 %v339, %v348
    %v360 = vmul.f32 %v340, %v350
    %v361 = vmul.f32 %v341, %v352
    %v362 = vmul.f32 %v342, %v354
    %363 = vrot.lane.b32.xlu0 %v63, 64
    %v364 = vpop.permute.xlu0 %363
    %365 = vrot.lane.b32.xlu0 %v64, 64
    %v366 = vpop.permute.xlu0 %365
    %367 = vrot.lane.b32.xlu0 %v65, 64
    %v368 = vpop.permute.xlu0 %367
    %369 = vrot.lane.b32.xlu0 %v66, 64
    %v370 = vpop.permute.xlu0 %369
    %v375 = vmul.f32 %v316, %v364
    %v376 = vmul.f32 %v318, %v366
    %v377 = vmul.f32 %v320, %v368
    %v378 = vmul.f32 %v322, %v370
    %v379 = vadd.f32 %v359, %v375
    %v380 = vadd.f32 %v360, %v376
    %v381 = vadd.f32 %v361, %v377
    %v382 = vadd.f32 %v362, %v378
    %383 = vrot.lane.b32.xlu0 %v67, 112
    %v384 = vpop.permute.xlu0 %383
    %385 = vrot.lane.b32.xlu0 %v68, 112
    %v386 = vpop.permute.xlu0 %385
    %387 = vrot.lane.b32.xlu0 %v69, 112
    %v388 = vpop.permute.xlu0 %387
    %389 = vrot.lane.b32.xlu0 %v70, 112
    %v390 = vpop.permute.xlu0 %389
    %v391 = vsel %vm75, %v384, 0
    %v393 = vsel %vm75, %v386, 0
    %v395 = vsel %vm75, %v388, 0
    %v397 = vsel %vm75, %v390, 0
    %399 = vmatprep.subr.mxu0 %v72
    %400 = vmatpush1.msra.mxu0 %v71
    %401 = vmatprep.subr.mxu0 %v74
    %402 = vmatpush1.msra.mxu0 %v73
    %403 = vmatprep.subr.mxu0 0.0
    %404 = vmatpush1.msra.mxu0 0.0
    %405 = vmatprep.subr.mxu0 0.0
    %406 = vmatpush1.msra.mxu0 0.0
    %407 = vmatprep.subr.mxu0 0.0
    %408 = vmatpush1.msra.mxu0 0.0
    %409 = vmatprep.subr.mxu0 0.0
    %410 = vmatpush1.msra.mxu0 0.0
    %411 = vmatprep.subr.mxu0 0.0
    %412 = vmatpush1.msra.mxu0 0.0
    %413 = vmatprep.subr.mxu0 0.0
    %414 = vmatpush1.msra.mxu0 0.0
    %415 = vmatprep.subr.mxu0 0.0
    %416 = vmatpush1.msra.mxu0 0.0
    %417 = vmatprep.subr.mxu0 0.0
    %418 = vmatpush1.msra.mxu0 0.0
    %419 = vmatprep.subr.mxu0 0.0
    %420 = vmatpush1.msra.mxu0 0.0
    %421 = vmatprep.subr.mxu0 0.0
    %422 = vmatpush1.msra.mxu0 0.0
    %423 = vmatprep.subr.mxu0 0.0
    %424 = vmatpush1.msra.mxu0 0.0
    %425 = vmatprep.subr.mxu0 0.0
    %426 = vmatpush1.msra.mxu0 0.0
    %427 = vmatprep.subr.mxu0 0.0
    %428 = vmatpush1.msra.mxu0 0.0
    %429 = vmatprep.subr.mxu0 0.0
    %430 = vmatpush1.msra.mxu0 0.0
    %431 = vmatprep.subr.mxu0 0.0
    %432 = vmatpush1.msra.mxu0 0.0
    %433 = vmatprep.subr.mxu0 0.0
    %434 = vmatpush1.msra.mxu0 0.0
    %435 = vmatprep.subr.mxu0 0.0
    %436 = vmatpush1.msra.mxu0 0.0
    %437 = vmatprep.subr.mxu0 0.0
    %438 = vmatpush1.msra.mxu0 0.0
    %439 = vmatprep.subr.mxu0 0.0
    %440 = vmatpush1.msra.mxu0 0.0
    %441 = vmatprep.subr.mxu0 0.0
    %442 = vmatpush1.msra.mxu0 0.0
    %443 = vmatprep.subr.mxu0 0.0
    %444 = vmatpush1.msra.mxu0 0.0
    %445 = vmatprep.subr.mxu0 0.0
    %446 = vmatpush1.msra.mxu0 0.0
    %447 = vmatprep.subr.mxu0 0.0
    %448 = vmatpush1.msra.mxu0 0.0
    %449 = vmatprep.subr.mxu0 0.0
    %450 = vmatpush1.msra.mxu0 0.0
    %451 = vmatprep.subr.mxu0 0.0
    %452 = vmatpush1.msra.mxu0 0.0
    %453 = vmatprep.subr.mxu0 0.0
    %454 = vmatpush1.msra.mxu0 0.0
    %455 = vmatprep.subr.mxu0 0.0
    %456 = vmatpush1.msra.mxu0 0.0
    %457 = vmatprep.subr.mxu0 0.0
    %458 = vmatpush1.msra.mxu0 0.0
    %459 = vmatprep.subr.mxu0 0.0
    %460 = vmatpush1.msra.mxu0 0.0
    %461 = vmatprep.subr.mxu0 0.0
    %462 = vmatpush1.msra.mxu0 0.0
    %463 = vmatprep.mubr.f32.mxu0 0.0
    %464 = vmatmul.mubr.f32.gmra.mrb[0].mxu0 %v391
    %v465 = vpop.f32.mrb[0].mxu0
    %v466 = vadd.f32 %v51, %v465
    %v467 = vpop.f32.mrb[0].mxu0
    %v468 = vadd.f32 %v55, %v467
    %469 = vmatprep.mubr.f32.mxu0 0.0
    %470 = vmatmul.mubr.f32.gmra.mrb[0].mxu0 %v393
    %v471 = vpop.f32.mrb[0].mxu0
    %v472 = vadd.f32 %v51, %v471
    %v473 = vpop.f32.mrb[0].mxu0
    %v474 = vadd.f32 %v55, %v473
    %475 = vmatprep.mubr.f32.mxu0 0.0
    %476 = vmatmul.mubr.f32.gmra.mrb[0].mxu0 %v395
    %v477 = vpop.f32.mrb[0].mxu0
    %v478 = vadd.f32 %v51, %v477
    %v479 = vpop.f32.mrb[0].mxu0
    %v480 = vadd.f32 %v55, %v479
    %481 = vmatprep.mubr.f32.mxu0 0.0
    %482 = vmatmul.mubr.f32.gmra.mrb[0].mxu0 %v397
    %v483 = vpop.f32.mrb[0].mxu0
    %v484 = vadd.f32 %v51, %v483
    %v485 = vpop.f32.mrb[0].mxu0
    %v486 = vadd.f32 %v55, %v485
    %487 = vdwg.mxu0
    %492 = vrot.lane.b32.xlu0 %v379, 64
    %v493 = vpop.permute.xlu0 %492
    %494 = vrot.lane.b32.xlu0 %v380, 64
    %v495 = vpop.permute.xlu0 %494
    %496 = vrot.lane.b32.xlu0 %v381, 64
    %v497 = vpop.permute.xlu0 %496
    %498 = vrot.lane.b32.xlu0 %v382, 64
    %v499 = vpop.permute.xlu0 %498
    %v500 = vsel %vm193, %v493, 0
    %v502 = vsel %vm193, %v495, 0
    %v504 = vsel %vm193, %v497, 0
    %v506 = vsel %vm193, %v499, 0
    %508 = vmatprep.subr.mxu0 %v178
    %509 = vmatpush1.msra.mxu0 %v177
    %510 = vmatprep.subr.mxu0 %v180
    %511 = vmatpush1.msra.mxu0 %v179
    %512 = vmatprep.subr.mxu0 %v182
    %513 = vmatpush1.msra.mxu0 %v181
    %514 = vmatprep.subr.mxu0 %v184
    %515 = vmatpush1.msra.mxu0 %v183
    %516 = vmatprep.subr.mxu0 %v186
    %517 = vmatpush1.msra.mxu0 %v185
    %518 = vmatprep.subr.mxu0 %v188
    %519 = vmatpush1.msra.mxu0 %v187
    %520 = vmatprep.subr.mxu0 %v190
    %521 = vmatpush1.msra.mxu0 %v189
    %522 = vmatprep.subr.mxu0 %v192
    %523 = vmatpush1.msra.mxu0 %v191
    %524 = vmatprep.subr.mxu0 0.0
    %525 = vmatpush1.msra.mxu0 0.0
    %526 = vmatprep.subr.mxu0 0.0
    %527 = vmatpush1.msra.mxu0 0.0
    %528 = vmatprep.subr.mxu0 0.0
    %529 = vmatpush1.msra.mxu0 0.0
    %530 = vmatprep.subr.mxu0 0.0
    %531 = vmatpush1.msra.mxu0 0.0
    %532 = vmatprep.subr.mxu0 0.0
    %533 = vmatpush1.msra.mxu0 0.0
    %534 = vmatprep.subr.mxu0 0.0
    %535 = vmatpush1.msra.mxu0 0.0
    %536 = vmatprep.subr.mxu0 0.0
    %537 = vmatpush1.msra.mxu0 0.0
    %538 = vmatprep.subr.mxu0 0.0
    %539 = vmatpush1.msra.mxu0 0.0
    %540 = vmatprep.subr.mxu0 0.0
    %541 = vmatpush1.msra.mxu0 0.0
    %542 = vmatprep.subr.mxu0 0.0
    %543 = vmatpush1.msra.mxu0 0.0
    %544 = vmatprep.subr.mxu0 0.0
    %545 = vmatpush1.msra.mxu0 0.0
    %546 = vmatprep.subr.mxu0 0.0
    %547 = vmatpush1.msra.mxu0 0.0
    %548 = vmatprep.subr.mxu0 0.0
    %549 = vmatpush1.msra.mxu0 0.0
    %550 = vmatprep.subr.mxu0 0.0
    %551 = vmatpush1.msra.mxu0 0.0
    %552 = vmatprep.subr.mxu0 0.0
    %553 = vmatpush1.msra.mxu0 0.0
    %554 = vmatprep.subr.mxu0 0.0
    %555 = vmatpush1.msra.mxu0 0.0
    %556 = vmatprep.subr.mxu0 0.0
    %557 = vmatpush1.msra.mxu0 0.0
    %558 = vmatprep.subr.mxu0 0.0
    %559 = vmatpush1.msra.mxu0 0.0
    %560 = vmatprep.subr.mxu0 0.0
    %561 = vmatpush1.msra.mxu0 0.0
    %562 = vmatprep.subr.mxu0 0.0
    %563 = vmatpush1.msra.mxu0 0.0
    %564 = vmatprep.subr.mxu0 0.0
    %565 = vmatpush1.msra.mxu0 0.0
    %566 = vmatprep.subr.mxu0 0.0
    %567 = vmatpush1.msra.mxu0 0.0
    %568 = vmatprep.subr.mxu0 0.0
    %569 = vmatpush1.msra.mxu0 0.0
    %570 = vmatprep.subr.mxu0 0.0
    %571 = vmatpush1.msra.mxu0 0.0
    %572 = vmatprep.mubr.f32.mxu0 0.0
    %573 = vmatmul.mubr.f32.gmra.mrb[0].mxu0 %v500
    %v574 = vpop.f32.mrb[0].mxu0
    %v575 = vadd.f32 0.0, %v574
    %v576 = vpop.f32.mrb[0].mxu0
    %v577 = vadd.f32 0.0, %v576
    %578 = vmatprep.mubr.f32.mxu0 0.0
    %579 = vmatmul.mubr.f32.gmra.mrb[0].mxu0 %v502
    %v580 = vpop.f32.mrb[0].mxu0
    %v581 = vadd.f32 0.0, %v580
    %v582 = vpop.f32.mrb[0].mxu0
    %v583 = vadd.f32 0.0, %v582
    %584 = vmatprep.mubr.f32.mxu0 0.0
    %585 = vmatmul.mubr.f32.gmra.mrb[0].mxu0 %v504
    %v586 = vpop.f32.mrb[0].mxu0
    %v587 = vadd.f32 0.0, %v586
    %v588 = vpop.f32.mrb[0].mxu0
    %v589 = vadd.f32 0.0, %v588
    %590 = vmatprep.mubr.f32.mxu0 0.0
    %591 = vmatmul.mubr.f32.gmra.mrb[0].mxu0 %v506
    %v592 = vpop.f32.mrb[0].mxu0
    %v593 = vadd.f32 0.0, %v592
    %v594 = vpop.f32.mrb[0].mxu0
    %v595 = vadd.f32 0.0, %v594
    %596 = vdwg.mxu0
    %v597 = vadd.f32 %v466, %v575
    %v598 = vadd.f32 %v472, %v581
    %v599 = vadd.f32 %v478, %v587
    %v600 = vadd.f32 %v484, %v593
    %v601 = vxor.u32 %v597, 2147483648
    %v602 = vxor.u32 %v598, 2147483648
    %v603 = vxor.u32 %v599, 2147483648
    %v604 = vxor.u32 %v600, 2147483648
    %v605 = vmul.f32 %v601, 1.442695
    %v606 = vpow.pop %v605
    %v607 = vmul.f32 %v602, 1.442695
    %v608 = vpow.pop %v607
    %v609 = vmul.f32 %v603, 1.442695
    %v610 = vpow.pop %v609
    %v611 = vmul.f32 %v604, 1.442695
    %v612 = vpow.pop %v611
    %v613 = vadd.f32 %v606, 1.0
    %v614 = vadd.f32 %v608, 1.0
    %v615 = vadd.f32 %v610, 1.0
    %v616 = vadd.f32 %v612, 1.0
    %v617 = vrcp.pop %v613
    %v618 = vmul.f32 1.0, %v617
    %v619 = vrcp.pop %v614
    %v620 = vmul.f32 1.0, %v619
    %v621 = vrcp.pop %v615
    %v622 = vmul.f32 1.0, %v621
    %v623 = vrcp.pop %v616
    %v624 = vmul.f32 1.0, %v623
    %v625 = vadd.f32 %v577, %v62
    %v626 = vadd.f32 %v583, %v62
    %v627 = vadd.f32 %v589, %v62
    %v628 = vadd.f32 %v595, %v62
    %v629 = vmul.f32 %v618, %v625
    %v630 = vmul.f32 %v620, %v626
    %v631 = vmul.f32 %v622, %v627
    %v632 = vmul.f32 %v624, %v628
    %v633 = vadd.f32 %v468, %v629
    %v634 = vadd.f32 %v474, %v630
    %v635 = vadd.f32 %v480, %v631
    %v636 = vadd.f32 %v486, %v632
    %v637 = vtanh.pop %v633
    %v638 = vtanh.pop %v634
    %v639 = vtanh.pop %v635
    %v640 = vtanh.pop %v636
    %v641 = vsub.f32 1.0, %v618
    %v642 = vsub.f32 1.0, %v620
    %v643 = vsub.f32 1.0, %v622
    %v644 = vsub.f32 1.0, %v624
    %649 = vrot.lane.b32.xlu0 %v637, 64
    %v650 = vpop.permute.xlu0 %649
    %651 = vrot.lane.b32.xlu0 %v638, 64
    %v652 = vpop.permute.xlu0 %651
    %653 = vrot.lane.b32.xlu0 %v639, 64
    %v654 = vpop.permute.xlu0 %653
    %655 = vrot.lane.b32.xlu0 %v640, 64
    %v656 = vpop.permute.xlu0 %655
    %v661 = vmul.f32 %v641, %v650
    %v662 = vmul.f32 %v642, %v652
    %v663 = vmul.f32 %v643, %v654
    %v664 = vmul.f32 %v644, %v656
    %v665 = vmul.f32 %v618, %v379
    %v666 = vmul.f32 %v620, %v380
    %v667 = vmul.f32 %v622, %v381
    %v668 = vmul.f32 %v624, %v382
    %v669 = vadd.f32 %v661, %v665
    %v670 = vadd.f32 %v662, %v666
    %v671 = vadd.f32 %v663, %v667
    %v672 = vadd.f32 %v664, %v668
    %673 = vrot.lane.b32.xlu0 %v67, 96
    %v674 = vpop.permute.xlu0 %673
    %675 = vrot.lane.b32.xlu0 %v68, 96
    %v676 = vpop.permute.xlu0 %675
    %677 = vrot.lane.b32.xlu0 %v69, 96
    %v678 = vpop.permute.xlu0 %677
    %679 = vrot.lane.b32.xlu0 %v70, 96
    %v680 = vpop.permute.xlu0 %679
    %v681 = vsel %vm75, %v674, 0
    %v683 = vsel %vm75, %v676, 0
    %v685 = vsel %vm75, %v678, 0
    %v687 = vsel %vm75, %v680, 0
    %689 = vmatprep.subr.mxu0 %v72
    %690 = vmatpush1.msra.mxu0 %v71
    %691 = vmatprep.subr.mxu0 %v74
    %692 = vmatpush1.msra.mxu0 %v73
    %693 = vmatprep.subr.mxu0 0.0
    %694 = vmatpush1.msra.mxu0 0.0
    %695 = vmatprep.subr.mxu0 0.0
    %696 = vmatpush1.msra.mxu0 0.0
    %697 = vmatprep.subr.mxu0 0.0
    %698 = vmatpush1.msra.mxu0 0.0
    %699 = vmatprep.subr.mxu0 0.0
    %700 = vmatpush1.msra.mxu0 0.0
    %701 = vmatprep.subr.mxu0 0.0
    %702 = vmatpush1.msra.mxu0 0.0
    %703 = vmatprep.subr.mxu0 0.0
    %704 = vmatpush1.msra.mxu0 0.0
    %705 = vmatprep.subr.mxu0 0.0
    %706 = vmatpush1.msra.mxu0 0.0
    %707 = vmatprep.subr.mxu0 0.0
    %708 = vmatpush1.msra.mxu0 0.0
    %709 = vmatprep.subr.mxu0 0.0
    %710 = vmatpush1.msra.mxu0 0.0
    %711 = vmatprep.subr.mxu0 0.0
    %712 = vmatpush1.msra.mxu0 0.0
    %713 = vmatprep.subr.mxu0 0.0
    %714 = vmatpush1.msra.mxu0 0.0
    %715 = vmatprep.subr.mxu0 0.0
    %716 = vmatpush1.msra.mxu0 0.0
    %717 = vmatprep.subr.mxu0 0.0
    %718 = vmatpush1.msra.mxu0 0.0
    %719 = vmatprep.subr.mxu0 0.0
    %720 = vmatpush1.msra.mxu0 0.0
    %721 = vmatprep.subr.mxu0 0.0
    %722 = vmatpush1.msra.mxu0 0.0
    %723 = vmatprep.subr.mxu0 0.0
    %724 = vmatpush1.msra.mxu0 0.0
    %725 = vmatprep.subr.mxu0 0.0
    %726 = vmatpush1.msra.mxu0 0.0
    %727 = vmatprep.subr.mxu0 0.0
    %728 = vmatpush1.msra.mxu0 0.0
    %729 = vmatprep.subr.mxu0 0.0
    %730 = vmatpush1.msra.mxu0 0.0
    %731 = vmatprep.subr.mxu0 0.0
    %732 = vmatpush1.msra.mxu0 0.0
    %733 = vmatprep.subr.mxu0 0.0
    %734 = vmatpush1.msra.mxu0 0.0
    %735 = vmatprep.subr.mxu0 0.0
    %736 = vmatpush1.msra.mxu0 0.0
    %737 = vmatprep.subr.mxu0 0.0
    %738 = vmatpush1.msra.mxu0 0.0
    %739 = vmatprep.subr.mxu0 0.0
    %740 = vmatpush1.msra.mxu0 0.0
    %741 = vmatprep.subr.mxu0 0.0
    %742 = vmatpush1.msra.mxu0 0.0
    %743 = vmatprep.subr.mxu0 0.0
    %744 = vmatpush1.msra.mxu0 0.0
    %745 = vmatprep.subr.mxu0 0.0
    %746 = vmatpush1.msra.mxu0 0.0
    %747 = vmatprep.subr.mxu0 0.0
    %748 = vmatpush1.msra.mxu0 0.0
    %749 = vmatprep.subr.mxu0 0.0
    %750 = vmatpush1.msra.mxu0 0.0
    %751 = vmatprep.subr.mxu0 0.0
    %752 = vmatpush1.msra.mxu0 0.0
    %753 = vmatprep.mubr.f32.mxu0 0.0
    %754 = vmatmul.mubr.f32.gmra.mrb[0].mxu0 %v681
    %v755 = vpop.f32.mrb[0].mxu0
    %v756 = vadd.f32 %v51, %v755
    %v757 = vpop.f32.mrb[0].mxu0
    %v758 = vadd.f32 %v55, %v757
    %759 = vmatprep.mubr.f32.mxu0 0.0
    %760 = vmatmul.mubr.f32.gmra.mrb[0].mxu0 %v683
    %v761 = vpop.f32.mrb[0].mxu0
    %v762 = vadd.f32 %v51, %v761
    %v763 = vpop.f32.mrb[0].mxu0
    %v764 = vadd.f32 %v55, %v763
    %765 = vmatprep.mubr.f32.mxu0 0.0
    %766 = vmatmul.mubr.f32.gmra.mrb[0].mxu0 %v685
    %v767 = vpop.f32.mrb[0].mxu0
    %v768 = vadd.f32 %v51, %v767
    %v769 = vpop.f32.mrb[0].mxu0
    %v770 = vadd.f32 %v55, %v769
    %771 = vmatprep.mubr.f32.mxu0 0.0
    %772 = vmatmul.mubr.f32.gmra.mrb[0].mxu0 %v687
    %v773 = vpop.f32.mrb[0].mxu0
    %v774 = vadd.f32 %v51, %v773
    %v775 = vpop.f32.mrb[0].mxu0
    %v776 = vadd.f32 %v55, %v775
    %777 = vdwg.mxu0
    %782 = vrot.lane.b32.xlu0 %v669, 64
    %v783 = vpop.permute.xlu0 %782
    %784 = vrot.lane.b32.xlu0 %v670, 64
    %v785 = vpop.permute.xlu0 %784
    %786 = vrot.lane.b32.xlu0 %v671, 64
    %v787 = vpop.permute.xlu0 %786
    %788 = vrot.lane.b32.xlu0 %v672, 64
    %v789 = vpop.permute.xlu0 %788
    %v790 = vsel %vm193, %v783, 0
    %v792 = vsel %vm193, %v785, 0
    %v794 = vsel %vm193, %v787, 0
    %v796 = vsel %vm193, %v789, 0
    %798 = vmatprep.subr.mxu0 %v178
    %799 = vmatpush1.msra.mxu0 %v177
    %800 = vmatprep.subr.mxu0 %v180
    %801 = vmatpush1.msra.mxu0 %v179
    %802 = vmatprep.subr.mxu0 %v182
    %803 = vmatpush1.msra.mxu0 %v181
    %804 = vmatprep.subr.mxu0 %v184
    %805 = vmatpush1.msra.mxu0 %v183
    %806 = vmatprep.subr.mxu0 %v186
    %807 = vmatpush1.msra.mxu0 %v185
    %808 = vmatprep.subr.mxu0 %v188
    %809 = vmatpush1.msra.mxu0 %v187
    %810 = vmatprep.subr.mxu0 %v190
    %811 = vmatpush1.msra.mxu0 %v189
    %812 = vmatprep.subr.mxu0 %v192
    %813 = vmatpush1.msra.mxu0 %v191
    %814 = vmatprep.subr.mxu0 0.0
    %815 = vmatpush1.msra.mxu0 0.0
    %816 = vmatprep.subr.mxu0 0.0
    %817 = vmatpush1.msra.mxu0 0.0
    %818 = vmatprep.subr.mxu0 0.0
    %819 = vmatpush1.msra.mxu0 0.0
    %820 = vmatprep.subr.mxu0 0.0
    %821 = vmatpush1.msra.mxu0 0.0
    %822 = vmatprep.subr.mxu0 0.0
    %823 = vmatpush1.msra.mxu0 0.0
    %824 = vmatprep.subr.mxu0 0.0
    %825 = vmatpush1.msra.mxu0 0.0
    %826 = vmatprep.subr.mxu0 0.0
    %827 = vmatpush1.msra.mxu0 0.0
    %828 = vmatprep.subr.mxu0 0.0
    %829 = vmatpush1.msra.mxu0 0.0
    %830 = vmatprep.subr.mxu0 0.0
    %831 = vmatpush1.msra.mxu0 0.0
    %832 = vmatprep.subr.mxu0 0.0
    %833 = vmatpush1.msra.mxu0 0.0
    %834 = vmatprep.subr.mxu0 0.0
    %835 = vmatpush1.msra.mxu0 0.0
    %836 = vmatprep.subr.mxu0 0.0
    %837 = vmatpush1.msra.mxu0 0.0
    %838 = vmatprep.subr.mxu0 0.0
    %839 = vmatpush1.msra.mxu0 0.0
    %840 = vmatprep.subr.mxu0 0.0
    %841 = vmatpush1.msra.mxu0 0.0
    %842 = vmatprep.subr.mxu0 0.0
    %843 = vmatpush1.msra.mxu0 0.0
    %844 = vmatprep.subr.mxu0 0.0
    %845 = vmatpush1.msra.mxu0 0.0
    %846 = vmatprep.subr.mxu0 0.0
    %847 = vmatpush1.msra.mxu0 0.0
    %848 = vmatprep.subr.mxu0 0.0
    %849 = vmatpush1.msra.mxu0 0.0
    %850 = vmatprep.subr.mxu0 0.0
    %851 = vmatpush1.msra.mxu0 0.0
    %852 = vmatprep.subr.mxu0 0.0
    %853 = vmatpush1.msra.mxu0 0.0
    %854 = vmatprep.subr.mxu0 0.0
    %855 = vmatpush1.msra.mxu0 0.0
    %856 = vmatprep.subr.mxu0 0.0
    %857 = vmatpush1.msra.mxu0 0.0
    %858 = vmatprep.subr.mxu0 0.0
    %859 = vmatpush1.msra.mxu0 0.0
    %860 = vmatprep.subr.mxu0 0.0
    %861 = vmatpush1.msra.mxu0 0.0
    %862 = vmatprep.mubr.f32.mxu0 0.0
    %863 = vmatmul.mubr.f32.gmra.mrb[0].mxu0 %v790
    %v864 = vpop.f32.mrb[0].mxu0
    %v865 = vadd.f32 0.0, %v864
    %v866 = vpop.f32.mrb[0].mxu0
    %v867 = vadd.f32 0.0, %v866
    %868 = vmatprep.mubr.f32.mxu0 0.0
    %869 = vmatmul.mubr.f32.gmra.mrb[0].mxu0 %v792
    %v870 = vpop.f32.mrb[0].mxu0
    %v871 = vadd.f32 0.0, %v870
    %v872 = vpop.f32.mrb[0].mxu0
    %v873 = vadd.f32 0.0, %v872
    %874 = vmatprep.mubr.f32.mxu0 0.0
    %875 = vmatmul.mubr.f32.gmra.mrb[0].mxu0 %v794
    %v876 = vpop.f32.mrb[0].mxu0
    %v877 = vadd.f32 0.0, %v876
    %v878 = vpop.f32.mrb[0].mxu0
    %v879 = vadd.f32 0.0, %v878
    %880 = vmatprep.mubr.f32.mxu0 0.0
    %881 = vmatmul.mubr.f32.gmra.mrb[0].mxu0 %v796
    %v882 = vpop.f32.mrb[0].mxu0
    %v883 = vadd.f32 0.0, %v882
    %v884 = vpop.f32.mrb[0].mxu0
    %v885 = vadd.f32 0.0, %v884
    %886 = vdwg.mxu0
    %v887 = vadd.f32 %v756, %v865
    %v888 = vadd.f32 %v762, %v871
    %v889 = vadd.f32 %v768, %v877
    %v890 = vadd.f32 %v774, %v883
    %v891 = vxor.u32 %v887, 2147483648
    %v892 = vxor.u32 %v888, 2147483648
    %v893 = vxor.u32 %v889, 2147483648
    %v894 = vxor.u32 %v890, 2147483648
    %v895 = vmul.f32 %v891, 1.442695
    %v896 = vpow.pop %v895
    %v897 = vmul.f32 %v892, 1.442695
    %v898 = vpow.pop %v897
    %v899 = vmul.f32 %v893, 1.442695
    %v900 = vpow.pop %v899
    %v901 = vmul.f32 %v894, 1.442695
    %v902 = vpow.pop %v901
    %v903 = vadd.f32 %v896, 1.0
    %v904 = vadd.f32 %v898, 1.0
    %v905 = vadd.f32 %v900, 1.0
    %v906 = vadd.f32 %v902, 1.0
    %v907 = vrcp.pop %v903
    %v908 = vmul.f32 1.0, %v907
    %v909 = vrcp.pop %v904
    %v910 = vmul.f32 1.0, %v909
    %v911 = vrcp.pop %v905
    %v912 = vmul.f32 1.0, %v911
    %v913 = vrcp.pop %v906
    %v914 = vmul.f32 1.0, %v913
    %v915 = vadd.f32 %v867, %v62
    %v916 = vadd.f32 %v873, %v62
    %v917 = vadd.f32 %v879, %v62
    %v918 = vadd.f32 %v885, %v62
    %v919 = vmul.f32 %v908, %v915
    %v920 = vmul.f32 %v910, %v916
    %v921 = vmul.f32 %v912, %v917
    %v922 = vmul.f32 %v914, %v918
    %v923 = vadd.f32 %v758, %v919
    %v924 = vadd.f32 %v764, %v920
    %v925 = vadd.f32 %v770, %v921
    %v926 = vadd.f32 %v776, %v922
    %v927 = vtanh.pop %v923
    %v928 = vtanh.pop %v924
    %v929 = vtanh.pop %v925
    %v930 = vtanh.pop %v926
    %v931 = vsub.f32 1.0, %v908
    %v932 = vsub.f32 1.0, %v910
    %v933 = vsub.f32 1.0, %v912
    %v934 = vsub.f32 1.0, %v914
    %939 = vrot.lane.b32.xlu0 %v927, 64
    %v940 = vpop.permute.xlu0 %939
    %941 = vrot.lane.b32.xlu0 %v928, 64
    %v942 = vpop.permute.xlu0 %941
    %943 = vrot.lane.b32.xlu0 %v929, 64
    %v944 = vpop.permute.xlu0 %943
    %945 = vrot.lane.b32.xlu0 %v930, 64
    %v946 = vpop.permute.xlu0 %945
    %v951 = vmul.f32 %v931, %v940
    %v952 = vmul.f32 %v932, %v942
    %v953 = vmul.f32 %v933, %v944
    %v954 = vmul.f32 %v934, %v946
    %v955 = vmul.f32 %v908, %v669
    %v956 = vmul.f32 %v910, %v670
    %v957 = vmul.f32 %v912, %v671
    %v958 = vmul.f32 %v914, %v672
    %v959 = vadd.f32 %v951, %v955
    %v960 = vadd.f32 %v952, %v956
    %v961 = vadd.f32 %v953, %v957
    %v962 = vadd.f32 %v954, %v958
    %963 = vrot.lane.b32.xlu0 %v67, 80
    %v964 = vpop.permute.xlu0 %963
    %965 = vrot.lane.b32.xlu0 %v68, 80
    %v966 = vpop.permute.xlu0 %965
    %967 = vrot.lane.b32.xlu0 %v69, 80
    %v968 = vpop.permute.xlu0 %967
    %969 = vrot.lane.b32.xlu0 %v70, 80
    %v970 = vpop.permute.xlu0 %969
    %v971 = vsel %vm75, %v964, 0
    %v973 = vsel %vm75, %v966, 0
    %v975 = vsel %vm75, %v968, 0
    %v977 = vsel %vm75, %v970, 0
    %979 = vmatprep.subr.mxu0 %v72
    %980 = vmatpush1.msra.mxu0 %v71
    %981 = vmatprep.subr.mxu0 %v74
    %982 = vmatpush1.msra.mxu0 %v73
    %983 = vmatprep.subr.mxu0 0.0
    %984 = vmatpush1.msra.mxu0 0.0
    %985 = vmatprep.subr.mxu0 0.0
    %986 = vmatpush1.msra.mxu0 0.0
    %987 = vmatprep.subr.mxu0 0.0
    %988 = vmatpush1.msra.mxu0 0.0
    %989 = vmatprep.subr.mxu0 0.0
    %990 = vmatpush1.msra.mxu0 0.0
    %991 = vmatprep.subr.mxu0 0.0
    %992 = vmatpush1.msra.mxu0 0.0
    %993 = vmatprep.subr.mxu0 0.0
    %994 = vmatpush1.msra.mxu0 0.0
    %995 = vmatprep.subr.mxu0 0.0
    %996 = vmatpush1.msra.mxu0 0.0
    %997 = vmatprep.subr.mxu0 0.0
    %998 = vmatpush1.msra.mxu0 0.0
    %999 = vmatprep.subr.mxu0 0.0
    %1000 = vmatpush1.msra.mxu0 0.0
    %1001 = vmatprep.subr.mxu0 0.0
    %1002 = vmatpush1.msra.mxu0 0.0
    %1003 = vmatprep.subr.mxu0 0.0
    %1004 = vmatpush1.msra.mxu0 0.0
    %1005 = vmatprep.subr.mxu0 0.0
    %1006 = vmatpush1.msra.mxu0 0.0
    %1007 = vmatprep.subr.mxu0 0.0
    %1008 = vmatpush1.msra.mxu0 0.0
    %1009 = vmatprep.subr.mxu0 0.0
    %1010 = vmatpush1.msra.mxu0 0.0
    %1011 = vmatprep.subr.mxu0 0.0
    %1012 = vmatpush1.msra.mxu0 0.0
    %1013 = vmatprep.subr.mxu0 0.0
    %1014 = vmatpush1.msra.mxu0 0.0
    %1015 = vmatprep.subr.mxu0 0.0
    %1016 = vmatpush1.msra.mxu0 0.0
    %1017 = vmatprep.subr.mxu0 0.0
    %1018 = vmatpush1.msra.mxu0 0.0
    %1019 = vmatprep.subr.mxu0 0.0
    %1020 = vmatpush1.msra.mxu0 0.0
    %1021 = vmatprep.subr.mxu0 0.0
    %1022 = vmatpush1.msra.mxu0 0.0
    %1023 = vmatprep.subr.mxu0 0.0
    %1024 = vmatpush1.msra.mxu0 0.0
    %1025 = vmatprep.subr.mxu0 0.0
    %1026 = vmatpush1.msra.mxu0 0.0
    %1027 = vmatprep.subr.mxu0 0.0
    %1028 = vmatpush1.msra.mxu0 0.0
    %1029 = vmatprep.subr.mxu0 0.0
    %1030 = vmatpush1.msra.mxu0 0.0
    %1031 = vmatprep.subr.mxu0 0.0
    %1032 = vmatpush1.msra.mxu0 0.0
    %1033 = vmatprep.subr.mxu0 0.0
    %1034 = vmatpush1.msra.mxu0 0.0
    %1035 = vmatprep.subr.mxu0 0.0
    %1036 = vmatpush1.msra.mxu0 0.0
    %1037 = vmatprep.subr.mxu0 0.0
    %1038 = vmatpush1.msra.mxu0 0.0
    %1039 = vmatprep.subr.mxu0 0.0
    %1040 = vmatpush1.msra.mxu0 0.0
    %1041 = vmatprep.subr.mxu0 0.0
    %1042 = vmatpush1.msra.mxu0 0.0
    %1043 = vmatprep.mubr.f32.mxu0 0.0
    %1044 = vmatmul.mubr.f32.gmra.mrb[0].mxu0 %v971
    %v1045 = vpop.f32.mrb[0].mxu0
    %v1046 = vadd.f32 %v51, %v1045
    %v1047 = vpop.f32.mrb[0].mxu0
    %v1048 = vadd.f32 %v55, %v1047
    %1049 = vmatprep.mubr.f32.mxu0 0.0
    %1050 = vmatmul.mubr.f32.gmra.mrb[0].mxu0 %v973
    %v1051 = vpop.f32.mrb[0].mxu0
    %v1052 = vadd.f32 %v51, %v1051
    %v1053 = vpop.f32.mrb[0].mxu0
    %v1054 = vadd.f32 %v55, %v1053
    %1055 = vmatprep.mubr.f32.mxu0 0.0
    %1056 = vmatmul.mubr.f32.gmra.mrb[0].mxu0 %v975
    %v1057 = vpop.f32.mrb[0].mxu0
    %v1058 = vadd.f32 %v51, %v1057
    %v1059 = vpop.f32.mrb[0].mxu0
    %v1060 = vadd.f32 %v55, %v1059
    %1061 = vmatprep.mubr.f32.mxu0 0.0
    %1062 = vmatmul.mubr.f32.gmra.mrb[0].mxu0 %v977
    %v1063 = vpop.f32.mrb[0].mxu0
    %v1064 = vadd.f32 %v51, %v1063
    %v1065 = vpop.f32.mrb[0].mxu0
    %v1066 = vadd.f32 %v55, %v1065
    %1067 = vdwg.mxu0
    %1072 = vrot.lane.b32.xlu0 %v959, 64
    %v1073 = vpop.permute.xlu0 %1072
    %1074 = vrot.lane.b32.xlu0 %v960, 64
    %v1075 = vpop.permute.xlu0 %1074
    %1076 = vrot.lane.b32.xlu0 %v961, 64
    %v1077 = vpop.permute.xlu0 %1076
    %1078 = vrot.lane.b32.xlu0 %v962, 64
    %v1079 = vpop.permute.xlu0 %1078
    %v1080 = vsel %vm193, %v1073, 0
    %v1082 = vsel %vm193, %v1075, 0
    %v1084 = vsel %vm193, %v1077, 0
    %v1086 = vsel %vm193, %v1079, 0
    %1088 = vmatprep.subr.mxu0 %v178
    %1089 = vmatpush1.msra.mxu0 %v177
    %1090 = vmatprep.subr.mxu0 %v180
    %1091 = vmatpush1.msra.mxu0 %v179
    %1092 = vmatprep.subr.mxu0 %v182
    %1093 = vmatpush1.msra.mxu0 %v181
    %1094 = vmatprep.subr.mxu0 %v184
    %1095 = vmatpush1.msra.mxu0 %v183
    %1096 = vmatprep.subr.mxu0 %v186
    %1097 = vmatpush1.msra.mxu0 %v185
    %1098 = vmatprep.subr.mxu0 %v188
    %1099 = vmatpush1.msra.mxu0 %v187
    %1100 = vmatprep.subr.mxu0 %v190
    %1101 = vmatpush1.msra.mxu0 %v189
    %1102 = vmatprep.subr.mxu0 %v192
    %1103 = vmatpush1.msra.mxu0 %v191
    %1104 = vmatprep.subr.mxu0 0.0
    %1105 = vmatpush1.msra.mxu0 0.0
    %1106 = vmatprep.subr.mxu0 0.0
    %1107 = vmatpush1.msra.mxu0 0.0
    %1108 = vmatprep.subr.mxu0 0.0
    %1109 = vmatpush1.msra.mxu0 0.0
    %1110 = vmatprep.subr.mxu0 0.0
    %1111 = vmatpush1.msra.mxu0 0.0
    %1112 = vmatprep.subr.mxu0 0.0
    %1113 = vmatpush1.msra.mxu0 0.0
    %1114 = vmatprep.subr.mxu0 0.0
    %1115 = vmatpush1.msra.mxu0 0.0
    %1116 = vmatprep.subr.mxu0 0.0
    %1117 = vmatpush1.msra.mxu0 0.0
    %1118 = vmatprep.subr.mxu0 0.0
    %1119 = vmatpush1.msra.mxu0 0.0
    %1120 = vmatprep.subr.mxu0 0.0
    %1121 = vmatpush1.msra.mxu0 0.0
    %1122 = vmatprep.subr.mxu0 0.0
    %1123 = vmatpush1.msra.mxu0 0.0
    %1124 = vmatprep.subr.mxu0 0.0
    %1125 = vmatpush1.msra.mxu0 0.0
    %1126 = vmatprep.subr.mxu0 0.0
    %1127 = vmatpush1.msra.mxu0 0.0
    %1128 = vmatprep.subr.mxu0 0.0
    %1129 = vmatpush1.msra.mxu0 0.0
    %1130 = vmatprep.subr.mxu0 0.0
    %1131 = vmatpush1.msra.mxu0 0.0
    %1132 = vmatprep.subr.mxu0 0.0
    %1133 = vmatpush1.msra.mxu0 0.0
    %1134 = vmatprep.subr.mxu0 0.0
    %1135 = vmatpush1.msra.mxu0 0.0
    %1136 = vmatprep.subr.mxu0 0.0
    %1137 = vmatpush1.msra.mxu0 0.0
    %1138 = vmatprep.subr.mxu0 0.0
    %1139 = vmatpush1.msra.mxu0 0.0
    %1140 = vmatprep.subr.mxu0 0.0
    %1141 = vmatpush1.msra.mxu0 0.0
    %1142 = vmatprep.subr.mxu0 0.0
    %1143 = vmatpush1.msra.mxu0 0.0
    %1144 = vmatprep.subr.mxu0 0.0
    %1145 = vmatpush1.msra.mxu0 0.0
    %1146 = vmatprep.subr.mxu0 0.0
    %1147 = vmatpush1.msra.mxu0 0.0
    %1148 = vmatprep.subr.mxu0 0.0
    %1149 = vmatpush1.msra.mxu0 0.0
    %1150 = vmatprep.subr.mxu0 0.0
    %1151 = vmatpush1.msra.mxu0 0.0
    %1152 = vmatprep.mubr.f32.mxu0 0.0
    %1153 = vmatmul.mubr.f32.gmra.mrb[0].mxu0 %v1080
    %v1154 = vpop.f32.mrb[0].mxu0
    %v1155 = vadd.f32 0.0, %v1154
    %v1156 = vpop.f32.mrb[0].mxu0
    %v1157 = vadd.f32 0.0, %v1156
    %1158 = vmatprep.mubr.f32.mxu0 0.0
    %1159 = vmatmul.mubr.f32.gmra.mrb[0].mxu0 %v1082
    %v1160 = vpop.f32.mrb[0].mxu0
    %v1161 = vadd.f32 0.0, %v1160
    %v1162 = vpop.f32.mrb[0].mxu0
    %v1163 = vadd.f32 0.0, %v1162
    %1164 = vmatprep.mubr.f32.mxu0 0.0
    %1165 = vmatmul.mubr.f32.gmra.mrb[0].mxu0 %v1084
    %v1166 = vpop.f32.mrb[0].mxu0
    %v1167 = vadd.f32 0.0, %v1166
    %v1168 = vpop.f32.mrb[0].mxu0
    %v1169 = vadd.f32 0.0, %v1168
    %1170 = vmatprep.mubr.f32.mxu0 0.0
    %1171 = vmatmul.mubr.f32.gmra.mrb[0].mxu0 %v1086
    %v1172 = vpop.f32.mrb[0].mxu0
    %v1173 = vadd.f32 0.0, %v1172
    %v1174 = vpop.f32.mrb[0].mxu0
    %v1175 = vadd.f32 0.0, %v1174
    %1176 = vdwg.mxu0
    %v1177 = vadd.f32 %v1046, %v1155
    %v1178 = vadd.f32 %v1052, %v1161
    %v1179 = vadd.f32 %v1058, %v1167
    %v1180 = vadd.f32 %v1064, %v1173
    %v1181 = vxor.u32 %v1177, 2147483648
    %v1182 = vxor.u32 %v1178, 2147483648
    %v1183 = vxor.u32 %v1179, 2147483648
    %v1184 = vxor.u32 %v1180, 2147483648
    %v1185 = vmul.f32 %v1181, 1.442695
    %v1186 = vpow.pop %v1185
    %v1187 = vmul.f32 %v1182, 1.442695
    %v1188 = vpow.pop %v1187
    %v1189 = vmul.f32 %v1183, 1.442695
    %v1190 = vpow.pop %v1189
    %v1191 = vmul.f32 %v1184, 1.442695
    %v1192 = vpow.pop %v1191
    %v1193 = vadd.f32 %v1186, 1.0
    %v1194 = vadd.f32 %v1188, 1.0
    %v1195 = vadd.f32 %v1190, 1.0
    %v1196 = vadd.f32 %v1192, 1.0
    %v1197 = vrcp.pop %v1193
    %v1198 = vmul.f32 1.0, %v1197
    %v1199 = vrcp.pop %v1194
    %v1200 = vmul.f32 1.0, %v1199
    %v1201 = vrcp.pop %v1195
    %v1202 = vmul.f32 1.0, %v1201
    %v1203 = vrcp.pop %v1196
    %v1204 = vmul.f32 1.0, %v1203
    %v1205 = vadd.f32 %v1157, %v62
    %v1206 = vadd.f32 %v1163, %v62
    %v1207 = vadd.f32 %v1169, %v62
    %v1208 = vadd.f32 %v1175, %v62
    %v1209 = vmul.f32 %v1198, %v1205
    %v1210 = vmul.f32 %v1200, %v1206
    %v1211 = vmul.f32 %v1202, %v1207
    %v1212 = vmul.f32 %v1204, %v1208
    %v1213 = vadd.f32 %v1048, %v1209
    %v1214 = vadd.f32 %v1054, %v1210
    %v1215 = vadd.f32 %v1060, %v1211
    %v1216 = vadd.f32 %v1066, %v1212
    %v1217 = vtanh.pop %v1213
    %v1218 = vtanh.pop %v1214
    %v1219 = vtanh.pop %v1215
    %v1220 = vtanh.pop %v1216
    %v1221 = vsub.f32 1.0, %v1198
    %v1222 = vsub.f32 1.0, %v1200
    %v1223 = vsub.f32 1.0, %v1202
    %v1224 = vsub.f32 1.0, %v1204
    %1229 = vrot.lane.b32.xlu0 %v1217, 64
    %v1230 = vpop.permute.xlu0 %1229
    %1231 = vrot.lane.b32.xlu0 %v1218, 64
    %v1232 = vpop.permute.xlu0 %1231
    %1233 = vrot.lane.b32.xlu0 %v1219, 64
    %v1234 = vpop.permute.xlu0 %1233
    %1235 = vrot.lane.b32.xlu0 %v1220, 64
    %v1236 = vpop.permute.xlu0 %1235
    %v1241 = vmul.f32 %v1221, %v1230
    %v1242 = vmul.f32 %v1222, %v1232
    %v1243 = vmul.f32 %v1223, %v1234
    %v1244 = vmul.f32 %v1224, %v1236
    %v1245 = vmul.f32 %v1198, %v959
    %v1246 = vmul.f32 %v1200, %v960
    %v1247 = vmul.f32 %v1202, %v961
    %v1248 = vmul.f32 %v1204, %v962
    %v1249 = vadd.f32 %v1241, %v1245
    %v1250 = vadd.f32 %v1242, %v1246
    %v1251 = vadd.f32 %v1243, %v1247
    %v1252 = vadd.f32 %v1244, %v1248
    %1253 = vrot.lane.b32.xlu0 %v67, 64
    %v1254 = vpop.permute.xlu0 %1253
    %1255 = vrot.lane.b32.xlu0 %v68, 64
    %v1256 = vpop.permute.xlu0 %1255
    %1257 = vrot.lane.b32.xlu0 %v69, 64
    %v1258 = vpop.permute.xlu0 %1257
    %1259 = vrot.lane.b32.xlu0 %v70, 64
    %v1260 = vpop.permute.xlu0 %1259
    %v1261 = vsel %vm75, %v1254, 0
    %v1263 = vsel %vm75, %v1256, 0
    %v1265 = vsel %vm75, %v1258, 0
    %v1267 = vsel %vm75, %v1260, 0
    %1269 = vmatprep.subr.mxu0 %v72
    %1270 = vmatpush1.msra.mxu0 %v71
    %1271 = vmatprep.subr.mxu0 %v74
    %1272 = vmatpush1.msra.mxu0 %v73
    %1273 = vmatprep.subr.mxu0 0.0
    %1274 = vmatpush1.msra.mxu0 0.0
    %1275 = vmatprep.subr.mxu0 0.0
    %1276 = vmatpush1.msra.mxu0 0.0
    %1277 = vmatprep.subr.mxu0 0.0
    %1278 = vmatpush1.msra.mxu0 0.0
    %1279 = vmatprep.subr.mxu0 0.0
    %1280 = vmatpush1.msra.mxu0 0.0
    %1281 = vmatprep.subr.mxu0 0.0
    %1282 = vmatpush1.msra.mxu0 0.0
    %1283 = vmatprep.subr.mxu0 0.0
    %1284 = vmatpush1.msra.mxu0 0.0
    %1285 = vmatprep.subr.mxu0 0.0
    %1286 = vmatpush1.msra.mxu0 0.0
    %1287 = vmatprep.subr.mxu0 0.0
    %1288 = vmatpush1.msra.mxu0 0.0
    %1289 = vmatprep.subr.mxu0 0.0
    %1290 = vmatpush1.msra.mxu0 0.0
    %1291 = vmatprep.subr.mxu0 0.0
    %1292 = vmatpush1.msra.mxu0 0.0
    %1293 = vmatprep.subr.mxu0 0.0
    %1294 = vmatpush1.msra.mxu0 0.0
    %1295 = vmatprep.subr.mxu0 0.0
    %1296 = vmatpush1.msra.mxu0 0.0
    %1297 = vmatprep.subr.mxu0 0.0
    %1298 = vmatpush1.msra.mxu0 0.0
    %1299 = vmatprep.subr.mxu0 0.0
    %1300 = vmatpush1.msra.mxu0 0.0
    %1301 = vmatprep.subr.mxu0 0.0
    %1302 = vmatpush1.msra.mxu0 0.0
    %1303 = vmatprep.subr.mxu0 0.0
    %1304 = vmatpush1.msra.mxu0 0.0
    %1305 = vmatprep.subr.mxu0 0.0
    %1306 = vmatpush1.msra.mxu0 0.0
    %1307 = vmatprep.subr.mxu0 0.0
    %1308 = vmatpush1.msra.mxu0 0.0
    %1309 = vmatprep.subr.mxu0 0.0
    %1310 = vmatpush1.msra.mxu0 0.0
    %1311 = vmatprep.subr.mxu0 0.0
    %1312 = vmatpush1.msra.mxu0 0.0
    %1313 = vmatprep.subr.mxu0 0.0
    %1314 = vmatpush1.msra.mxu0 0.0
    %1315 = vmatprep.subr.mxu0 0.0
    %1316 = vmatpush1.msra.mxu0 0.0
    %1317 = vmatprep.subr.mxu0 0.0
    %1318 = vmatpush1.msra.mxu0 0.0
    %1319 = vmatprep.subr.mxu0 0.0
    %1320 = vmatpush1.msra.mxu0 0.0
    %1321 = vmatprep.subr.mxu0 0.0
    %1322 = vmatpush1.msra.mxu0 0.0
    %1323 = vmatprep.subr.mxu0 0.0
    %1324 = vmatpush1.msra.mxu0 0.0
    %1325 = vmatprep.subr.mxu0 0.0
    %1326 = vmatpush1.msra.mxu0 0.0
    %1327 = vmatprep.subr.mxu0 0.0
    %1328 = vmatpush1.msra.mxu0 0.0
    %1329 = vmatprep.subr.mxu0 0.0
    %1330 = vmatpush1.msra.mxu0 0.0
    %1331 = vmatprep.subr.mxu0 0.0
    %1332 = vmatpush1.msra.mxu0 0.0
    %1333 = vmatprep.mubr.f32.mxu0 0.0
    %1334 = vmatmul.mubr.f32.gmra.mrb[0].mxu0 %v1261
    %v1335 = vpop.f32.mrb[0].mxu0
    %v1336 = vadd.f32 %v51, %v1335
    %v1337 = vpop.f32.mrb[0].mxu0
    %v1338 = vadd.f32 %v55, %v1337
    %1339 = vmatprep.mubr.f32.mxu0 0.0
    %1340 = vmatmul.mubr.f32.gmra.mrb[0].mxu0 %v1263
    %v1341 = vpop.f32.mrb[0].mxu0
    %v1342 = vadd.f32 %v51, %v1341
    %v1343 = vpop.f32.mrb[0].mxu0
    %v1344 = vadd.f32 %v55, %v1343
    %1345 = vmatprep.mubr.f32.mxu0 0.0
    %1346 = vmatmul.mubr.f32.gmra.mrb[0].mxu0 %v1265
    %v1347 = vpop.f32.mrb[0].mxu0
    %v1348 = vadd.f32 %v51, %v1347
    %v1349 = vpop.f32.mrb[0].mxu0
    %v1350 = vadd.f32 %v55, %v1349
    %1351 = vmatprep.mubr.f32.mxu0 0.0
    %1352 = vmatmul.mubr.f32.gmra.mrb[0].mxu0 %v1267
    %v1353 = vpop.f32.mrb[0].mxu0
    %v1354 = vadd.f32 %v51, %v1353
    %v1355 = vpop.f32.mrb[0].mxu0
    %v1356 = vadd.f32 %v55, %v1355
    %1357 = vdwg.mxu0
    %1362 = vrot.lane.b32.xlu0 %v1249, 64
    %v1363 = vpop.permute.xlu0 %1362
    %1364 = vrot.lane.b32.xlu0 %v1250, 64
    %v1365 = vpop.permute.xlu0 %1364
    %1366 = vrot.lane.b32.xlu0 %v1251, 64
    %v1367 = vpop.permute.xlu0 %1366
    %1368 = vrot.lane.b32.xlu0 %v1252, 64
    %v1369 = vpop.permute.xlu0 %1368
    %v1370 = vsel %vm193, %v1363, 0
    %v1372 = vsel %vm193, %v1365, 0
    %v1374 = vsel %vm193, %v1367, 0
    %v1376 = vsel %vm193, %v1369, 0
    %1378 = vmatprep.subr.mxu0 %v178
    %1379 = vmatpush1.msra.mxu0 %v177
    %1380 = vmatprep.subr.mxu0 %v180
    %1381 = vmatpush1.msra.mxu0 %v179
    %1382 = vmatprep.subr.mxu0 %v182
    %1383 = vmatpush1.msra.mxu0 %v181
    %1384 = vmatprep.subr.mxu0 %v184
    %1385 = vmatpush1.msra.mxu0 %v183
    %1386 = vmatprep.subr.mxu0 %v186
    %1387 = vmatpush1.msra.mxu0 %v185
    %1388 = vmatprep.subr.mxu0 %v188
    %1389 = vmatpush1.msra.mxu0 %v187
    %1390 = vmatprep.subr.mxu0 %v190
    %1391 = vmatpush1.msra.mxu0 %v189
    %1392 = vmatprep.subr.mxu0 %v192
    %1393 = vmatpush1.msra.mxu0 %v191
    %1394 = vmatprep.subr.mxu0 0.0
    %1395 = vmatpush1.msra.mxu0 0.0
    %1396 = vmatprep.subr.mxu0 0.0
    %1397 = vmatpush1.msra.mxu0 0.0
    %1398 = vmatprep.subr.mxu0 0.0
    %1399 = vmatpush1.msra.mxu0 0.0
    %1400 = vmatprep.subr.mxu0 0.0
    %1401 = vmatpush1.msra.mxu0 0.0
    %1402 = vmatprep.subr.mxu0 0.0
    %1403 = vmatpush1.msra.mxu0 0.0
    %1404 = vmatprep.subr.mxu0 0.0
    %1405 = vmatpush1.msra.mxu0 0.0
    %1406 = vmatprep.subr.mxu0 0.0
    %1407 = vmatpush1.msra.mxu0 0.0
    %1408 = vmatprep.subr.mxu0 0.0
    %1409 = vmatpush1.msra.mxu0 0.0
    %1410 = vmatprep.subr.mxu0 0.0
    %1411 = vmatpush1.msra.mxu0 0.0
    %1412 = vmatprep.subr.mxu0 0.0
    %1413 = vmatpush1.msra.mxu0 0.0
    %1414 = vmatprep.subr.mxu0 0.0
    %1415 = vmatpush1.msra.mxu0 0.0
    %1416 = vmatprep.subr.mxu0 0.0
    %1417 = vmatpush1.msra.mxu0 0.0
    %1418 = vmatprep.subr.mxu0 0.0
    %1419 = vmatpush1.msra.mxu0 0.0
    %1420 = vmatprep.subr.mxu0 0.0
    %1421 = vmatpush1.msra.mxu0 0.0
    %1422 = vmatprep.subr.mxu0 0.0
    %1423 = vmatpush1.msra.mxu0 0.0
    %1424 = vmatprep.subr.mxu0 0.0
    %1425 = vmatpush1.msra.mxu0 0.0
    %1426 = vmatprep.subr.mxu0 0.0
    %1427 = vmatpush1.msra.mxu0 0.0
    %1428 = vmatprep.subr.mxu0 0.0
    %1429 = vmatpush1.msra.mxu0 0.0
    %1430 = vmatprep.subr.mxu0 0.0
    %1431 = vmatpush1.msra.mxu0 0.0
    %1432 = vmatprep.subr.mxu0 0.0
    %1433 = vmatpush1.msra.mxu0 0.0
    %1434 = vmatprep.subr.mxu0 0.0
    %1435 = vmatpush1.msra.mxu0 0.0
    %1436 = vmatprep.subr.mxu0 0.0
    %1437 = vmatpush1.msra.mxu0 0.0
    %1438 = vmatprep.subr.mxu0 0.0
    %1439 = vmatpush1.msra.mxu0 0.0
    %1440 = vmatprep.subr.mxu0 0.0
    %1441 = vmatpush1.msra.mxu0 0.0
    %1442 = vmatprep.mubr.f32.mxu0 0.0
    %1443 = vmatmul.mubr.f32.gmra.mrb[0].mxu0 %v1370
    %v1444 = vpop.f32.mrb[0].mxu0
    %v1445 = vadd.f32 0.0, %v1444
    %v1446 = vpop.f32.mrb[0].mxu0
    %v1447 = vadd.f32 0.0, %v1446
    %1448 = vmatprep.mubr.f32.mxu0 0.0
    %1449 = vmatmul.mubr.f32.gmra.mrb[0].mxu0 %v1372
    %v1450 = vpop.f32.mrb[0].mxu0
    %v1451 = vadd.f32 0.0, %v1450
    %v1452 = vpop.f32.mrb[0].mxu0
    %v1453 = vadd.f32 0.0, %v1452
    %1454 = vmatprep.mubr.f32.mxu0 0.0
    %1455 = vmatmul.mubr.f32.gmra.mrb[0].mxu0 %v1374
    %v1456 = vpop.f32.mrb[0].mxu0
    %v1457 = vadd.f32 0.0, %v1456
    %v1458 = vpop.f32.mrb[0].mxu0
    %v1459 = vadd.f32 0.0, %v1458
    %1460 = vmatprep.mubr.f32.mxu0 0.0
    %1461 = vmatmul.mubr.f32.gmra.mrb[0].mxu0 %v1376
    %v1462 = vpop.f32.mrb[0].mxu0
    %v1463 = vadd.f32 0.0, %v1462
    %v1464 = vpop.f32.mrb[0].mxu0
    %v1465 = vadd.f32 0.0, %v1464
    %1466 = vdwg.mxu0
    %v1467 = vadd.f32 %v1336, %v1445
    %v1468 = vadd.f32 %v1342, %v1451
    %v1469 = vadd.f32 %v1348, %v1457
    %v1470 = vadd.f32 %v1354, %v1463
    %v1471 = vxor.u32 %v1467, 2147483648
    %v1472 = vxor.u32 %v1468, 2147483648
    %v1473 = vxor.u32 %v1469, 2147483648
    %v1474 = vxor.u32 %v1470, 2147483648
    %v1475 = vmul.f32 %v1471, 1.442695
    %v1476 = vpow.pop %v1475
    %v1477 = vmul.f32 %v1472, 1.442695
    %v1478 = vpow.pop %v1477
    %v1479 = vmul.f32 %v1473, 1.442695
    %v1480 = vpow.pop %v1479
    %v1481 = vmul.f32 %v1474, 1.442695
    %v1482 = vpow.pop %v1481
    %v1483 = vadd.f32 %v1476, 1.0
    %v1484 = vadd.f32 %v1478, 1.0
    %v1485 = vadd.f32 %v1480, 1.0
    %v1486 = vadd.f32 %v1482, 1.0
    %v1487 = vrcp.pop %v1483
    %v1488 = vmul.f32 1.0, %v1487
    %v1489 = vrcp.pop %v1484
    %v1490 = vmul.f32 1.0, %v1489
    %v1491 = vrcp.pop %v1485
    %v1492 = vmul.f32 1.0, %v1491
    %v1493 = vrcp.pop %v1486
    %v1494 = vmul.f32 1.0, %v1493
    %v1495 = vadd.f32 %v1447, %v62
    %v1496 = vadd.f32 %v1453, %v62
    %v1497 = vadd.f32 %v1459, %v62
    %v1498 = vadd.f32 %v1465, %v62
    %v1499 = vmul.f32 %v1488, %v1495
    %v1500 = vmul.f32 %v1490, %v1496
    %v1501 = vmul.f32 %v1492, %v1497
    %v1502 = vmul.f32 %v1494, %v1498
    %v1503 = vadd.f32 %v1338, %v1499
    %v1504 = vadd.f32 %v1344, %v1500
    %v1505 = vadd.f32 %v1350, %v1501
    %v1506 = vadd.f32 %v1356, %v1502
    %v1507 = vtanh.pop %v1503
    %v1508 = vtanh.pop %v1504
    %v1509 = vtanh.pop %v1505
    %v1510 = vtanh.pop %v1506
    %v1511 = vsub.f32 1.0, %v1488
    %v1512 = vsub.f32 1.0, %v1490
    %v1513 = vsub.f32 1.0, %v1492
    %v1514 = vsub.f32 1.0, %v1494
    %1519 = vrot.lane.b32.xlu0 %v1507, 64
    %v1520 = vpop.permute.xlu0 %1519
    %1521 = vrot.lane.b32.xlu0 %v1508, 64
    %v1522 = vpop.permute.xlu0 %1521
    %1523 = vrot.lane.b32.xlu0 %v1509, 64
    %v1524 = vpop.permute.xlu0 %1523
    %1525 = vrot.lane.b32.xlu0 %v1510, 64
    %v1526 = vpop.permute.xlu0 %1525
    %v1531 = vmul.f32 %v1511, %v1520
    %v1532 = vmul.f32 %v1512, %v1522
    %v1533 = vmul.f32 %v1513, %v1524
    %v1534 = vmul.f32 %v1514, %v1526
    %v1535 = vmul.f32 %v1488, %v1249
    %v1536 = vmul.f32 %v1490, %v1250
    %v1537 = vmul.f32 %v1492, %v1251
    %v1538 = vmul.f32 %v1494, %v1252
    %v1539 = vadd.f32 %v1531, %v1535
    %v1540 = vadd.f32 %v1532, %v1536
    %v1541 = vadd.f32 %v1533, %v1537
    %v1542 = vadd.f32 %v1534, %v1538
    %1543 = vrot.lane.b32.xlu0 %v67, 48
    %v1544 = vpop.permute.xlu0 %1543
    %1545 = vrot.lane.b32.xlu0 %v68, 48
    %v1546 = vpop.permute.xlu0 %1545
    %1547 = vrot.lane.b32.xlu0 %v69, 48
    %v1548 = vpop.permute.xlu0 %1547
    %1549 = vrot.lane.b32.xlu0 %v70, 48
    %v1550 = vpop.permute.xlu0 %1549
    %v1551 = vsel %vm75, %v1544, 0
    %v1553 = vsel %vm75, %v1546, 0
    %v1555 = vsel %vm75, %v1548, 0
    %v1557 = vsel %vm75, %v1550, 0
    %1559 = vmatprep.subr.mxu0 %v72
    %1560 = vmatpush1.msra.mxu0 %v71
    %1561 = vmatprep.subr.mxu0 %v74
    %1562 = vmatpush1.msra.mxu0 %v73
    %1563 = vmatprep.subr.mxu0 0.0
    %1564 = vmatpush1.msra.mxu0 0.0
    %1565 = vmatprep.subr.mxu0 0.0
    %1566 = vmatpush1.msra.mxu0 0.0
    %1567 = vmatprep.subr.mxu0 0.0
    %1568 = vmatpush1.msra.mxu0 0.0
    %1569 = vmatprep.subr.mxu0 0.0
    %1570 = vmatpush1.msra.mxu0 0.0
    %1571 = vmatprep.subr.mxu0 0.0
    %1572 = vmatpush1.msra.mxu0 0.0
    %1573 = vmatprep.subr.mxu0 0.0
    %1574 = vmatpush1.msra.mxu0 0.0
    %1575 = vmatprep.subr.mxu0 0.0
    %1576 = vmatpush1.msra.mxu0 0.0
    %1577 = vmatprep.subr.mxu0 0.0
    %1578 = vmatpush1.msra.mxu0 0.0
    %1579 = vmatprep.subr.mxu0 0.0
    %1580 = vmatpush1.msra.mxu0 0.0
    %1581 = vmatprep.subr.mxu0 0.0
    %1582 = vmatpush1.msra.mxu0 0.0
    %1583 = vmatprep.subr.mxu0 0.0
    %1584 = vmatpush1.msra.mxu0 0.0
    %1585 = vmatprep.subr.mxu0 0.0
    %1586 = vmatpush1.msra.mxu0 0.0
    %1587 = vmatprep.subr.mxu0 0.0
    %1588 = vmatpush1.msra.mxu0 0.0
    %1589 = vmatprep.subr.mxu0 0.0
    %1590 = vmatpush1.msra.mxu0 0.0
    %1591 = vmatprep.subr.mxu0 0.0
    %1592 = vmatpush1.msra.mxu0 0.0
    %1593 = vmatprep.subr.mxu0 0.0
    %1594 = vmatpush1.msra.mxu0 0.0
    %1595 = vmatprep.subr.mxu0 0.0
    %1596 = vmatpush1.msra.mxu0 0.0
    %1597 = vmatprep.subr.mxu0 0.0
    %1598 = vmatpush1.msra.mxu0 0.0
    %1599 = vmatprep.subr.mxu0 0.0
    %1600 = vmatpush1.msra.mxu0 0.0
    %1601 = vmatprep.subr.mxu0 0.0
    %1602 = vmatpush1.msra.mxu0 0.0
    %1603 = vmatprep.subr.mxu0 0.0
    %1604 = vmatpush1.msra.mxu0 0.0
    %1605 = vmatprep.subr.mxu0 0.0
    %1606 = vmatpush1.msra.mxu0 0.0
    %1607 = vmatprep.subr.mxu0 0.0
    %1608 = vmatpush1.msra.mxu0 0.0
    %1609 = vmatprep.subr.mxu0 0.0
    %1610 = vmatpush1.msra.mxu0 0.0
    %1611 = vmatprep.subr.mxu0 0.0
    %1612 = vmatpush1.msra.mxu0 0.0
    %1613 = vmatprep.subr.mxu0 0.0
    %1614 = vmatpush1.msra.mxu0 0.0
    %1615 = vmatprep.subr.mxu0 0.0
    %1616 = vmatpush1.msra.mxu0 0.0
    %1617 = vmatprep.subr.mxu0 0.0
    %1618 = vmatpush1.msra.mxu0 0.0
    %1619 = vmatprep.subr.mxu0 0.0
    %1620 = vmatpush1.msra.mxu0 0.0
    %1621 = vmatprep.subr.mxu0 0.0
    %1622 = vmatpush1.msra.mxu0 0.0
    %1623 = vmatprep.mubr.f32.mxu0 0.0
    %1624 = vmatmul.mubr.f32.gmra.mrb[0].mxu0 %v1551
    %v1625 = vpop.f32.mrb[0].mxu0
    %v1626 = vadd.f32 %v51, %v1625
    %v1627 = vpop.f32.mrb[0].mxu0
    %v1628 = vadd.f32 %v55, %v1627
    %1629 = vmatprep.mubr.f32.mxu0 0.0
    %1630 = vmatmul.mubr.f32.gmra.mrb[0].mxu0 %v1553
    %v1631 = vpop.f32.mrb[0].mxu0
    %v1632 = vadd.f32 %v51, %v1631
    %v1633 = vpop.f32.mrb[0].mxu0
    %v1634 = vadd.f32 %v55, %v1633
    %1635 = vmatprep.mubr.f32.mxu0 0.0
    %1636 = vmatmul.mubr.f32.gmra.mrb[0].mxu0 %v1555
    %v1637 = vpop.f32.mrb[0].mxu0
    %v1638 = vadd.f32 %v51, %v1637
    %v1639 = vpop.f32.mrb[0].mxu0
    %v1640 = vadd.f32 %v55, %v1639
    %1641 = vmatprep.mubr.f32.mxu0 0.0
    %1642 = vmatmul.mubr.f32.gmra.mrb[0].mxu0 %v1557
    %v1643 = vpop.f32.mrb[0].mxu0
    %v1644 = vadd.f32 %v51, %v1643
    %v1645 = vpop.f32.mrb[0].mxu0
    %v1646 = vadd.f32 %v55, %v1645
    %1647 = vdwg.mxu0
    %1652 = vrot.lane.b32.xlu0 %v1539, 64
    %v1653 = vpop.permute.xlu0 %1652
    %1654 = vrot.lane.b32.xlu0 %v1540, 64
    %v1655 = vpop.permute.xlu0 %1654
    %1656 = vrot.lane.b32.xlu0 %v1541, 64
    %v1657 = vpop.permute.xlu0 %1656
    %1658 = vrot.lane.b32.xlu0 %v1542, 64
    %v1659 = vpop.permute.xlu0 %1658
    %v1660 = vsel %vm193, %v1653, 0
    %v1662 = vsel %vm193, %v1655, 0
    %v1664 = vsel %vm193, %v1657, 0
    %v1666 = vsel %vm193, %v1659, 0
    %1668 = vmatprep.subr.mxu0 %v178
    %1669 = vmatpush1.msra.mxu0 %v177
    %1670 = vmatprep.subr.mxu0 %v180
    %1671 = vmatpush1.msra.mxu0 %v179
    %1672 = vmatprep.subr.mxu0 %v182
    %1673 = vmatpush1.msra.mxu0 %v181
    %1674 = vmatprep.subr.mxu0 %v184
    %1675 = vmatpush1.msra.mxu0 %v183
    %1676 = vmatprep.subr.mxu0 %v186
    %1677 = vmatpush1.msra.mxu0 %v185
    %1678 = vmatprep.subr.mxu0 %v188
    %1679 = vmatpush1.msra.mxu0 %v187
    %1680 = vmatprep.subr.mxu0 %v190
    %1681 = vmatpush1.msra.mxu0 %v189
    %1682 = vmatprep.subr.mxu0 %v192
    %1683 = vmatpush1.msra.mxu0 %v191
    %1684 = vmatprep.subr.mxu0 0.0
    %1685 = vmatpush1.msra.mxu0 0.0
    %1686 = vmatprep.subr.mxu0 0.0
    %1687 = vmatpush1.msra.mxu0 0.0
    %1688 = vmatprep.subr.mxu0 0.0
    %1689 = vmatpush1.msra.mxu0 0.0
    %1690 = vmatprep.subr.mxu0 0.0
    %1691 = vmatpush1.msra.mxu0 0.0
    %1692 = vmatprep.subr.mxu0 0.0
    %1693 = vmatpush1.msra.mxu0 0.0
    %1694 = vmatprep.subr.mxu0 0.0
    %1695 = vmatpush1.msra.mxu0 0.0
    %1696 = vmatprep.subr.mxu0 0.0
    %1697 = vmatpush1.msra.mxu0 0.0
    %1698 = vmatprep.subr.mxu0 0.0
    %1699 = vmatpush1.msra.mxu0 0.0
    %1700 = vmatprep.subr.mxu0 0.0
    %1701 = vmatpush1.msra.mxu0 0.0
    %1702 = vmatprep.subr.mxu0 0.0
    %1703 = vmatpush1.msra.mxu0 0.0
    %1704 = vmatprep.subr.mxu0 0.0
    %1705 = vmatpush1.msra.mxu0 0.0
    %1706 = vmatprep.subr.mxu0 0.0
    %1707 = vmatpush1.msra.mxu0 0.0
    %1708 = vmatprep.subr.mxu0 0.0
    %1709 = vmatpush1.msra.mxu0 0.0
    %1710 = vmatprep.subr.mxu0 0.0
    %1711 = vmatpush1.msra.mxu0 0.0
    %1712 = vmatprep.subr.mxu0 0.0
    %1713 = vmatpush1.msra.mxu0 0.0
    %1714 = vmatprep.subr.mxu0 0.0
    %1715 = vmatpush1.msra.mxu0 0.0
    %1716 = vmatprep.subr.mxu0 0.0
    %1717 = vmatpush1.msra.mxu0 0.0
    %1718 = vmatprep.subr.mxu0 0.0
    %1719 = vmatpush1.msra.mxu0 0.0
    %1720 = vmatprep.subr.mxu0 0.0
    %1721 = vmatpush1.msra.mxu0 0.0
    %1722 = vmatprep.subr.mxu0 0.0
    %1723 = vmatpush1.msra.mxu0 0.0
    %1724 = vmatprep.subr.mxu0 0.0
    %1725 = vmatpush1.msra.mxu0 0.0
    %1726 = vmatprep.subr.mxu0 0.0
    %1727 = vmatpush1.msra.mxu0 0.0
    %1728 = vmatprep.subr.mxu0 0.0
    %1729 = vmatpush1.msra.mxu0 0.0
    %1730 = vmatprep.subr.mxu0 0.0
    %1731 = vmatpush1.msra.mxu0 0.0
    %1732 = vmatprep.mubr.f32.mxu0 0.0
    %1733 = vmatmul.mubr.f32.gmra.mrb[0].mxu0 %v1660
    %v1734 = vpop.f32.mrb[0].mxu0
    %v1735 = vadd.f32 0.0, %v1734
    %v1736 = vpop.f32.mrb[0].mxu0
    %v1737 = vadd.f32 0.0, %v1736
    %1738 = vmatprep.mubr.f32.mxu0 0.0
    %1739 = vmatmul.mubr.f32.gmra.mrb[0].mxu0 %v1662
    %v1740 = vpop.f32.mrb[0].mxu0
    %v1741 = vadd.f32 0.0, %v1740
    %v1742 = vpop.f32.mrb[0].mxu0
    %v1743 = vadd.f32 0.0, %v1742
    %1744 = vmatprep.mubr.f32.mxu0 0.0
    %1745 = vmatmul.mubr.f32.gmra.mrb[0].mxu0 %v1664
    %v1746 = vpop.f32.mrb[0].mxu0
    %v1747 = vadd.f32 0.0, %v1746
    %v1748 = vpop.f32.mrb[0].mxu0
    %v1749 = vadd.f32 0.0, %v1748
    %1750 = vmatprep.mubr.f32.mxu0 0.0
    %1751 = vmatmul.mubr.f32.gmra.mrb[0].mxu0 %v1666
    %v1752 = vpop.f32.mrb[0].mxu0
    %v1753 = vadd.f32 0.0, %v1752
    %v1754 = vpop.f32.mrb[0].mxu0
    %v1755 = vadd.f32 0.0, %v1754
    %1756 = vdwg.mxu0
    %v1757 = vadd.f32 %v1626, %v1735
    %v1758 = vadd.f32 %v1632, %v1741
    %v1759 = vadd.f32 %v1638, %v1747
    %v1760 = vadd.f32 %v1644, %v1753
    %v1761 = vxor.u32 %v1757, 2147483648
    %v1762 = vxor.u32 %v1758, 2147483648
    %v1763 = vxor.u32 %v1759, 2147483648
    %v1764 = vxor.u32 %v1760, 2147483648
    %v1765 = vmul.f32 %v1761, 1.442695
    %v1766 = vpow.pop %v1765
    %v1767 = vmul.f32 %v1762, 1.442695
    %v1768 = vpow.pop %v1767
    %v1769 = vmul.f32 %v1763, 1.442695
    %v1770 = vpow.pop %v1769
    %v1771 = vmul.f32 %v1764, 1.442695
    %v1772 = vpow.pop %v1771
    %v1773 = vadd.f32 %v1766, 1.0
    %v1774 = vadd.f32 %v1768, 1.0
    %v1775 = vadd.f32 %v1770, 1.0
    %v1776 = vadd.f32 %v1772, 1.0
    %v1777 = vrcp.pop %v1773
    %v1778 = vmul.f32 1.0, %v1777
    %v1779 = vrcp.pop %v1774
    %v1780 = vmul.f32 1.0, %v1779
    %v1781 = vrcp.pop %v1775
    %v1782 = vmul.f32 1.0, %v1781
    %v1783 = vrcp.pop %v1776
    %v1784 = vmul.f32 1.0, %v1783
    %v1785 = vadd.f32 %v1737, %v62
    %v1786 = vadd.f32 %v1743, %v62
    %v1787 = vadd.f32 %v1749, %v62
    %v1788 = vadd.f32 %v1755, %v62
    %v1789 = vmul.f32 %v1778, %v1785
    %v1790 = vmul.f32 %v1780, %v1786
    %v1791 = vmul.f32 %v1782, %v1787
    %v1792 = vmul.f32 %v1784, %v1788
    %v1793 = vadd.f32 %v1628, %v1789
    %v1794 = vadd.f32 %v1634, %v1790
    %v1795 = vadd.f32 %v1640, %v1791
    %v1796 = vadd.f32 %v1646, %v1792
    %v1797 = vtanh.pop %v1793
    %v1798 = vtanh.pop %v1794
    %v1799 = vtanh.pop %v1795
    %v1800 = vtanh.pop %v1796
    %v1801 = vsub.f32 1.0, %v1778
    %v1802 = vsub.f32 1.0, %v1780
    %v1803 = vsub.f32 1.0, %v1782
    %v1804 = vsub.f32 1.0, %v1784
    %1809 = vrot.lane.b32.xlu0 %v1797, 64
    %v1810 = vpop.permute.xlu0 %1809
    %1811 = vrot.lane.b32.xlu0 %v1798, 64
    %v1812 = vpop.permute.xlu0 %1811
    %1813 = vrot.lane.b32.xlu0 %v1799, 64
    %v1814 = vpop.permute.xlu0 %1813
    %1815 = vrot.lane.b32.xlu0 %v1800, 64
    %v1816 = vpop.permute.xlu0 %1815
    %v1821 = vmul.f32 %v1801, %v1810
    %v1822 = vmul.f32 %v1802, %v1812
    %v1823 = vmul.f32 %v1803, %v1814
    %v1824 = vmul.f32 %v1804, %v1816
    %v1825 = vmul.f32 %v1778, %v1539
    %v1826 = vmul.f32 %v1780, %v1540
    %v1827 = vmul.f32 %v1782, %v1541
    %v1828 = vmul.f32 %v1784, %v1542
    %v1829 = vadd.f32 %v1821, %v1825
    %v1830 = vadd.f32 %v1822, %v1826
    %v1831 = vadd.f32 %v1823, %v1827
    %v1832 = vadd.f32 %v1824, %v1828
    %1833 = vrot.lane.b32.xlu0 %v67, 32
    %v1834 = vpop.permute.xlu0 %1833
    %1835 = vrot.lane.b32.xlu0 %v68, 32
    %v1836 = vpop.permute.xlu0 %1835
    %1837 = vrot.lane.b32.xlu0 %v69, 32
    %v1838 = vpop.permute.xlu0 %1837
    %1839 = vrot.lane.b32.xlu0 %v70, 32
    %v1840 = vpop.permute.xlu0 %1839
    %v1841 = vsel %vm75, %v1834, 0
    %v1843 = vsel %vm75, %v1836, 0
    %v1845 = vsel %vm75, %v1838, 0
    %v1847 = vsel %vm75, %v1840, 0
    %1849 = vmatprep.subr.mxu0 %v72
    %1850 = vmatpush1.msra.mxu0 %v71
    %1851 = vmatprep.subr.mxu0 %v74
    %1852 = vmatpush1.msra.mxu0 %v73
    %1853 = vmatprep.subr.mxu0 0.0
    %1854 = vmatpush1.msra.mxu0 0.0
    %1855 = vmatprep.subr.mxu0 0.0
    %1856 = vmatpush1.msra.mxu0 0.0
    %1857 = vmatprep.subr.mxu0 0.0
    %1858 = vmatpush1.msra.mxu0 0.0
    %1859 = vmatprep.subr.mxu0 0.0
    %1860 = vmatpush1.msra.mxu0 0.0
    %1861 = vmatprep.subr.mxu0 0.0
    %1862 = vmatpush1.msra.mxu0 0.0
    %1863 = vmatprep.subr.mxu0 0.0
    %1864 = vmatpush1.msra.mxu0 0.0
    %1865 = vmatprep.subr.mxu0 0.0
    %1866 = vmatpush1.msra.mxu0 0.0
    %1867 = vmatprep.subr.mxu0 0.0
    %1868 = vmatpush1.msra.mxu0 0.0
    %1869 = vmatprep.subr.mxu0 0.0
    %1870 = vmatpush1.msra.mxu0 0.0
    %1871 = vmatprep.subr.mxu0 0.0
    %1872 = vmatpush1.msra.mxu0 0.0
    %1873 = vmatprep.subr.mxu0 0.0
    %1874 = vmatpush1.msra.mxu0 0.0
    %1875 = vmatprep.subr.mxu0 0.0
    %1876 = vmatpush1.msra.mxu0 0.0
    %1877 = vmatprep.subr.mxu0 0.0
    %1878 = vmatpush1.msra.mxu0 0.0
    %1879 = vmatprep.subr.mxu0 0.0
    %1880 = vmatpush1.msra.mxu0 0.0
    %1881 = vmatprep.subr.mxu0 0.0
    %1882 = vmatpush1.msra.mxu0 0.0
    %1883 = vmatprep.subr.mxu0 0.0
    %1884 = vmatpush1.msra.mxu0 0.0
    %1885 = vmatprep.subr.mxu0 0.0
    %1886 = vmatpush1.msra.mxu0 0.0
    %1887 = vmatprep.subr.mxu0 0.0
    %1888 = vmatpush1.msra.mxu0 0.0
    %1889 = vmatprep.subr.mxu0 0.0
    %1890 = vmatpush1.msra.mxu0 0.0
    %1891 = vmatprep.subr.mxu0 0.0
    %1892 = vmatpush1.msra.mxu0 0.0
    %1893 = vmatprep.subr.mxu0 0.0
    %1894 = vmatpush1.msra.mxu0 0.0
    %1895 = vmatprep.subr.mxu0 0.0
    %1896 = vmatpush1.msra.mxu0 0.0
    %1897 = vmatprep.subr.mxu0 0.0
    %1898 = vmatpush1.msra.mxu0 0.0
    %1899 = vmatprep.subr.mxu0 0.0
    %1900 = vmatpush1.msra.mxu0 0.0
    %1901 = vmatprep.subr.mxu0 0.0
    %1902 = vmatpush1.msra.mxu0 0.0
    %1903 = vmatprep.subr.mxu0 0.0
    %1904 = vmatpush1.msra.mxu0 0.0
    %1905 = vmatprep.subr.mxu0 0.0
    %1906 = vmatpush1.msra.mxu0 0.0
    %1907 = vmatprep.subr.mxu0 0.0
    %1908 = vmatpush1.msra.mxu0 0.0
    %1909 = vmatprep.subr.mxu0 0.0
    %1910 = vmatpush1.msra.mxu0 0.0
    %1911 = vmatprep.subr.mxu0 0.0
    %1912 = vmatpush1.msra.mxu0 0.0
    %1913 = vmatprep.mubr.f32.mxu0 0.0
    %1914 = vmatmul.mubr.f32.gmra.mrb[0].mxu0 %v1841
    %v1915 = vpop.f32.mrb[0].mxu0
    %v1916 = vadd.f32 %v51, %v1915
    %v1917 = vpop.f32.mrb[0].mxu0
    %v1918 = vadd.f32 %v55, %v1917
    %1919 = vmatprep.mubr.f32.mxu0 0.0
    %1920 = vmatmul.mubr.f32.gmra.mrb[0].mxu0 %v1843
    %v1921 = vpop.f32.mrb[0].mxu0
    %v1922 = vadd.f32 %v51, %v1921
    %v1923 = vpop.f32.mrb[0].mxu0
    %v1924 = vadd.f32 %v55, %v1923
    %1925 = vmatprep.mubr.f32.mxu0 0.0
    %1926 = vmatmul.mubr.f32.gmra.mrb[0].mxu0 %v1845
    %v1927 = vpop.f32.mrb[0].mxu0
    %v1928 = vadd.f32 %v51, %v1927
    %v1929 = vpop.f32.mrb[0].mxu0
    %v1930 = vadd.f32 %v55, %v1929
    %1931 = vmatprep.mubr.f32.mxu0 0.0
    %1932 = vmatmul.mubr.f32.gmra.mrb[0].mxu0 %v1847
    %v1933 = vpop.f32.mrb[0].mxu0
    %v1934 = vadd.f32 %v51, %v1933
    %v1935 = vpop.f32.mrb[0].mxu0
    %v1936 = vadd.f32 %v55, %v1935
    %1937 = vdwg.mxu0
    %1942 = vrot.lane.b32.xlu0 %v1829, 64
    %v1943 = vpop.permute.xlu0 %1942
    %1944 = vrot.lane.b32.xlu0 %v1830, 64
    %v1945 = vpop.permute.xlu0 %1944
    %1946 = vrot.lane.b32.xlu0 %v1831, 64
    %v1947 = vpop.permute.xlu0 %1946
    %1948 = vrot.lane.b32.xlu0 %v1832, 64
    %v1949 = vpop.permute.xlu0 %1948
    %v1950 = vsel %vm193, %v1943, 0
    %v1952 = vsel %vm193, %v1945, 0
    %v1954 = vsel %vm193, %v1947, 0
    %v1956 = vsel %vm193, %v1949, 0
    %1958 = vmatprep.subr.mxu0 %v178
    %1959 = vmatpush1.msra.mxu0 %v177
    %1960 = vmatprep.subr.mxu0 %v180
    %1961 = vmatpush1.msra.mxu0 %v179
    %1962 = vmatprep.subr.mxu0 %v182
    %1963 = vmatpush1.msra.mxu0 %v181
    %1964 = vmatprep.subr.mxu0 %v184
    %1965 = vmatpush1.msra.mxu0 %v183
    %1966 = vmatprep.subr.mxu0 %v186
    %1967 = vmatpush1.msra.mxu0 %v185
    %1968 = vmatprep.subr.mxu0 %v188
    %1969 = vmatpush1.msra.mxu0 %v187
    %1970 = vmatprep.subr.mxu0 %v190
    %1971 = vmatpush1.msra.mxu0 %v189
    %1972 = vmatprep.subr.mxu0 %v192
    %1973 = vmatpush1.msra.mxu0 %v191
    %1974 = vmatprep.subr.mxu0 0.0
    %1975 = vmatpush1.msra.mxu0 0.0
    %1976 = vmatprep.subr.mxu0 0.0
    %1977 = vmatpush1.msra.mxu0 0.0
    %1978 = vmatprep.subr.mxu0 0.0
    %1979 = vmatpush1.msra.mxu0 0.0
    %1980 = vmatprep.subr.mxu0 0.0
    %1981 = vmatpush1.msra.mxu0 0.0
    %1982 = vmatprep.subr.mxu0 0.0
    %1983 = vmatpush1.msra.mxu0 0.0
    %1984 = vmatprep.subr.mxu0 0.0
    %1985 = vmatpush1.msra.mxu0 0.0
    %1986 = vmatprep.subr.mxu0 0.0
    %1987 = vmatpush1.msra.mxu0 0.0
    %1988 = vmatprep.subr.mxu0 0.0
    %1989 = vmatpush1.msra.mxu0 0.0
    %1990 = vmatprep.subr.mxu0 0.0
    %1991 = vmatpush1.msra.mxu0 0.0
    %1992 = vmatprep.subr.mxu0 0.0
    %1993 = vmatpush1.msra.mxu0 0.0
    %1994 = vmatprep.subr.mxu0 0.0
    %1995 = vmatpush1.msra.mxu0 0.0
    %1996 = vmatprep.subr.mxu0 0.0
    %1997 = vmatpush1.msra.mxu0 0.0
    %1998 = vmatprep.subr.mxu0 0.0
    %1999 = vmatpush1.msra.mxu0 0.0
    %2000 = vmatprep.subr.mxu0 0.0
    %2001 = vmatpush1.msra.mxu0 0.0
    %2002 = vmatprep.subr.mxu0 0.0
    %2003 = vmatpush1.msra.mxu0 0.0
    %2004 = vmatprep.subr.mxu0 0.0
    %2005 = vmatpush1.msra.mxu0 0.0
    %2006 = vmatprep.subr.mxu0 0.0
    %2007 = vmatpush1.msra.mxu0 0.0
    %2008 = vmatprep.subr.mxu0 0.0
    %2009 = vmatpush1.msra.mxu0 0.0
    %2010 = vmatprep.subr.mxu0 0.0
    %2011 = vmatpush1.msra.mxu0 0.0
    %2012 = vmatprep.subr.mxu0 0.0
    %2013 = vmatpush1.msra.mxu0 0.0
    %2014 = vmatprep.subr.mxu0 0.0
    %2015 = vmatpush1.msra.mxu0 0.0
    %2016 = vmatprep.subr.mxu0 0.0
    %2017 = vmatpush1.msra.mxu0 0.0
    %2018 = vmatprep.subr.mxu0 0.0
    %2019 = vmatpush1.msra.mxu0 0.0
    %2020 = vmatprep.subr.mxu0 0.0
    %2021 = vmatpush1.msra.mxu0 0.0
    %2022 = vmatprep.mubr.f32.mxu0 0.0
    %2023 = vmatmul.mubr.f32.gmra.mrb[0].mxu0 %v1950
    %v2024 = vpop.f32.mrb[0].mxu0
    %v2025 = vadd.f32 0.0, %v2024
    %v2026 = vpop.f32.mrb[0].mxu0
    %v2027 = vadd.f32 0.0, %v2026
    %2028 = vmatprep.mubr.f32.mxu0 0.0
    %2029 = vmatmul.mubr.f32.gmra.mrb[0].mxu0 %v1952
    %v2030 = vpop.f32.mrb[0].mxu0
    %v2031 = vadd.f32 0.0, %v2030
    %v2032 = vpop.f32.mrb[0].mxu0
    %v2033 = vadd.f32 0.0, %v2032
    %2034 = vmatprep.mubr.f32.mxu0 0.0
    %2035 = vmatmul.mubr.f32.gmra.mrb[0].mxu0 %v1954
    %v2036 = vpop.f32.mrb[0].mxu0
    %v2037 = vadd.f32 0.0, %v2036
    %v2038 = vpop.f32.mrb[0].mxu0
    %v2039 = vadd.f32 0.0, %v2038
    %2040 = vmatprep.mubr.f32.mxu0 0.0
    %2041 = vmatmul.mubr.f32.gmra.mrb[0].mxu0 %v1956
    %v2042 = vpop.f32.mrb[0].mxu0
    %v2043 = vadd.f32 0.0, %v2042
    %v2044 = vpop.f32.mrb[0].mxu0
    %v2045 = vadd.f32 0.0, %v2044
    %2046 = vdwg.mxu0
    %v2047 = vadd.f32 %v1916, %v2025
    %v2048 = vadd.f32 %v1922, %v2031
    %v2049 = vadd.f32 %v1928, %v2037
    %v2050 = vadd.f32 %v1934, %v2043
    %v2051 = vxor.u32 %v2047, 2147483648
    %v2052 = vxor.u32 %v2048, 2147483648
    %v2053 = vxor.u32 %v2049, 2147483648
    %v2054 = vxor.u32 %v2050, 2147483648
    %v2055 = vmul.f32 %v2051, 1.442695
    %v2056 = vpow.pop %v2055
    %v2057 = vmul.f32 %v2052, 1.442695
    %v2058 = vpow.pop %v2057
    %v2059 = vmul.f32 %v2053, 1.442695
    %v2060 = vpow.pop %v2059
    %v2061 = vmul.f32 %v2054, 1.442695
    %v2062 = vpow.pop %v2061
    %v2063 = vadd.f32 %v2056, 1.0
    %v2064 = vadd.f32 %v2058, 1.0
    %v2065 = vadd.f32 %v2060, 1.0
    %v2066 = vadd.f32 %v2062, 1.0
    %v2067 = vrcp.pop %v2063
    %v2068 = vmul.f32 1.0, %v2067
    %v2069 = vrcp.pop %v2064
    %v2070 = vmul.f32 1.0, %v2069
    %v2071 = vrcp.pop %v2065
    %v2072 = vmul.f32 1.0, %v2071
    %v2073 = vrcp.pop %v2066
    %v2074 = vmul.f32 1.0, %v2073
    %v2075 = vadd.f32 %v2027, %v62
    %v2076 = vadd.f32 %v2033, %v62
    %v2077 = vadd.f32 %v2039, %v62
    %v2078 = vadd.f32 %v2045, %v62
    %v2079 = vmul.f32 %v2068, %v2075
    %v2080 = vmul.f32 %v2070, %v2076
    %v2081 = vmul.f32 %v2072, %v2077
    %v2082 = vmul.f32 %v2074, %v2078
    %v2083 = vadd.f32 %v1918, %v2079
    %v2084 = vadd.f32 %v1924, %v2080
    %v2085 = vadd.f32 %v1930, %v2081
    %v2086 = vadd.f32 %v1936, %v2082
    %v2087 = vtanh.pop %v2083
    %v2088 = vtanh.pop %v2084
    %v2089 = vtanh.pop %v2085
    %v2090 = vtanh.pop %v2086
    %v2091 = vsub.f32 1.0, %v2068
    %v2092 = vsub.f32 1.0, %v2070
    %v2093 = vsub.f32 1.0, %v2072
    %v2094 = vsub.f32 1.0, %v2074
    %2099 = vrot.lane.b32.xlu0 %v2087, 64
    %v2100 = vpop.permute.xlu0 %2099
    %2101 = vrot.lane.b32.xlu0 %v2088, 64
    %v2102 = vpop.permute.xlu0 %2101
    %2103 = vrot.lane.b32.xlu0 %v2089, 64
    %v2104 = vpop.permute.xlu0 %2103
    %2105 = vrot.lane.b32.xlu0 %v2090, 64
    %v2106 = vpop.permute.xlu0 %2105
    %v2111 = vmul.f32 %v2091, %v2100
    %v2112 = vmul.f32 %v2092, %v2102
    %v2113 = vmul.f32 %v2093, %v2104
    %v2114 = vmul.f32 %v2094, %v2106
    %v2115 = vmul.f32 %v2068, %v1829
    %v2116 = vmul.f32 %v2070, %v1830
    %v2117 = vmul.f32 %v2072, %v1831
    %v2118 = vmul.f32 %v2074, %v1832
    %v2119 = vadd.f32 %v2111, %v2115
    %v2120 = vadd.f32 %v2112, %v2116
    %v2121 = vadd.f32 %v2113, %v2117
    %v2122 = vadd.f32 %v2114, %v2118
    %2123 = vrot.lane.b32.xlu0 %v67, 16
    %v2124 = vpop.permute.xlu0 %2123
    %2125 = vrot.lane.b32.xlu0 %v68, 16
    %v2126 = vpop.permute.xlu0 %2125
    %2127 = vrot.lane.b32.xlu0 %v69, 16
    %v2128 = vpop.permute.xlu0 %2127
    %2129 = vrot.lane.b32.xlu0 %v70, 16
    %v2130 = vpop.permute.xlu0 %2129
    %v2131 = vsel %vm75, %v2124, 0
    %v2133 = vsel %vm75, %v2126, 0
    %v2135 = vsel %vm75, %v2128, 0
    %v2137 = vsel %vm75, %v2130, 0
    %2139 = vmatprep.subr.mxu0 %v72
    %2140 = vmatpush1.msra.mxu0 %v71
    %2141 = vmatprep.subr.mxu0 %v74
    %2142 = vmatpush1.msra.mxu0 %v73
    %2143 = vmatprep.subr.mxu0 0.0
    %2144 = vmatpush1.msra.mxu0 0.0
    %2145 = vmatprep.subr.mxu0 0.0
    %2146 = vmatpush1.msra.mxu0 0.0
    %2147 = vmatprep.subr.mxu0 0.0
    %2148 = vmatpush1.msra.mxu0 0.0
    %2149 = vmatprep.subr.mxu0 0.0
    %2150 = vmatpush1.msra.mxu0 0.0
    %2151 = vmatprep.subr.mxu0 0.0
    %2152 = vmatpush1.msra.mxu0 0.0
    %2153 = vmatprep.subr.mxu0 0.0
    %2154 = vmatpush1.msra.mxu0 0.0
    %2155 = vmatprep.subr.mxu0 0.0
    %2156 = vmatpush1.msra.mxu0 0.0
    %2157 = vmatprep.subr.mxu0 0.0
    %2158 = vmatpush1.msra.mxu0 0.0
    %2159 = vmatprep.subr.mxu0 0.0
    %2160 = vmatpush1.msra.mxu0 0.0
    %2161 = vmatprep.subr.mxu0 0.0
    %2162 = vmatpush1.msra.mxu0 0.0
    %2163 = vmatprep.subr.mxu0 0.0
    %2164 = vmatpush1.msra.mxu0 0.0
    %2165 = vmatprep.subr.mxu0 0.0
    %2166 = vmatpush1.msra.mxu0 0.0
    %2167 = vmatprep.subr.mxu0 0.0
    %2168 = vmatpush1.msra.mxu0 0.0
    %2169 = vmatprep.subr.mxu0 0.0
    %2170 = vmatpush1.msra.mxu0 0.0
    %2171 = vmatprep.subr.mxu0 0.0
    %2172 = vmatpush1.msra.mxu0 0.0
    %2173 = vmatprep.subr.mxu0 0.0
    %2174 = vmatpush1.msra.mxu0 0.0
    %2175 = vmatprep.subr.mxu0 0.0
    %2176 = vmatpush1.msra.mxu0 0.0
    %2177 = vmatprep.subr.mxu0 0.0
    %2178 = vmatpush1.msra.mxu0 0.0
    %2179 = vmatprep.subr.mxu0 0.0
    %2180 = vmatpush1.msra.mxu0 0.0
    %2181 = vmatprep.subr.mxu0 0.0
    %2182 = vmatpush1.msra.mxu0 0.0
    %2183 = vmatprep.subr.mxu0 0.0
    %2184 = vmatpush1.msra.mxu0 0.0
    %2185 = vmatprep.subr.mxu0 0.0
    %2186 = vmatpush1.msra.mxu0 0.0
    %2187 = vmatprep.subr.mxu0 0.0
    %2188 = vmatpush1.msra.mxu0 0.0
    %2189 = vmatprep.subr.mxu0 0.0
    %2190 = vmatpush1.msra.mxu0 0.0
    %2191 = vmatprep.subr.mxu0 0.0
    %2192 = vmatpush1.msra.mxu0 0.0
    %2193 = vmatprep.subr.mxu0 0.0
    %2194 = vmatpush1.msra.mxu0 0.0
    %2195 = vmatprep.subr.mxu0 0.0
    %2196 = vmatpush1.msra.mxu0 0.0
    %2197 = vmatprep.subr.mxu0 0.0
    %2198 = vmatpush1.msra.mxu0 0.0
    %2199 = vmatprep.subr.mxu0 0.0
    %2200 = vmatpush1.msra.mxu0 0.0
    %2201 = vmatprep.subr.mxu0 0.0
    %2202 = vmatpush1.msra.mxu0 0.0
    %2203 = vmatprep.mubr.f32.mxu0 0.0
    %2204 = vmatmul.mubr.f32.gmra.mrb[0].mxu0 %v2131
    %v2205 = vpop.f32.mrb[0].mxu0
    %v2206 = vadd.f32 %v51, %v2205
    %v2207 = vpop.f32.mrb[0].mxu0
    %v2208 = vadd.f32 %v55, %v2207
    %2209 = vmatprep.mubr.f32.mxu0 0.0
    %2210 = vmatmul.mubr.f32.gmra.mrb[0].mxu0 %v2133
    %v2211 = vpop.f32.mrb[0].mxu0
    %v2212 = vadd.f32 %v51, %v2211
    %v2213 = vpop.f32.mrb[0].mxu0
    %v2214 = vadd.f32 %v55, %v2213
    %2215 = vmatprep.mubr.f32.mxu0 0.0
    %2216 = vmatmul.mubr.f32.gmra.mrb[0].mxu0 %v2135
    %v2217 = vpop.f32.mrb[0].mxu0
    %v2218 = vadd.f32 %v51, %v2217
    %v2219 = vpop.f32.mrb[0].mxu0
    %v2220 = vadd.f32 %v55, %v2219
    %2221 = vmatprep.mubr.f32.mxu0 0.0
    %2222 = vmatmul.mubr.f32.gmra.mrb[0].mxu0 %v2137
    %v2223 = vpop.f32.mrb[0].mxu0
    %v2224 = vadd.f32 %v51, %v2223
    %v2225 = vpop.f32.mrb[0].mxu0
    %v2226 = vadd.f32 %v55, %v2225
    %2227 = vdwg.mxu0
    %2232 = vrot.lane.b32.xlu0 %v2119, 64
    %v2233 = vpop.permute.xlu0 %2232
    %2234 = vrot.lane.b32.xlu0 %v2120, 64
    %v2235 = vpop.permute.xlu0 %2234
    %2236 = vrot.lane.b32.xlu0 %v2121, 64
    %v2237 = vpop.permute.xlu0 %2236
    %2238 = vrot.lane.b32.xlu0 %v2122, 64
    %v2239 = vpop.permute.xlu0 %2238
    %v2240 = vsel %vm193, %v2233, 0
    %v2242 = vsel %vm193, %v2235, 0
    %v2244 = vsel %vm193, %v2237, 0
    %v2246 = vsel %vm193, %v2239, 0
    %2248 = vmatprep.subr.mxu0 %v178
    %2249 = vmatpush1.msra.mxu0 %v177
    %2250 = vmatprep.subr.mxu0 %v180
    %2251 = vmatpush1.msra.mxu0 %v179
    %2252 = vmatprep.subr.mxu0 %v182
    %2253 = vmatpush1.msra.mxu0 %v181
    %2254 = vmatprep.subr.mxu0 %v184
    %2255 = vmatpush1.msra.mxu0 %v183
    %2256 = vmatprep.subr.mxu0 %v186
    %2257 = vmatpush1.msra.mxu0 %v185
    %2258 = vmatprep.subr.mxu0 %v188
    %2259 = vmatpush1.msra.mxu0 %v187
    %2260 = vmatprep.subr.mxu0 %v190
    %2261 = vmatpush1.msra.mxu0 %v189
    %2262 = vmatprep.subr.mxu0 %v192
    %2263 = vmatpush1.msra.mxu0 %v191
    %2264 = vmatprep.subr.mxu0 0.0
    %2265 = vmatpush1.msra.mxu0 0.0
    %2266 = vmatprep.subr.mxu0 0.0
    %2267 = vmatpush1.msra.mxu0 0.0
    %2268 = vmatprep.subr.mxu0 0.0
    %2269 = vmatpush1.msra.mxu0 0.0
    %2270 = vmatprep.subr.mxu0 0.0
    %2271 = vmatpush1.msra.mxu0 0.0
    %2272 = vmatprep.subr.mxu0 0.0
    %2273 = vmatpush1.msra.mxu0 0.0
    %2274 = vmatprep.subr.mxu0 0.0
    %2275 = vmatpush1.msra.mxu0 0.0
    %2276 = vmatprep.subr.mxu0 0.0
    %2277 = vmatpush1.msra.mxu0 0.0
    %2278 = vmatprep.subr.mxu0 0.0
    %2279 = vmatpush1.msra.mxu0 0.0
    %2280 = vmatprep.subr.mxu0 0.0
    %2281 = vmatpush1.msra.mxu0 0.0
    %2282 = vmatprep.subr.mxu0 0.0
    %2283 = vmatpush1.msra.mxu0 0.0
    %2284 = vmatprep.subr.mxu0 0.0
    %2285 = vmatpush1.msra.mxu0 0.0
    %2286 = vmatprep.subr.mxu0 0.0
    %2287 = vmatpush1.msra.mxu0 0.0
    %2288 = vmatprep.subr.mxu0 0.0
    %2289 = vmatpush1.msra.mxu0 0.0
    %2290 = vmatprep.subr.mxu0 0.0
    %2291 = vmatpush1.msra.mxu0 0.0
    %2292 = vmatprep.subr.mxu0 0.0
    %2293 = vmatpush1.msra.mxu0 0.0
    %2294 = vmatprep.subr.mxu0 0.0
    %2295 = vmatpush1.msra.mxu0 0.0
    %2296 = vmatprep.subr.mxu0 0.0
    %2297 = vmatpush1.msra.mxu0 0.0
    %2298 = vmatprep.subr.mxu0 0.0
    %2299 = vmatpush1.msra.mxu0 0.0
    %2300 = vmatprep.subr.mxu0 0.0
    %2301 = vmatpush1.msra.mxu0 0.0
    %2302 = vmatprep.subr.mxu0 0.0
    %2303 = vmatpush1.msra.mxu0 0.0
    %2304 = vmatprep.subr.mxu0 0.0
    %2305 = vmatpush1.msra.mxu0 0.0
    %2306 = vmatprep.subr.mxu0 0.0
    %2307 = vmatpush1.msra.mxu0 0.0
    %2308 = vmatprep.subr.mxu0 0.0
    %2309 = vmatpush1.msra.mxu0 0.0
    %2310 = vmatprep.subr.mxu0 0.0
    %2311 = vmatpush1.msra.mxu0 0.0
    %2312 = vmatprep.mubr.f32.mxu0 0.0
    %2313 = vmatmul.mubr.f32.gmra.mrb[0].mxu0 %v2240
    %v2314 = vpop.f32.mrb[0].mxu0
    %v2315 = vadd.f32 0.0, %v2314
    %v2316 = vpop.f32.mrb[0].mxu0
    %v2317 = vadd.f32 0.0, %v2316
    %2318 = vmatprep.mubr.f32.mxu0 0.0
    %2319 = vmatmul.mubr.f32.gmra.mrb[0].mxu0 %v2242
    %v2320 = vpop.f32.mrb[0].mxu0
    %v2321 = vadd.f32 0.0, %v2320
    %v2322 = vpop.f32.mrb[0].mxu0
    %v2323 = vadd.f32 0.0, %v2322
    %2324 = vmatprep.mubr.f32.mxu0 0.0
    %2325 = vmatmul.mubr.f32.gmra.mrb[0].mxu0 %v2244
    %v2326 = vpop.f32.mrb[0].mxu0
    %v2327 = vadd.f32 0.0, %v2326
    %v2328 = vpop.f32.mrb[0].mxu0
    %v2329 = vadd.f32 0.0, %v2328
    %2330 = vmatprep.mubr.f32.mxu0 0.0
    %2331 = vmatmul.mubr.f32.gmra.mrb[0].mxu0 %v2246
    %v2332 = vpop.f32.mrb[0].mxu0
    %v2333 = vadd.f32 0.0, %v2332
    %v2334 = vpop.f32.mrb[0].mxu0
    %v2335 = vadd.f32 0.0, %v2334
    %2336 = vdwg.mxu0
    %v2337 = vadd.f32 %v2206, %v2315
    %v2338 = vadd.f32 %v2212, %v2321
    %v2339 = vadd.f32 %v2218, %v2327
    %v2340 = vadd.f32 %v2224, %v2333
    %v2341 = vxor.u32 %v2337, 2147483648
    %v2342 = vxor.u32 %v2338, 2147483648
    %v2343 = vxor.u32 %v2339, 2147483648
    %v2344 = vxor.u32 %v2340, 2147483648
    %v2345 = vmul.f32 %v2341, 1.442695
    %v2346 = vpow.pop %v2345
    %v2347 = vmul.f32 %v2342, 1.442695
    %v2348 = vpow.pop %v2347
    %v2349 = vmul.f32 %v2343, 1.442695
    %v2350 = vpow.pop %v2349
    %v2351 = vmul.f32 %v2344, 1.442695
    %v2352 = vpow.pop %v2351
    %v2353 = vadd.f32 %v2346, 1.0
    %v2354 = vadd.f32 %v2348, 1.0
    %v2355 = vadd.f32 %v2350, 1.0
    %v2356 = vadd.f32 %v2352, 1.0
    %v2357 = vrcp.pop %v2353
    %v2358 = vmul.f32 1.0, %v2357
    %v2359 = vrcp.pop %v2354
    %v2360 = vmul.f32 1.0, %v2359
    %v2361 = vrcp.pop %v2355
    %v2362 = vmul.f32 1.0, %v2361
    %v2363 = vrcp.pop %v2356
    %v2364 = vmul.f32 1.0, %v2363
    %v2365 = vadd.f32 %v2317, %v62
    %v2366 = vadd.f32 %v2323, %v62
    %v2367 = vadd.f32 %v2329, %v62
    %v2368 = vadd.f32 %v2335, %v62
    %v2369 = vmul.f32 %v2358, %v2365
    %v2370 = vmul.f32 %v2360, %v2366
    %v2371 = vmul.f32 %v2362, %v2367
    %v2372 = vmul.f32 %v2364, %v2368
    %v2373 = vadd.f32 %v2208, %v2369
    %v2374 = vadd.f32 %v2214, %v2370
    %v2375 = vadd.f32 %v2220, %v2371
    %v2376 = vadd.f32 %v2226, %v2372
    %v2377 = vtanh.pop %v2373
    %v2378 = vtanh.pop %v2374
    %v2379 = vtanh.pop %v2375
    %v2380 = vtanh.pop %v2376
    %v2381 = vsub.f32 1.0, %v2358
    %v2382 = vsub.f32 1.0, %v2360
    %v2383 = vsub.f32 1.0, %v2362
    %v2384 = vsub.f32 1.0, %v2364
    %2389 = vrot.lane.b32.xlu0 %v2377, 64
    %v2390 = vpop.permute.xlu0 %2389
    %2391 = vrot.lane.b32.xlu0 %v2378, 64
    %v2392 = vpop.permute.xlu0 %2391
    %2393 = vrot.lane.b32.xlu0 %v2379, 64
    %v2394 = vpop.permute.xlu0 %2393
    %2395 = vrot.lane.b32.xlu0 %v2380, 64
    %v2396 = vpop.permute.xlu0 %2395
    %v2401 = vmul.f32 %v2381, %v2390
    %v2402 = vmul.f32 %v2382, %v2392
    %v2403 = vmul.f32 %v2383, %v2394
    %v2404 = vmul.f32 %v2384, %v2396
    %v2405 = vmul.f32 %v2358, %v2119
    %v2406 = vmul.f32 %v2360, %v2120
    %v2407 = vmul.f32 %v2362, %v2121
    %v2408 = vmul.f32 %v2364, %v2122
    %v2409 = vadd.f32 %v2401, %v2405
    %v2410 = vadd.f32 %v2402, %v2406
    %v2411 = vadd.f32 %v2403, %v2407
    %v2412 = vadd.f32 %v2404, %v2408
    %s2413 = scalar_lea.vmem [#allocation4], 2
    %v2414 = vld [vmem:[%s2413] ss:$4 sm:$0x3]
    %v2416 = vlaneseq
    %v2417 = vshrl.u32 %v2416, 7
    %v2418 = vsub.s32 0, %v2417
    %v2419 = vrot.slane %v2414, %v2418
    %v2420 = vlaneseq
    %v2421 = vshrl.u32 %v2420, 7
    %v2422 = vsub.s32 1, %v2421
    %v2423 = vrot.slane %v2414, %v2422
    %v2426 = vld [vmem:[#allocation4 + $0x3] sm:$0x1]
    %v2427 = vlaneseq
    %v2428 = vshrl.u32 %v2427, 7
    %v2429 = vsub.s32 0, %v2428
    %v2430 = vrot.slane %v2426, %v2429
    %v2431 = vld [vmem:[#allocation2 + $0x20] sm:$0xff]
    %v2432 = vld [vmem:[#allocation2 + $0x28] sm:$0xff]
    %v2433 = vld [vmem:[#allocation2 + $0x30] sm:$0xff]
    %v2434 = vld [vmem:[#allocation2 + $0x38] sm:$0xff]
    %v2435 = vld [vmem:[%s2 + $0xa0] sm:$0xff]
    %v2436 = vld [vmem:[%s2 + $0xa8] sm:$0xff]
    %v2437 = vld [vmem:[%s2 + $0xb0] sm:$0xff]
    %v2438 = vld [vmem:[%s2 + $0xb8] sm:$0xff]
    %2439 = vmatprep.subr.mxu0 %v2436
    %2440 = vmatpush1.msra.mxu0 %v2435
    %2441 = vmatprep.subr.mxu0 %v2438
    %2442 = vmatpush1.msra.mxu0 %v2437
    %2443 = vmatprep.subr.mxu0 0.0
    %2444 = vmatpush1.msra.mxu0 0.0
    %2445 = vmatprep.subr.mxu0 0.0
    %2446 = vmatpush1.msra.mxu0 0.0
    %2447 = vmatprep.subr.mxu0 0.0
    %2448 = vmatpush1.msra.mxu0 0.0
    %2449 = vmatprep.subr.mxu0 0.0
    %2450 = vmatpush1.msra.mxu0 0.0
    %2451 = vmatprep.subr.mxu0 0.0
    %2452 = vmatpush1.msra.mxu0 0.0
    %2453 = vmatprep.subr.mxu0 0.0
    %2454 = vmatpush1.msra.mxu0 0.0
    %2455 = vmatprep.subr.mxu0 0.0
    %2456 = vmatpush1.msra.mxu0 0.0
    %2457 = vmatprep.subr.mxu0 0.0
    %2458 = vmatpush1.msra.mxu0 0.0
    %2459 = vmatprep.subr.mxu0 0.0
    %2460 = vmatpush1.msra.mxu0 0.0
    %2461 = vmatprep.subr.mxu0 0.0
    %2462 = vmatpush1.msra.mxu0 0.0
    %2463 = vmatprep.subr.mxu0 0.0
    %2464 = vmatpush1.msra.mxu0 0.0
    %2465 = vmatprep.subr.mxu0 0.0
    %2466 = vmatpush1.msra.mxu0 0.0
    %2467 = vmatprep.subr.mxu0 0.0
    %2468 = vmatpush1.msra.mxu0 0.0
    %2469 = vmatprep.subr.mxu0 0.0
    %2470 = vmatpush1.msra.mxu0 0.0
    %2471 = vmatprep.subr.mxu0 0.0
    %2472 = vmatpush1.msra.mxu0 0.0
    %2473 = vmatprep.subr.mxu0 0.0
    %2474 = vmatpush1.msra.mxu0 0.0
    %2475 = vmatprep.subr.mxu0 0.0
    %2476 = vmatpush1.msra.mxu0 0.0
    %2477 = vmatprep.subr.mxu0 0.0
    %2478 = vmatpush1.msra.mxu0 0.0
    %2479 = vmatprep.subr.mxu0 0.0
    %2480 = vmatpush1.msra.mxu0 0.0
    %2481 = vmatprep.subr.mxu0 0.0
    %2482 = vmatpush1.msra.mxu0 0.0
    %2483 = vmatprep.subr.mxu0 0.0
    %2484 = vmatpush1.msra.mxu0 0.0
    %2485 = vmatprep.subr.mxu0 0.0
    %2486 = vmatpush1.msra.mxu0 0.0
    %2487 = vmatprep.subr.mxu0 0.0
    %2488 = vmatpush1.msra.mxu0 0.0
    %2489 = vmatprep.subr.mxu0 0.0
    %2490 = vmatpush1.msra.mxu0 0.0
    %2491 = vmatprep.subr.mxu0 0.0
    %2492 = vmatpush1.msra.mxu0 0.0
    %2493 = vmatprep.subr.mxu0 0.0
    %2494 = vmatpush1.msra.mxu0 0.0
    %2495 = vmatprep.subr.mxu0 0.0
    %2496 = vmatpush1.msra.mxu0 0.0
    %2497 = vmatprep.subr.mxu0 0.0
    %2498 = vmatpush1.msra.mxu0 0.0
    %2499 = vmatprep.subr.mxu0 0.0
    %2500 = vmatpush1.msra.mxu0 0.0
    %2501 = vmatprep.subr.mxu0 0.0
    %2502 = vmatpush1.msra.mxu0 0.0
    %2503 = vmatprep.mubr.f32.mxu0 0.0
    %2504 = vmatmul.mubr.f32.gmra.mrb[0].mxu0 %v2131
    %v2505 = vpop.f32.mrb[0].mxu0
    %v2506 = vadd.f32 %v2419, %v2505
    %v2507 = vpop.f32.mrb[0].mxu0
    %v2508 = vadd.f32 %v2423, %v2507
    %2509 = vmatprep.mubr.f32.mxu0 0.0
    %2510 = vmatmul.mubr.f32.gmra.mrb[0].mxu0 %v2133
    %v2511 = vpop.f32.mrb[0].mxu0
    %v2512 = vadd.f32 %v2419, %v2511
    %v2513 = vpop.f32.mrb[0].mxu0
    %v2514 = vadd.f32 %v2423, %v2513
    %2515 = vmatprep.mubr.f32.mxu0 0.0
    %2516 = vmatmul.mubr.f32.gmra.mrb[0].mxu0 %v2135
    %v2517 = vpop.f32.mrb[0].mxu0
    %v2518 = vadd.f32 %v2419, %v2517
    %v2519 = vpop.f32.mrb[0].mxu0
    %v2520 = vadd.f32 %v2423, %v2519
    %2521 = vmatprep.mubr.f32.mxu0 0.0
    %2522 = vmatmul.mubr.f32.gmra.mrb[0].mxu0 %v2137
    %v2523 = vpop.f32.mrb[0].mxu0
    %v2524 = vadd.f32 %v2419, %v2523
    %v2525 = vpop.f32.mrb[0].mxu0
    %v2526 = vadd.f32 %v2423, %v2525
    %2527 = vdwg.mxu0
    %v2528 = vld [vmem:[%s2 + $0xc0] sm:$0xff]
    %v2529 = vld [vmem:[%s2 + $0xc8] sm:$0xff]
    %v2530 = vld [vmem:[%s2 + $0xd0] sm:$0xff]
    %v2531 = vld [vmem:[%s2 + $0xd8] sm:$0xff]
    %v2532 = vld [vmem:[%s2 + $0xe0] sm:$0xff]
    %v2533 = vld [vmem:[%s2 + $0xe8] sm:$0xff]
    %v2534 = vld [vmem:[%s2 + $0xf0] sm:$0xff]
    %v2535 = vld [vmem:[%s2 + $0xf8] sm:$0xff]
    %v2536 = vld [vmem:[%s2 + $0x100] sm:$0xff]
    %v2537 = vld [vmem:[%s2 + $0x108] sm:$0xff]
    %v2538 = vld [vmem:[%s2 + $0x110] sm:$0xff]
    %v2539 = vld [vmem:[%s2 + $0x118] sm:$0xff]
    %v2540 = vld [vmem:[%s2 + $0x120] sm:$0xff]
    %v2541 = vld [vmem:[%s2 + $0x128] sm:$0xff]
    %v2542 = vld [vmem:[%s2 + $0x130] sm:$0xff]
    %v2543 = vld [vmem:[%s2 + $0x138] sm:$0xff]
    %v2545 = vsel %vm193, %v2431, 0
    %v2548 = vsel %vm193, %v2432, 0
    %v2551 = vsel %vm193, %v2433, 0
    %v2554 = vsel %vm193, %v2434, 0
    %2556 = vmatprep.subr.mxu0 %v2529
    %2557 = vmatpush1.msra.mxu0 %v2528
    %2558 = vmatprep.subr.mxu0 %v2531
    %2559 = vmatpush1.msra.mxu0 %v2530
    %2560 = vmatprep.subr.mxu0 %v2533
    %2561 = vmatpush1.msra.mxu0 %v2532
    %2562 = vmatprep.subr.mxu0 %v2535
    %2563 = vmatpush1.msra.mxu0 %v2534
    %2564 = vmatprep.subr.mxu0 %v2537
    %2565 = vmatpush1.msra.mxu0 %v2536
    %2566 = vmatprep.subr.mxu0 %v2539
    %2567 = vmatpush1.msra.mxu0 %v2538
    %2568 = vmatprep.subr.mxu0 %v2541
    %2569 = vmatpush1.msra.mxu0 %v2540
    %2570 = vmatprep.subr.mxu0 %v2543
    %2571 = vmatpush1.msra.mxu0 %v2542
    %2572 = vmatprep.subr.mxu0 0.0
    %2573 = vmatpush1.msra.mxu0 0.0
    %2574 = vmatprep.subr.mxu0 0.0
    %2575 = vmatpush1.msra.mxu0 0.0
    %2576 = vmatprep.subr.mxu0 0.0
    %2577 = vmatpush1.msra.mxu0 0.0
    %2578 = vmatprep.subr.mxu0 0.0
    %2579 = vmatpush1.msra.mxu0 0.0
    %2580 = vmatprep.subr.mxu0 0.0
    %2581 = vmatpush1.msra.mxu0 0.0
    %2582 = vmatprep.subr.mxu0 0.0
    %2583 = vmatpush1.msra.mxu0 0.0
    %2584 = vmatprep.subr.mxu0 0.0
    %2585 = vmatpush1.msra.mxu0 0.0
    %2586 = vmatprep.subr.mxu0 0.0
    %2587 = vmatpush1.msra.mxu0 0.0
    %2588 = vmatprep.subr.mxu0 0.0
    %2589 = vmatpush1.msra.mxu0 0.0
    %2590 = vmatprep.subr.mxu0 0.0
    %2591 = vmatpush1.msra.mxu0 0.0
    %2592 = vmatprep.subr.mxu0 0.0
    %2593 = vmatpush1.msra.mxu0 0.0
    %2594 = vmatprep.subr.mxu0 0.0
    %2595 = vmatpush1.msra.mxu0 0.0
    %2596 = vmatprep.subr.mxu0 0.0
    %2597 = vmatpush1.msra.mxu0 0.0
    %2598 = vmatprep.subr.mxu0 0.0
    %2599 = vmatpush1.msra.mxu0 0.0
    %2600 = vmatprep.subr.mxu0 0.0
    %2601 = vmatpush1.msra.mxu0 0.0
    %2602 = vmatprep.subr.mxu0 0.0
    %2603 = vmatpush1.msra.mxu0 0.0
    %2604 = vmatprep.subr.mxu0 0.0
    %2605 = vmatpush1.msra.mxu0 0.0
    %2606 = vmatprep.subr.mxu0 0.0
    %2607 = vmatpush1.msra.mxu0 0.0
    %2608 = vmatprep.subr.mxu0 0.0
    %2609 = vmatpush1.msra.mxu0 0.0
    %2610 = vmatprep.subr.mxu0 0.0
    %2611 = vmatpush1.msra.mxu0 0.0
    %2612 = vmatprep.subr.mxu0 0.0
    %2613 = vmatpush1.msra.mxu0 0.0
    %2614 = vmatprep.subr.mxu0 0.0
    %2615 = vmatpush1.msra.mxu0 0.0
    %2616 = vmatprep.subr.mxu0 0.0
    %2617 = vmatpush1.msra.mxu0 0.0
    %2618 = vmatprep.subr.mxu0 0.0
    %2619 = vmatpush1.msra.mxu0 0.0
    %2620 = vmatprep.mubr.f32.mxu0 0.0
    %2621 = vmatmul.mubr.f32.gmra.mrb[0].mxu0 %v2545
    %v2622 = vpop.f32.mrb[0].mxu0
    %v2623 = vadd.f32 0.0, %v2622
    %v2624 = vpop.f32.mrb[0].mxu0
    %v2625 = vadd.f32 0.0, %v2624
    %2626 = vmatprep.mubr.f32.mxu0 0.0
    %2627 = vmatmul.mubr.f32.gmra.mrb[0].mxu0 %v2548
    %v2628 = vpop.f32.mrb[0].mxu0
    %v2629 = vadd.f32 0.0, %v2628
    %v2630 = vpop.f32.mrb[0].mxu0
    %v2631 = vadd.f32 0.0, %v2630
    %2632 = vmatprep.mubr.f32.mxu0 0.0
    %2633 = vmatmul.mubr.f32.gmra.mrb[0].mxu0 %v2551
    %v2634 = vpop.f32.mrb[0].mxu0
    %v2635 = vadd.f32 0.0, %v2634
    %v2636 = vpop.f32.mrb[0].mxu0
    %v2637 = vadd.f32 0.0, %v2636
    %2638 = vmatprep.mubr.f32.mxu0 0.0
    %2639 = vmatmul.mubr.f32.gmra.mrb[0].mxu0 %v2554
    %v2640 = vpop.f32.mrb[0].mxu0
    %v2641 = vadd.f32 0.0, %v2640
    %v2642 = vpop.f32.mrb[0].mxu0
    %v2643 = vadd.f32 0.0, %v2642
    %2644 = vdwg.mxu0
    %v2645 = vadd.f32 %v2506, %v2623
    %v2646 = vadd.f32 %v2512, %v2629
    %v2647 = vadd.f32 %v2518, %v2635
    %v2648 = vadd.f32 %v2524, %v2641
    %v2649 = vxor.u32 %v2645, 2147483648
    %v2650 = vxor.u32 %v2646, 2147483648
    %v2651 = vxor.u32 %v2647, 2147483648
    %v2652 = vxor.u32 %v2648, 2147483648
    %v2653 = vmul.f32 %v2649, 1.442695
    %v2654 = vpow.pop %v2653
    %v2655 = vmul.f32 %v2650, 1.442695
    %v2656 = vpow.pop %v2655
    %v2657 = vmul.f32 %v2651, 1.442695
    %v2658 = vpow.pop %v2657
    %v2659 = vmul.f32 %v2652, 1.442695
    %v2660 = vpow.pop %v2659
    %v2661 = vadd.f32 %v2654, 1.0
    %v2662 = vadd.f32 %v2656, 1.0
    %v2663 = vadd.f32 %v2658, 1.0
    %v2664 = vadd.f32 %v2660, 1.0
    %v2665 = vrcp.pop %v2661
    %v2666 = vmul.f32 1.0, %v2665
    %v2667 = vrcp.pop %v2662
    %v2668 = vmul.f32 1.0, %v2667
    %v2669 = vrcp.pop %v2663
    %v2670 = vmul.f32 1.0, %v2669
    %v2671 = vrcp.pop %v2664
    %v2672 = vmul.f32 1.0, %v2671
    %v2673 = vadd.f32 %v2625, %v2430
    %v2674 = vadd.f32 %v2631, %v2430
    %v2675 = vadd.f32 %v2637, %v2430
    %v2676 = vadd.f32 %v2643, %v2430
    %v2677 = vmul.f32 %v2666, %v2673
    %v2678 = vmul.f32 %v2668, %v2674
    %v2679 = vmul.f32 %v2670, %v2675
    %v2680 = vmul.f32 %v2672, %v2676
    %v2681 = vadd.f32 %v2508, %v2677
    %v2682 = vadd.f32 %v2514, %v2678
    %v2683 = vadd.f32 %v2520, %v2679
    %v2684 = vadd.f32 %v2526, %v2680
    %v2685 = vtanh.pop %v2681
    %v2686 = vtanh.pop %v2682
    %v2687 = vtanh.pop %v2683
    %v2688 = vtanh.pop %v2684
    %v2689 = vsub.f32 1.0, %v2666
    %v2690 = vsub.f32 1.0, %v2668
    %v2691 = vsub.f32 1.0, %v2670
    %v2692 = vsub.f32 1.0, %v2672
    %2697 = vrot.lane.b32.xlu0 %v2685, 64
    %v2698 = vpop.permute.xlu0 %2697
    %2699 = vrot.lane.b32.xlu0 %v2686, 64
    %v2700 = vpop.permute.xlu0 %2699
    %2701 = vrot.lane.b32.xlu0 %v2687, 64
    %v2702 = vpop.permute.xlu0 %2701
    %2703 = vrot.lane.b32.xlu0 %v2688, 64
    %v2704 = vpop.permute.xlu0 %2703
    %v2709 = vmul.f32 %v2689, %v2698
    %v2710 = vmul.f32 %v2690, %v2700
    %v2711 = vmul.f32 %v2691, %v2702
    %v2712 = vmul.f32 %v2692, %v2704
    %2713 = vrot.lane.b32.xlu0 %v2431, 64
    %v2714 = vpop.permute.xlu0 %2713
    %2715 = vrot.lane.b32.xlu0 %v2432, 64
    %v2716 = vpop.permute.xlu0 %2715
    %2717 = vrot.lane.b32.xlu0 %v2433, 64
    %v2718 = vpop.permute.xlu0 %2717
    %2719 = vrot.lane.b32.xlu0 %v2434, 64
    %v2720 = vpop.permute.xlu0 %2719
    %v2725 = vmul.f32 %v2666, %v2714
    %v2726 = vmul.f32 %v2668, %v2716
    %v2727 = vmul.f32 %v2670, %v2718
    %v2728 = vmul.f32 %v2672, %v2720
    %v2729 = vadd.f32 %v2709, %v2725
    %v2730 = vadd.f32 %v2710, %v2726
    %v2731 = vadd.f32 %v2711, %v2727
    %v2732 = vadd.f32 %v2712, %v2728
    %v2733 = vld [vmem:[%s4] sm:$0xff]
    %v2734 = vld [vmem:[%s4 + $0x8] sm:$0xff]
    %v2735 = vld [vmem:[%s4 + $0x10] sm:$0xff]
    %v2736 = vld [vmem:[%s4 + $0x18] sm:$0xff]
    %v2737 = vld [vmem:[%s4 + $0x20] sm:$0xff]
    %v2738 = vld [vmem:[%s4 + $0x28] sm:$0xff]
    %v2739 = vld [vmem:[%s4 + $0x30] sm:$0xff]
    %v2740 = vld [vmem:[%s4 + $0x38] sm:$0xff]
    %v2741 = vld [vmem:[%s4 + $0x40] sm:$0xff]
    %v2742 = vld [vmem:[%s4 + $0x48] sm:$0xff]
    %v2743 = vld [vmem:[%s4 + $0x50] sm:$0xff]
    %v2744 = vld [vmem:[%s4 + $0x58] sm:$0xff]
    %v2745 = vld [vmem:[%s4 + $0x60] sm:$0xff]
    %v2746 = vld [vmem:[%s4 + $0x68] sm:$0xff]
    %v2747 = vld [vmem:[%s4 + $0x70] sm:$0xff]
    %v2748 = vld [vmem:[%s4 + $0x78] sm:$0xff]
    %2753 = vrot.lane.b32.xlu0 %v2729, 64
    %v2754 = vpop.permute.xlu0 %2753
    %2755 = vrot.lane.b32.xlu0 %v2730, 64
    %v2756 = vpop.permute.xlu0 %2755
    %2757 = vrot.lane.b32.xlu0 %v2731, 64
    %v2758 = vpop.permute.xlu0 %2757
    %2759 = vrot.lane.b32.xlu0 %v2732, 64
    %v2760 = vpop.permute.xlu0 %2759
    %v2761 = vsel %vm193, %v2754, 0
    %v2763 = vsel %vm193, %v2756, 0
    %v2765 = vsel %vm193, %v2758, 0
    %v2767 = vsel %vm193, %v2760, 0
    %2769 = vmatprep.subr.mxu0 0.0
    %2770 = vmatpush1.msra.mxu0 %v2741
    %2771 = vmatprep.subr.mxu0 0.0
    %2772 = vmatpush1.msra.mxu0 %v2742
    %2773 = vmatprep.subr.mxu0 0.0
    %2774 = vmatpush1.msra.mxu0 %v2743
    %2775 = vmatprep.subr.mxu0 0.0
    %2776 = vmatpush1.msra.mxu0 %v2744
    %2777 = vmatprep.subr.mxu0 0.0
    %2778 = vmatpush1.msra.mxu0 %v2745
    %2779 = vmatprep.subr.mxu0 0.0
    %2780 = vmatpush1.msra.mxu0 %v2746
    %2781 = vmatprep.subr.mxu0 0.0
    %2782 = vmatpush1.msra.mxu0 %v2747
    %2783 = vmatprep.subr.mxu0 0.0
    %2784 = vmatpush1.msra.mxu0 %v2748
    %2785 = vmatprep.subr.mxu0 0.0
    %2786 = vmatpush1.msra.mxu0 0.0
    %2787 = vmatprep.subr.mxu0 0.0
    %2788 = vmatpush1.msra.mxu0 0.0
    %2789 = vmatprep.subr.mxu0 0.0
    %2790 = vmatpush1.msra.mxu0 0.0
    %2791 = vmatprep.subr.mxu0 0.0
    %2792 = vmatpush1.msra.mxu0 0.0
    %2793 = vmatprep.subr.mxu0 0.0
    %2794 = vmatpush1.msra.mxu0 0.0
    %2795 = vmatprep.subr.mxu0 0.0
    %2796 = vmatpush1.msra.mxu0 0.0
    %2797 = vmatprep.subr.mxu0 0.0
    %2798 = vmatpush1.msra.mxu0 0.0
    %2799 = vmatprep.subr.mxu0 0.0
    %2800 = vmatpush1.msra.mxu0 0.0
    %2801 = vmatprep.subr.mxu0 0.0
    %2802 = vmatpush1.msra.mxu0 0.0
    %2803 = vmatprep.subr.mxu0 0.0
    %2804 = vmatpush1.msra.mxu0 0.0
    %2805 = vmatprep.subr.mxu0 0.0
    %2806 = vmatpush1.msra.mxu0 0.0
    %2807 = vmatprep.subr.mxu0 0.0
    %2808 = vmatpush1.msra.mxu0 0.0
    %2809 = vmatprep.subr.mxu0 0.0
    %2810 = vmatpush1.msra.mxu0 0.0
    %2811 = vmatprep.subr.mxu0 0.0
    %2812 = vmatpush1.msra.mxu0 0.0
    %2813 = vmatprep.subr.mxu0 0.0
    %2814 = vmatpush1.msra.mxu0 0.0
    %2815 = vmatprep.subr.mxu0 0.0
    %2816 = vmatpush1.msra.mxu0 0.0
    %2817 = vmatprep.subr.mxu0 0.0
    %2818 = vmatpush1.msra.mxu0 0.0
    %2819 = vmatprep.subr.mxu0 0.0
    %2820 = vmatpush1.msra.mxu0 0.0
    %2821 = vmatprep.subr.mxu0 0.0
    %2822 = vmatpush1.msra.mxu0 0.0
    %2823 = vmatprep.subr.mxu0 0.0
    %2824 = vmatpush1.msra.mxu0 0.0
    %2825 = vmatprep.subr.mxu0 0.0
    %2826 = vmatpush1.msra.mxu0 0.0
    %2827 = vmatprep.subr.mxu0 0.0
    %2828 = vmatpush1.msra.mxu0 0.0
    %2829 = vmatprep.subr.mxu0 0.0
    %2830 = vmatpush1.msra.mxu0 0.0
    %2831 = vmatprep.subr.mxu0 0.0
    %2832 = vmatpush1.msra.mxu0 0.0
    %2833 = vmatprep.mubr.f32.mxu0 0.0
    %2834 = vmatmul.mubr.f32.gmra.mrb[0].mxu0 %v2761
    %v2835 = vpop.f32.mrb[0].mxu0
    %v2836 = vadd.f32 0.0, %v2835
    %v2837 = vpop.f32.mrb[0].mxu0
    %2838 = vmatprep.mubr.f32.mxu0 0.0
    %2839 = vmatmul.mubr.f32.gmra.mrb[0].mxu0 %v2763
    %v2840 = vpop.f32.mrb[0].mxu0
    %v2841 = vadd.f32 0.0, %v2840
    %v2842 = vpop.f32.mrb[0].mxu0
    %2843 = vmatprep.mubr.f32.mxu0 0.0
    %2844 = vmatmul.mubr.f32.gmra.mrb[0].mxu0 %v2765
    %v2845 = vpop.f32.mrb[0].mxu0
    %v2846 = vadd.f32 0.0, %v2845
    %v2847 = vpop.f32.mrb[0].mxu0
    %2848 = vmatprep.mubr.f32.mxu0 0.0
    %2849 = vmatmul.mubr.f32.gmra.mrb[0].mxu0 %v2767
    %v2850 = vpop.f32.mrb[0].mxu0
    %v2851 = vadd.f32 0.0, %v2850
    %v2852 = vpop.f32.mrb[0].mxu0
    %2853 = vdwg.mxu0
    %2858 = vrot.lane.b32.xlu0 %v2409, 64
    %v2859 = vpop.permute.xlu0 %2858
    %2860 = vrot.lane.b32.xlu0 %v2410, 64
    %v2861 = vpop.permute.xlu0 %2860
    %2862 = vrot.lane.b32.xlu0 %v2411, 64
    %v2863 = vpop.permute.xlu0 %2862
    %2864 = vrot.lane.b32.xlu0 %v2412, 64
    %v2865 = vpop.permute.xlu0 %2864
    %v2866 = vsel %vm193, %v2859, 0
    %v2868 = vsel %vm193, %v2861, 0
    %v2870 = vsel %vm193, %v2863, 0
    %v2872 = vsel %vm193, %v2865, 0
    %2874 = vmatprep.subr.mxu0 0.0
    %2875 = vmatpush1.msra.mxu0 %v2733
    %2876 = vmatprep.subr.mxu0 0.0
    %2877 = vmatpush1.msra.mxu0 %v2734
    %2878 = vmatprep.subr.mxu0 0.0
    %2879 = vmatpush1.msra.mxu0 %v2735
    %2880 = vmatprep.subr.mxu0 0.0
    %2881 = vmatpush1.msra.mxu0 %v2736
    %2882 = vmatprep.subr.mxu0 0.0
    %2883 = vmatpush1.msra.mxu0 %v2737
    %2884 = vmatprep.subr.mxu0 0.0
    %2885 = vmatpush1.msra.mxu0 %v2738
    %2886 = vmatprep.subr.mxu0 0.0
    %2887 = vmatpush1.msra.mxu0 %v2739
    %2888 = vmatprep.subr.mxu0 0.0
    %2889 = vmatpush1.msra.mxu0 %v2740
    %2890 = vmatprep.subr.mxu0 0.0
    %2891 = vmatpush1.msra.mxu0 0.0
    %2892 = vmatprep.subr.mxu0 0.0
    %2893 = vmatpush1.msra.mxu0 0.0
    %2894 = vmatprep.subr.mxu0 0.0
    %2895 = vmatpush1.msra.mxu0 0.0
    %2896 = vmatprep.subr.mxu0 0.0
    %2897 = vmatpush1.msra.mxu0 0.0
    %2898 = vmatprep.subr.mxu0 0.0
    %2899 = vmatpush1.msra.mxu0 0.0
    %2900 = vmatprep.subr.mxu0 0.0
    %2901 = vmatpush1.msra.mxu0 0.0
    %2902 = vmatprep.subr.mxu0 0.0
    %2903 = vmatpush1.msra.mxu0 0.0
    %2904 = vmatprep.subr.mxu0 0.0
    %2905 = vmatpush1.msra.mxu0 0.0
    %2906 = vmatprep.subr.mxu0 0.0
    %2907 = vmatpush1.msra.mxu0 0.0
    %2908 = vmatprep.subr.mxu0 0.0
    %2909 = vmatpush1.msra.mxu0 0.0
    %2910 = vmatprep.subr.mxu0 0.0
    %2911 = vmatpush1.msra.mxu0 0.0
    %2912 = vmatprep.subr.mxu0 0.0
    %2913 = vmatpush1.msra.mxu0 0.0
    %2914 = vmatprep.subr.mxu0 0.0
    %2915 = vmatpush1.msra.mxu0 0.0
    %2916 = vmatprep.subr.mxu0 0.0
    %2917 = vmatpush1.msra.mxu0 0.0
    %2918 = vmatprep.subr.mxu0 0.0
    %2919 = vmatpush1.msra.mxu0 0.0
    %2920 = vmatprep.subr.mxu0 0.0
    %2921 = vmatpush1.msra.mxu0 0.0
    %2922 = vmatprep.subr.mxu0 0.0
    %2923 = vmatpush1.msra.mxu0 0.0
    %2924 = vmatprep.subr.mxu0 0.0
    %2925 = vmatpush1.msra.mxu0 0.0
    %2926 = vmatprep.subr.mxu0 0.0
    %2927 = vmatpush1.msra.mxu0 0.0
    %2928 = vmatprep.subr.mxu0 0.0
    %2929 = vmatpush1.msra.mxu0 0.0
    %2930 = vmatprep.subr.mxu0 0.0
    %2931 = vmatpush1.msra.mxu0 0.0
    %2932 = vmatprep.subr.mxu0 0.0
    %2933 = vmatpush1.msra.mxu0 0.0
    %2934 = vmatprep.subr.mxu0 0.0
    %2935 = vmatpush1.msra.mxu0 0.0
    %2936 = vmatprep.subr.mxu0 0.0
    %2937 = vmatpush1.msra.mxu0 0.0
    %2938 = vmatprep.mubr.f32.mxu0 0.0
    %2939 = vmatmul.mubr.f32.gmra.mrb[0].mxu0 %v2866
    %v2940 = vpop.f32.mrb[0].mxu0
    %v2941 = vadd.f32 %v2836, %v2940
    %v2942 = vpop.f32.mrb[0].mxu0
    %2943 = vmatprep.mubr.f32.mxu0 0.0
    %2944 = vmatmul.mubr.f32.gmra.mrb[0].mxu0 %v2868
    %v2945 = vpop.f32.mrb[0].mxu0
    %v2946 = vadd.f32 %v2841, %v2945
    %v2947 = vpop.f32.mrb[0].mxu0
    %2948 = vmatprep.mubr.f32.mxu0 0.0
    %2949 = vmatmul.mubr.f32.gmra.mrb[0].mxu0 %v2870
    %v2950 = vpop.f32.mrb[0].mxu0
    %v2951 = vadd.f32 %v2846, %v2950
    %v2952 = vpop.f32.mrb[0].mxu0
    %2953 = vmatprep.mubr.f32.mxu0 0.0
    %2954 = vmatmul.mubr.f32.gmra.mrb[0].mxu0 %v2872
    %v2955 = vpop.f32.mrb[0].mxu0
    %v2956 = vadd.f32 %v2851, %v2955
    %v2957 = vpop.f32.mrb[0].mxu0
    %2958 = vdwg.mxu0
    %v2959 = vld [vmem:[%s4 + $0x80] sm:$0x1]
    %v2960 = vlaneseq
    %v2961 = vshrl.u32 %v2960, 7
    %v2962 = vsub.s32 0, %v2961
    %v2963 = vrot.slane %v2959, %v2962
    %v2964 = vadd.f32 %v2941, %v2963
    %v2965 = vadd.f32 %v2946, %v2963
    %v2966 = vadd.f32 %v2951, %v2963
    %v2967 = vadd.f32 %v2956, %v2963
    %vm2968 = vcmask 31744
    %2969 = vst.msk [vmem:[%s5] sm:$0xff] %vm2968, %v2964
    %2970 = vst.msk [vmem:[%s5 + $0x8] sm:$0xff] %vm2968, %v2965
    %2971 = vst.msk [vmem:[%s5 + $0x10] sm:$0xff] %vm2968, %v2966
    %2972 = vst.msk [vmem:[%s5 + $0x18] sm:$0xff] %vm2968, %v2967
    // Predicated region
    $region30: #{grunet_forward.1} parent=1 // pred_check
      _
    $region31: #{grunet_forward.1} parent=1 // pred_check_branch
      %2974 = sbr.rel (0) target = $region33
    $region32: #{grunet_forward.1} parent=1 // pred_region
      _
    $region33: #{grunet_forward.1} parent=1 // pred_fallthru
      _
    // Predicated region
    $region34: #{grunet_forward.1} parent=1 // pred_check
      _
    $region35: #{grunet_forward.1} parent=1 // pred_check_branch
      %2976 = sbr.rel (0) target = $region37
    $region36: #{grunet_forward.1} parent=1 // pred_region
      _
    $region37: #{grunet_forward.1} parent=1 // pred_fallthru
      _
    %2977 = vsyncpa [#allocation3], 1
    %2978 = vsyncpa [#allocation5], 1

</llo_original>
